<compile_context>
chip_gen: v7x
topology: tpu7x:2x2x1
jax: 0.10.0
libtpu: 0.0.40
codegen_flags: <defaults>
</compile_context>

<pallas_src>
import functools
import math

import jax
import jax.numpy as jnp
from jax.experimental import pallas as pl
from jax.experimental.pallas import tpu as pltpu

CFG = dict(vocab=100, hidden=32, layers=2, heads=4, inter=64, max_pos=16, type_vocab=2)
LN_EPS = 1e-12


# ------------------------------ in-kernel helpers ------------------------------

def _layernorm(x, g, b, eps=LN_EPS):
    mu = jnp.mean(x, axis=-1, keepdims=True)
    xc = x - mu
    var = jnp.mean(xc * xc, axis=-1, keepdims=True)
    return xc * jax.lax.rsqrt(var + eps) * g + b


# ------------------------------ fully fused BERT kernel ------------------------------

def _bert_kernel(
    emb_ref, emb_g_ref, emb_b_ref, mask_ref,
    wqkv_ref, bqkv_ref, wo_ref, bo_ref, ln1g_ref, ln1b_ref,
    wi_ref, bi_ref, wf_ref, bf_ref, ln2g_ref, ln2b_ref,
    pw_ref, pb_ref, rw_ref, rb_ref,
    score_ref,
    h_ref,
    *, batch, seq, heads, head_dim):
    hidden = heads * head_dim
    m = batch * seq
    scale = 1.0 / math.sqrt(head_dim)
    layer = pl.program_id(0)

    # Grid step 0: embedding LayerNorm seeds the carried hidden state (VMEM scratch, persists
    # across the sequential layer axis — the activations never touch HBM).
    @pl.when(layer == 0)
    def _():
        h_ref[...] = _layernorm(emb_ref[...], emb_g_ref[...], emb_b_ref[...])

    x = h_ref[...]                                                      # [M, H] carried state

    # --- self-attention: fused QKV projection (one matmul, one read of x) ---
    qkv = jnp.dot(x, wqkv_ref[...], preferred_element_type=jnp.float32) + bqkv_ref[...]
    mask = mask_ref[...]                                                # [B, 1, S] additive

    # Per-head attention; the output projection is folded in as a sum of per-head [dh, H]
    # matmuls (identical to concat(ctx_heads) @ Wo, but avoids a lane-dim concat).
    attn = jnp.zeros((m, hidden), jnp.float32)
    for hh in range(heads):
        lo = hh * head_dim
        qh = qkv[:, lo:lo + head_dim].reshape(batch, seq, head_dim)
        kh = qkv[:, hidden + lo:hidden + lo + head_dim].reshape(batch, seq, head_dim)
        vh = qkv[:, 2 * hidden + lo:2 * hidden + lo + head_dim].reshape(batch, seq, head_dim)
        s = jnp.einsum("bqd,bkd->bqk", qh, kh,
                       preferred_element_type=jnp.float32) * scale      # [B, S, S]
        s = s + mask                                                    # broadcast over queries
        s_max = jnp.max(s, axis=-1, keepdims=True)
        p = jnp.exp(s - s_max)
        denom = jnp.sum(p, axis=-1, keepdims=True)
        p = p * pl.reciprocal(denom, approx=True)                       # EUP, not a VALU divide
        ctx = jnp.einsum("bqk,bkd->bqd", p, vh,
                         preferred_element_type=jnp.float32)            # [B, S, dh]
        attn = attn + jnp.dot(ctx.reshape(m, head_dim),
                              wo_ref[lo:lo + head_dim, :],
                              preferred_element_type=jnp.float32)
    attn = attn + bo_ref[...]

    # fused residual + LayerNorm
    h1 = _layernorm(attn + x, ln1g_ref[...], ln1b_ref[...])

    # --- FFN: up-proj + GELU + down-proj, fused with residual + LayerNorm ---
    inter = jnp.dot(h1, wi_ref[...], preferred_element_type=jnp.float32) + bi_ref[...]
    # TODO(synk): HF BERT uses exact erf GELU; tanh-approximate GELU used here.
    inter = jax.nn.gelu(inter, approximate=True)
    ffn = jnp.dot(inter, wf_ref[...], preferred_element_type=jnp.float32) + bf_ref[...]
    h_new = _layernorm(ffn + h1, ln2g_ref[...], ln2b_ref[...])
    h_ref[...] = h_new

    # Grid step L-1: fused pooler (tanh dense) + regression head, evaluated on all token rows
    # of the resident block (row-wise identical to applying it to [CLS] only).
    @pl.when(layer == pl.num_programs(0) - 1)
    def _():
        pooled = jnp.tanh(
            jnp.dot(h_new, pw_ref[...], preferred_element_type=jnp.float32) + pb_ref[...])
        # nn.Dropout(0.3) on pooler_output: identity at inference (model.eval()).
        score_ref[...] = (jnp.dot(pooled, rw_ref[...], preferred_element_type=jnp.float32)
                          + rb_ref[...])


def fused_bert(emb2d, mask3d, params, cfg):
    L, H, I = cfg["layers"], cfg["hidden"], cfg["inter"]
    B, _, S = mask3d.shape
    M = emb2d.shape[0]

    def full(shape):
        return pl.BlockSpec(shape, lambda l: (0,) * len(shape))

    def per_layer(shape):
        return pl.BlockSpec((None,) + shape, lambda l: (l,) + (0,) * len(shape))

    kernel = functools.partial(
        _bert_kernel,
        batch=B, seq=S, heads=cfg["heads"], head_dim=H // cfg["heads"])

    return pl.pallas_call(
        kernel,
        out_shape=jax.ShapeDtypeStruct((M, 1), jnp.float32),
        grid=(L,),
        in_specs=[
            full((M, H)), full((1, H)), full((1, H)), full((B, 1, S)),
            per_layer((H, 3 * H)), per_layer((1, 3 * H)),
            per_layer((H, H)), per_layer((1, H)),
            per_layer((1, H)), per_layer((1, H)),
            per_layer((H, I)), per_layer((1, I)),
            per_layer((I, H)), per_layer((1, H)),
            per_layer((1, H)), per_layer((1, H)),
            full((H, H)), full((1, H)), full((H, 1)), full((1, 1)),
        ],
        out_specs=pl.BlockSpec((M, 1), lambda l: (0, 0)),
        scratch_shapes=[pltpu.VMEM((M, H), jnp.float32)],   # carried hidden state, never in HBM
        compiler_params=pltpu.CompilerParams(
            dimension_semantics=("arbitrary",)),             # sequential layer carry
    )(emb2d, params["emb_ln_g"], params["emb_ln_b"], mask3d,
      params["w_qkv"], params["b_qkv"], params["w_o"], params["b_o"],
      params["ln1_g"], params["ln1_b"],
      params["w_i"], params["b_i"], params["w_f"], params["b_f"],
      params["ln2_g"], params["ln2_b"],
      params["pool_w"], params["pool_b"], params["reg_w"], params["reg_b"])


# ------------------------------ parameters ------------------------------

def init_params(key, cfg):
    H, I, L = cfg["hidden"], cfg["inter"], cfg["layers"]

    def nrm(k, shape):
        return 0.02 * jax.random.normal(k, shape, jnp.float32)

    ks = iter(jax.random.split(key, 9))
    return {
        "word_emb": nrm(next(ks), (cfg["vocab"], H)),
        "pos_emb": nrm(next(ks), (cfg["max_pos"], H)),
        "tok_emb": nrm(next(ks), (cfg["type_vocab"], H)),
        "emb_ln_g": jnp.ones((1, H), jnp.float32),
        "emb_ln_b": jnp.zeros((1, H), jnp.float32),
        # Per-layer weights stacked on a leading layer axis; QKV fused into one [H, 3H] weight.
        "w_qkv": nrm(next(ks), (L, H, 3 * H)),
        "b_qkv": jnp.zeros((L, 1, 3 * H), jnp.float32),
        "w_o": nrm(next(ks), (L, H, H)),
        "b_o": jnp.zeros((L, 1, H), jnp.float32),
        "ln1_g": jnp.ones((L, 1, H), jnp.float32),
        "ln1_b": jnp.zeros((L, 1, H), jnp.float32),
        "w_i": nrm(next(ks), (L, H, I)),
        "b_i": jnp.zeros((L, 1, I), jnp.float32),
        "w_f": nrm(next(ks), (L, I, H)),
        "b_f": jnp.zeros((L, 1, H), jnp.float32),
        "ln2_g": jnp.ones((L, 1, H), jnp.float32),
        "ln2_b": jnp.zeros((L, 1, H), jnp.float32),
        "pool_w": nrm(next(ks), (H, H)),
        "pool_b": jnp.zeros((1, H), jnp.float32),
        "reg_w": nrm(next(ks), (H, 1)),
        "reg_b": jnp.zeros((1, 1), jnp.float32),
    }


# ------------------------------ forward ------------------------------

def bert_similarity_forward(params, input_ids, attention_mask, token_type_ids, cfg=CFG):
    B, S = input_ids.shape
    H = cfg["hidden"]

    # Embedding gathers (word/position/token-type) are XLA glue; their sum feeds the fused
    # kernel, which applies the embedding LayerNorm at grid step 0.
    emb = (params["word_emb"][input_ids]
           + params["pos_emb"][jnp.arange(S)][None, :, :]
           + params["tok_emb"][token_type_ids])                          # [B, S, H]
    # embedding dropout: identity at inference.

    # HF-style extended additive mask, passed once as [B, 1, S]; per-head broadcast is in-kernel.
    mask3d = ((1.0 - attention_mask.astype(jnp.float32)) * -1e9).reshape(B, 1, S)

    score_all = fused_bert(emb.reshape(B * S, H), mask3d, params, cfg)   # [B*S, 1]
    return score_all.reshape(B, S)[:, 0]                                 # [CLS] row -> [B]


# ------------------------------ main ------------------------------

if __name__ == "__main__":
    key = jax.random.PRNGKey(0)
    k_params, k_ids = jax.random.split(key)

    B, S = 2, 8
    params = init_params(k_params, CFG)

    input_ids = jax.random.randint(k_ids, (B, S), 0, CFG["vocab"], dtype=jnp.int32)
    attention_mask = jnp.array([[1, 1, 1, 1, 1, 1, 1, 1],
                                [1, 1, 1, 1, 1, 1, 0, 0]], dtype=jnp.int32)
    token_type_ids = jnp.array([[0, 0, 0, 0, 1, 1, 1, 1],
                                [0, 0, 0, 1, 1, 1, 1, 1]], dtype=jnp.int32)

    fwd = jax.jit(functools.partial(bert_similarity_forward, cfg=CFG))
    out = fwd(params, input_ids, attention_mask, token_type_ids)
    jax.block_until_ready(out)
    assert out.shape == (B,) and out.dtype == jnp.float32
    print("KERNEL_OK")
</pallas_src>

<mosaic_0001>
module attributes {stable_mosaic.version = 11 : i64} {
  func.func @_bert_kernel(%arg0: i32, %arg1: memref<16x32xf32, #tpu.memory_space<vmem>>, %arg2: memref<1x32xf32, #tpu.memory_space<vmem>>, %arg3: memref<1x32xf32, #tpu.memory_space<vmem>>, %arg4: memref<2x1x8xf32, #tpu.memory_space<vmem>>, %arg5: memref<1x32x96xf32, #tpu.memory_space<vmem>>, %arg6: memref<1x1x96xf32, #tpu.memory_space<vmem>>, %arg7: memref<1x32x32xf32, #tpu.memory_space<vmem>>, %arg8: memref<1x1x32xf32, #tpu.memory_space<vmem>>, %arg9: memref<1x1x32xf32, #tpu.memory_space<vmem>>, %arg10: memref<1x1x32xf32, #tpu.memory_space<vmem>>, %arg11: memref<1x32x64xf32, #tpu.memory_space<vmem>>, %arg12: memref<1x1x64xf32, #tpu.memory_space<vmem>>, %arg13: memref<1x64x32xf32, #tpu.memory_space<vmem>>, %arg14: memref<1x1x32xf32, #tpu.memory_space<vmem>>, %arg15: memref<1x1x32xf32, #tpu.memory_space<vmem>>, %arg16: memref<1x1x32xf32, #tpu.memory_space<vmem>>, %arg17: memref<32x32xf32, #tpu.memory_space<vmem>>, %arg18: memref<1x32xf32, #tpu.memory_space<vmem>>, %arg19: memref<32x1xf32, #tpu.memory_space<vmem>>, %arg20: memref<1x1xf32, #tpu.memory_space<vmem>>, %arg21: memref<16x1xf32, #tpu.memory_space<vmem>>, %arg22: memref<16x32xf32, #tpu.memory_space<vmem>>) attributes {dimension_semantics = [#tpu.dimension_semantics<arbitrary>], iteration_bounds = array<i64: 2>, scalar_prefetch = 0 : i64, scratch_operands = 1 : i64, tpu.core_type = #tpu.core_type<tc>, window_params = [{pipeline_mode = #tpu.pipeline_mode<synchronous>, transform_indices = @transform_0, window_bounds = array<i64: 16, 32>}, {pipeline_mode = #tpu.pipeline_mode<synchronous>, transform_indices = @transform_1, window_bounds = array<i64: 1, 32>}, {pipeline_mode = #tpu.pipeline_mode<synchronous>, transform_indices = @transform_2, window_bounds = array<i64: 1, 32>}, {pipeline_mode = #tpu.pipeline_mode<synchronous>, transform_indices = @transform_3, window_bounds = array<i64: 2, 1, 8>}, {transform_indices = @transform_4, window_bounds = array<i64: 1, 32, 96>}, {transform_indices = @transform_5, window_bounds = array<i64: 1, 1, 96>}, {transform_indices = @transform_6, window_bounds = array<i64: 1, 32, 32>}, {transform_indices = @transform_7, window_bounds = array<i64: 1, 1, 32>}, {transform_indices = @transform_8, window_bounds = array<i64: 1, 1, 32>}, {transform_indices = @transform_9, window_bounds = array<i64: 1, 1, 32>}, {transform_indices = @transform_10, window_bounds = array<i64: 1, 32, 64>}, {transform_indices = @transform_11, window_bounds = array<i64: 1, 1, 64>}, {transform_indices = @transform_12, window_bounds = array<i64: 1, 64, 32>}, {transform_indices = @transform_13, window_bounds = array<i64: 1, 1, 32>}, {transform_indices = @transform_14, window_bounds = array<i64: 1, 1, 32>}, {transform_indices = @transform_15, window_bounds = array<i64: 1, 1, 32>}, {pipeline_mode = #tpu.pipeline_mode<synchronous>, transform_indices = @transform_16, window_bounds = array<i64: 32, 32>}, {pipeline_mode = #tpu.pipeline_mode<synchronous>, transform_indices = @transform_17, window_bounds = array<i64: 1, 32>}, {pipeline_mode = #tpu.pipeline_mode<synchronous>, transform_indices = @transform_18, window_bounds = array<i64: 32, 1>}, {pipeline_mode = #tpu.pipeline_mode<synchronous>, transform_indices = @transform_19, window_bounds = array<i64: 1, 1>}, {pipeline_mode = #tpu.pipeline_mode<synchronous>, transform_indices = @transform_20, window_bounds = array<i64: 16, 1>}]} {
    %c0_i32 = arith.constant 0 : i32
    %0 = arith.cmpi eq, %arg0, %c0_i32 : i32
    %1 = arith.extui %0 : i1 to i32
    %c0_i32_0 = arith.constant 0 : i32
    %2 = arith.cmpi ne, %1, %c0_i32_0 : i32
    scf.if %2 {
      %c0_91 = arith.constant 0 : index
      %c0_92 = arith.constant 0 : index
      %206 = vector.load %arg1[%c0_91, %c0_92] : memref<16x32xf32, #tpu.memory_space<vmem>>, vector<16x32xf32>
      %c0_93 = arith.constant 0 : index
      %c0_94 = arith.constant 0 : index
      %207 = vector.load %arg2[%c0_93, %c0_94] : memref<1x32xf32, #tpu.memory_space<vmem>>, vector<1x32xf32>
      %c0_95 = arith.constant 0 : index
      %c0_96 = arith.constant 0 : index
      %208 = vector.load %arg3[%c0_95, %c0_96] : memref<1x32xf32, #tpu.memory_space<vmem>>, vector<1x32xf32>
      %cst_97 = arith.constant dense<0.000000e+00> : vector<16xf32>
      %209 = vector.multi_reduction <add>, %206, %cst_97 [1] : vector<16x32xf32> to vector<16xf32>
      %210 = vector.shape_cast %209 : vector<16xf32> to vector<16x1xf32>
      %cst_98 = arith.constant 3.200000e+01 : f32
      %211 = vector.broadcast %cst_98 : f32 to vector<16x1xf32>
      %212 = arith.divf %210, %211 : vector<16x1xf32>
      %213 = vector.broadcast %212 : vector<16x1xf32> to vector<16x32xf32>
      %214 = arith.subf %206, %213 : vector<16x32xf32>
      %215 = arith.mulf %214, %214 : vector<16x32xf32>
      %cst_99 = arith.constant dense<0.000000e+00> : vector<16xf32>
      %216 = vector.multi_reduction <add>, %215, %cst_99 [1] : vector<16x32xf32> to vector<16xf32>
      %217 = vector.shape_cast %216 : vector<16xf32> to vector<16x1xf32>
      %cst_100 = arith.constant 3.200000e+01 : f32
      %218 = vector.broadcast %cst_100 : f32 to vector<16x1xf32>
      %219 = arith.divf %217, %218 : vector<16x1xf32>
      %cst_101 = arith.constant 9.99999996E-13 : f32
      %220 = vector.broadcast %cst_101 : f32 to vector<16x1xf32>
      %221 = arith.addf %219, %220 : vector<16x1xf32>
      %222 = math.rsqrt %221 : vector<16x1xf32>
      %223 = vector.broadcast %222 : vector<16x1xf32> to vector<16x32xf32>
      %224 = arith.mulf %214, %223 : vector<16x32xf32>
      %225 = vector.broadcast %207 : vector<1x32xf32> to vector<16x32xf32>
      %226 = arith.mulf %224, %225 : vector<16x32xf32>
      %227 = vector.broadcast %208 : vector<1x32xf32> to vector<16x32xf32>
      %228 = arith.addf %226, %227 : vector<16x32xf32>
      %c0_102 = arith.constant 0 : index
      %c0_103 = arith.constant 0 : index
      %229 = vector.load %arg22[%c0_102, %c0_103] : memref<16x32xf32, #tpu.memory_space<vmem>>, vector<16x32xf32>
      tpu.vector_store %arg22[%c0_102, %c0_103], %228 {strides = array<i32>} : memref<16x32xf32, #tpu.memory_space<vmem>>, vector<16x32xf32>,
    } else {
    }
    %c0 = arith.constant 0 : index
    %c0_1 = arith.constant 0 : index
    %3 = vector.load %arg22[%c0, %c0_1] : memref<16x32xf32, #tpu.memory_space<vmem>>, vector<16x32xf32>
    %c0_2 = arith.constant 0 : index
    %c0_3 = arith.constant 0 : index
    %c0_4 = arith.constant 0 : index
    %4 = vector.load %arg5[%c0_2, %c0_3, %c0_4] : memref<1x32x96xf32, #tpu.memory_space<vmem>>, vector<1x32x96xf32>
    %5 = vector.shape_cast %4 : vector<1x32x96xf32> to vector<32x96xf32>
    %cst = arith.constant dense<0.000000e+00> : vector<16x96xf32>
    %6 = tpu.matmul %3, %5, %cst {dimension_numbers = #tpu.dot_dimension_numbers<[1], [0], [0], [1], [0, 0, 1, 1], [], []>} : vector<16x32xf32>, vector<32x96xf32>, vector<16x96xf32> -> vector<16x96xf32>
    %c0_5 = arith.constant 0 : index
    %c0_6 = arith.constant 0 : index
    %c0_7 = arith.constant 0 : index
    %7 = vector.load %arg6[%c0_5, %c0_6, %c0_7] : memref<1x1x96xf32, #tpu.memory_space<vmem>>, vector<1x1x96xf32>
    %8 = vector.shape_cast %7 : vector<1x1x96xf32> to vector<1x96xf32>
    %9 = vector.broadcast %8 : vector<1x96xf32> to vector<16x96xf32>
    %10 = arith.addf %6, %9 : vector<16x96xf32>
    %c0_8 = arith.constant 0 : index
    %c0_9 = arith.constant 0 : index
    %c0_10 = arith.constant 0 : index
    %11 = vector.load %arg4[%c0_8, %c0_9, %c0_10] : memref<2x1x8xf32, #tpu.memory_space<vmem>>, vector<2x1x8xf32>
    %cst_11 = arith.constant 0.000000e+00 : f32
    %12 = vector.broadcast %cst_11 : f32 to vector<16x32xf32>
    %13 = vector.extract_strided_slice %10 {offsets = [0, 0], sizes = [16, 8], strides = [1, 1]} : vector<16x96xf32> to vector<16x8xf32>
    %14 = vector.shape_cast %13 : vector<16x8xf32> to vector<2x8x8xf32>
    %15 = vector.extract_strided_slice %10 {offsets = [0, 32], sizes = [16, 8], strides = [1, 1]} : vector<16x96xf32> to vector<16x8xf32>
    %16 = vector.shape_cast %15 : vector<16x8xf32> to vector<2x8x8xf32>
    %17 = vector.extract_strided_slice %10 {offsets = [0, 64], sizes = [16, 8], strides = [1, 1]} : vector<16x96xf32> to vector<16x8xf32>
    %18 = vector.shape_cast %17 : vector<16x8xf32> to vector<2x8x8xf32>
    "tpu.trace_start"() <{level = 10 : i32, message = "bqd,bkd->bqk"}> : () -> ()
    %cst_12 = arith.constant dense<0.000000e+00> : vector<2x8x8xf32>
    %19 = tpu.matmul %14, %16, %cst_12 {dimension_numbers = #tpu.dot_dimension_numbers<[2], [2], [1], [1], [0, 0, 0, 1, 1, 1], [0], [0]>} : vector<2x8x8xf32>, vector<2x8x8xf32>, vector<2x8x8xf32> -> vector<2x8x8xf32>
    "tpu.trace_stop"() : () -> ()
    %cst_13 = arith.constant 0.353553385 : f32
    %20 = vector.broadcast %cst_13 : f32 to vector<2x8x8xf32>
    %21 = arith.mulf %19, %20 : vector<2x8x8xf32>
    %22 = vector.broadcast %11 : vector<2x1x8xf32> to vector<2x8x8xf32>
    %23 = arith.addf %21, %22 : vector<2x8x8xf32>
    %cst_14 = arith.constant dense<0xFF800000> : vector<2x8xf32>
    %24 = vector.multi_reduction <maximumf>, %23, %cst_14 [2] : vector<2x8x8xf32> to vector<2x8xf32>
    %25 = vector.shape_cast %24 : vector<2x8xf32> to vector<2x8x1xf32>
    %26 = vector.broadcast %25 : vector<2x8x1xf32> to vector<2x8x8xf32>
    %27 = arith.subf %23, %26 : vector<2x8x8xf32>
    %28 = math.exp %27 : vector<2x8x8xf32>
    %cst_15 = arith.constant dense<0.000000e+00> : vector<2x8xf32>
    %29 = vector.multi_reduction <add>, %28, %cst_15 [2] : vector<2x8x8xf32> to vector<2x8xf32>
    %30 = vector.shape_cast %29 : vector<2x8xf32> to vector<2x8x1xf32>
    %31 = tpu.reciprocal %30 {approx = true} : vector<2x8x1xf32> -> vector<2x8x1xf32>
    %32 = vector.broadcast %31 : vector<2x8x1xf32> to vector<2x8x8xf32>
    %33 = arith.mulf %28, %32 : vector<2x8x8xf32>
    "tpu.trace_start"() <{level = 10 : i32, message = "bqk,bkd->bqd"}> : () -> ()
    %cst_16 = arith.constant dense<0.000000e+00> : vector<2x8x8xf32>
    %34 = tpu.matmul %33, %18, %cst_16 {dimension_numbers = #tpu.dot_dimension_numbers<[2], [1], [1], [2], [0, 0, 0, 1, 1, 2], [0], [0]>} : vector<2x8x8xf32>, vector<2x8x8xf32>, vector<2x8x8xf32> -> vector<2x8x8xf32>
    "tpu.trace_stop"() : () -> ()
    %35 = vector.shape_cast %34 : vector<2x8x8xf32> to vector<16x8xf32>
    %c0_17 = arith.constant 0 : index
    %c0_18 = arith.constant 0 : index
    %c0_19 = arith.constant 0 : index
    %36 = vector.load %arg7[%c0_17, %c0_18, %c0_19] : memref<1x32x32xf32, #tpu.memory_space<vmem>>, vector<1x8x32xf32>
    %37 = vector.shape_cast %36 : vector<1x8x32xf32> to vector<8x32xf32>
    %cst_20 = arith.constant dense<0.000000e+00> : vector<16x32xf32>
    %38 = tpu.matmul %35, %37, %cst_20 {dimension_numbers = #tpu.dot_dimension_numbers<[1], [0], [0], [1], [0, 0, 1, 1], [], []>} : vector<16x8xf32>, vector<8x32xf32>, vector<16x32xf32> -> vector<16x32xf32>
    %39 = arith.addf %12, %38 : vector<16x32xf32>
    %40 = vector.extract_strided_slice %10 {offsets = [0, 8], sizes = [16, 8], strides = [1, 1]} : vector<16x96xf32> to vector<16x8xf32>
    %41 = vector.shape_cast %40 : vector<16x8xf32> to vector<2x8x8xf32>
    %42 = vector.extract_strided_slice %10 {offsets = [0, 40], sizes = [16, 8], strides = [1, 1]} : vector<16x96xf32> to vector<16x8xf32>
    %43 = vector.shape_cast %42 : vector<16x8xf32> to vector<2x8x8xf32>
    %44 = vector.extract_strided_slice %10 {offsets = [0, 72], sizes = [16, 8], strides = [1, 1]} : vector<16x96xf32> to vector<16x8xf32>
    %45 = vector.shape_cast %44 : vector<16x8xf32> to vector<2x8x8xf32>
    "tpu.trace_start"() <{level = 10 : i32, message = "bqd,bkd->bqk"}> : () -> ()
    %cst_21 = arith.constant dense<0.000000e+00> : vector<2x8x8xf32>
    %46 = tpu.matmul %41, %43, %cst_21 {dimension_numbers = #tpu.dot_dimension_numbers<[2], [2], [1], [1], [0, 0, 0, 1, 1, 1], [0], [0]>} : vector<2x8x8xf32>, vector<2x8x8xf32>, vector<2x8x8xf32> -> vector<2x8x8xf32>
    "tpu.trace_stop"() : () -> ()
    %cst_22 = arith.constant 0.353553385 : f32
    %47 = vector.broadcast %cst_22 : f32 to vector<2x8x8xf32>
    %48 = arith.mulf %46, %47 : vector<2x8x8xf32>
    %49 = vector.broadcast %11 : vector<2x1x8xf32> to vector<2x8x8xf32>
    %50 = arith.addf %48, %49 : vector<2x8x8xf32>
    %cst_23 = arith.constant dense<0xFF800000> : vector<2x8xf32>
    %51 = vector.multi_reduction <maximumf>, %50, %cst_23 [2] : vector<2x8x8xf32> to vector<2x8xf32>
    %52 = vector.shape_cast %51 : vector<2x8xf32> to vector<2x8x1xf32>
    %53 = vector.broadcast %52 : vector<2x8x1xf32> to vector<2x8x8xf32>
    %54 = arith.subf %50, %53 : vector<2x8x8xf32>
    %55 = math.exp %54 : vector<2x8x8xf32>
    %cst_24 = arith.constant dense<0.000000e+00> : vector<2x8xf32>
    %56 = vector.multi_reduction <add>, %55, %cst_24 [2] : vector<2x8x8xf32> to vector<2x8xf32>
    %57 = vector.shape_cast %56 : vector<2x8xf32> to vector<2x8x1xf32>
    %58 = tpu.reciprocal %57 {approx = true} : vector<2x8x1xf32> -> vector<2x8x1xf32>
    %59 = vector.broadcast %58 : vector<2x8x1xf32> to vector<2x8x8xf32>
    %60 = arith.mulf %55, %59 : vector<2x8x8xf32>
    "tpu.trace_start"() <{level = 10 : i32, message = "bqk,bkd->bqd"}> : () -> ()
    %cst_25 = arith.constant dense<0.000000e+00> : vector<2x8x8xf32>
    %61 = tpu.matmul %60, %45, %cst_25 {dimension_numbers = #tpu.dot_dimension_numbers<[2], [1], [1], [2], [0, 0, 0, 1, 1, 2], [0], [0]>} : vector<2x8x8xf32>, vector<2x8x8xf32>, vector<2x8x8xf32> -> vector<2x8x8xf32>
    "tpu.trace_stop"() : () -> ()
    %62 = vector.shape_cast %61 : vector<2x8x8xf32> to vector<16x8xf32>
    %c0_26 = arith.constant 0 : index
    %c8 = arith.constant 8 : index
    %c0_27 = arith.constant 0 : index
    %63 = vector.load %arg7[%c0_26, %c8, %c0_27] : memref<1x32x32xf32, #tpu.memory_space<vmem>>, vector<1x8x32xf32>
    %64 = vector.shape_cast %63 : vector<1x8x32xf32> to vector<8x32xf32>
    %cst_28 = arith.constant dense<0.000000e+00> : vector<16x32xf32>
    %65 = tpu.matmul %62, %64, %cst_28 {dimension_numbers = #tpu.dot_dimension_numbers<[1], [0], [0], [1], [0, 0, 1, 1], [], []>} : vector<16x8xf32>, vector<8x32xf32>, vector<16x32xf32> -> vector<16x32xf32>
    %66 = arith.addf %39, %65 : vector<16x32xf32>
    %67 = vector.extract_strided_slice %10 {offsets = [0, 16], sizes = [16, 8], strides = [1, 1]} : vector<16x96xf32> to vector<16x8xf32>
    %68 = vector.shape_cast %67 : vector<16x8xf32> to vector<2x8x8xf32>
    %69 = vector.extract_strided_slice %10 {offsets = [0, 48], sizes = [16, 8], strides = [1, 1]} : vector<16x96xf32> to vector<16x8xf32>
    %70 = vector.shape_cast %69 : vector<16x8xf32> to vector<2x8x8xf32>
    %71 = vector.extract_strided_slice %10 {offsets = [0, 80], sizes = [16, 8], strides = [1, 1]} : vector<16x96xf32> to vector<16x8xf32>
    %72 = vector.shape_cast %71 : vector<16x8xf32> to vector<2x8x8xf32>
    "tpu.trace_start"() <{level = 10 : i32, message = "bqd,bkd->bqk"}> : () -> ()
    %cst_29 = arith.constant dense<0.000000e+00> : vector<2x8x8xf32>
    %73 = tpu.matmul %68, %70, %cst_29 {dimension_numbers = #tpu.dot_dimension_numbers<[2], [2], [1], [1], [0, 0, 0, 1, 1, 1], [0], [0]>} : vector<2x8x8xf32>, vector<2x8x8xf32>, vector<2x8x8xf32> -> vector<2x8x8xf32>
    "tpu.trace_stop"() : () -> ()
    %cst_30 = arith.constant 0.353553385 : f32
    %74 = vector.broadcast %cst_30 : f32 to vector<2x8x8xf32>
    %75 = arith.mulf %73, %74 : vector<2x8x8xf32>
    %76 = vector.broadcast %11 : vector<2x1x8xf32> to vector<2x8x8xf32>
    %77 = arith.addf %75, %76 : vector<2x8x8xf32>
    %cst_31 = arith.constant dense<0xFF800000> : vector<2x8xf32>
    %78 = vector.multi_reduction <maximumf>, %77, %cst_31 [2] : vector<2x8x8xf32> to vector<2x8xf32>
    %79 = vector.shape_cast %78 : vector<2x8xf32> to vector<2x8x1xf32>
    %80 = vector.broadcast %79 : vector<2x8x1xf32> to vector<2x8x8xf32>
    %81 = arith.subf %77, %80 : vector<2x8x8xf32>
    %82 = math.exp %81 : vector<2x8x8xf32>
    %cst_32 = arith.constant dense<0.000000e+00> : vector<2x8xf32>
    %83 = vector.multi_reduction <add>, %82, %cst_32 [2] : vector<2x8x8xf32> to vector<2x8xf32>
    %84 = vector.shape_cast %83 : vector<2x8xf32> to vector<2x8x1xf32>
    %85 = tpu.reciprocal %84 {approx = true} : vector<2x8x1xf32> -> vector<2x8x1xf32>
    %86 = vector.broadcast %85 : vector<2x8x1xf32> to vector<2x8x8xf32>
    %87 = arith.mulf %82, %86 : vector<2x8x8xf32>
    "tpu.trace_start"() <{level = 10 : i32, message = "bqk,bkd->bqd"}> : () -> ()
    %cst_33 = arith.constant dense<0.000000e+00> : vector<2x8x8xf32>
    %88 = tpu.matmul %87, %72, %cst_33 {dimension_numbers = #tpu.dot_dimension_numbers<[2], [1], [1], [2], [0, 0, 0, 1, 1, 2], [0], [0]>} : vector<2x8x8xf32>, vector<2x8x8xf32>, vector<2x8x8xf32> -> vector<2x8x8xf32>
    "tpu.trace_stop"() : () -> ()
    %89 = vector.shape_cast %88 : vector<2x8x8xf32> to vector<16x8xf32>
    %c0_34 = arith.constant 0 : index
    %c16 = arith.constant 16 : index
    %c0_35 = arith.constant 0 : index
    %90 = vector.load %arg7[%c0_34, %c16, %c0_35] : memref<1x32x32xf32, #tpu.memory_space<vmem>>, vector<1x8x32xf32>
    %91 = vector.shape_cast %90 : vector<1x8x32xf32> to vector<8x32xf32>
    %cst_36 = arith.constant dense<0.000000e+00> : vector<16x32xf32>
    %92 = tpu.matmul %89, %91, %cst_36 {dimension_numbers = #tpu.dot_dimension_numbers<[1], [0], [0], [1], [0, 0, 1, 1], [], []>} : vector<16x8xf32>, vector<8x32xf32>, vector<16x32xf32> -> vector<16x32xf32>
    %93 = arith.addf %66, %92 : vector<16x32xf32>
    %94 = vector.extract_strided_slice %10 {offsets = [0, 24], sizes = [16, 8], strides = [1, 1]} : vector<16x96xf32> to vector<16x8xf32>
    %95 = vector.shape_cast %94 : vector<16x8xf32> to vector<2x8x8xf32>
    %96 = vector.extract_strided_slice %10 {offsets = [0, 56], sizes = [16, 8], strides = [1, 1]} : vector<16x96xf32> to vector<16x8xf32>
    %97 = vector.shape_cast %96 : vector<16x8xf32> to vector<2x8x8xf32>
    %98 = vector.extract_strided_slice %10 {offsets = [0, 88], sizes = [16, 8], strides = [1, 1]} : vector<16x96xf32> to vector<16x8xf32>
    %99 = vector.shape_cast %98 : vector<16x8xf32> to vector<2x8x8xf32>
    "tpu.trace_start"() <{level = 10 : i32, message = "bqd,bkd->bqk"}> : () -> ()
    %cst_37 = arith.constant dense<0.000000e+00> : vector<2x8x8xf32>
    %100 = tpu.matmul %95, %97, %cst_37 {dimension_numbers = #tpu.dot_dimension_numbers<[2], [2], [1], [1], [0, 0, 0, 1, 1, 1], [0], [0]>} : vector<2x8x8xf32>, vector<2x8x8xf32>, vector<2x8x8xf32> -> vector<2x8x8xf32>
    "tpu.trace_stop"() : () -> ()
    %cst_38 = arith.constant 0.353553385 : f32
    %101 = vector.broadcast %cst_38 : f32 to vector<2x8x8xf32>
    %102 = arith.mulf %100, %101 : vector<2x8x8xf32>
    %103 = vector.broadcast %11 : vector<2x1x8xf32> to vector<2x8x8xf32>
    %104 = arith.addf %102, %103 : vector<2x8x8xf32>
    %cst_39 = arith.constant dense<0xFF800000> : vector<2x8xf32>
    %105 = vector.multi_reduction <maximumf>, %104, %cst_39 [2] : vector<2x8x8xf32> to vector<2x8xf32>
    %106 = vector.shape_cast %105 : vector<2x8xf32> to vector<2x8x1xf32>
    %107 = vector.broadcast %106 : vector<2x8x1xf32> to vector<2x8x8xf32>
    %108 = arith.subf %104, %107 : vector<2x8x8xf32>
    %109 = math.exp %108 : vector<2x8x8xf32>
    %cst_40 = arith.constant dense<0.000000e+00> : vector<2x8xf32>
    %110 = vector.multi_reduction <add>, %109, %cst_40 [2] : vector<2x8x8xf32> to vector<2x8xf32>
    %111 = vector.shape_cast %110 : vector<2x8xf32> to vector<2x8x1xf32>
    %112 = tpu.reciprocal %111 {approx = true} : vector<2x8x1xf32> -> vector<2x8x1xf32>
    %113 = vector.broadcast %112 : vector<2x8x1xf32> to vector<2x8x8xf32>
    %114 = arith.mulf %109, %113 : vector<2x8x8xf32>
    "tpu.trace_start"() <{level = 10 : i32, message = "bqk,bkd->bqd"}> : () -> ()
    %cst_41 = arith.constant dense<0.000000e+00> : vector<2x8x8xf32>
    %115 = tpu.matmul %114, %99, %cst_41 {dimension_numbers = #tpu.dot_dimension_numbers<[2], [1], [1], [2], [0, 0, 0, 1, 1, 2], [0], [0]>} : vector<2x8x8xf32>, vector<2x8x8xf32>, vector<2x8x8xf32> -> vector<2x8x8xf32>
    "tpu.trace_stop"() : () -> ()
    %116 = vector.shape_cast %115 : vector<2x8x8xf32> to vector<16x8xf32>
    %c0_42 = arith.constant 0 : index
    %c24 = arith.constant 24 : index
    %c0_43 = arith.constant 0 : index
    %117 = vector.load %arg7[%c0_42, %c24, %c0_43] : memref<1x32x32xf32, #tpu.memory_space<vmem>>, vector<1x8x32xf32>
    %118 = vector.shape_cast %117 : vector<1x8x32xf32> to vector<8x32xf32>
    %cst_44 = arith.constant dense<0.000000e+00> : vector<16x32xf32>
    %119 = tpu.matmul %116, %118, %cst_44 {dimension_numbers = #tpu.dot_dimension_numbers<[1], [0], [0], [1], [0, 0, 1, 1], [], []>} : vector<16x8xf32>, vector<8x32xf32>, vector<16x32xf32> -> vector<16x32xf32>
    %120 = arith.addf %93, %119 : vector<16x32xf32>
    %c0_45 = arith.constant 0 : index
    %c0_46 = arith.constant 0 : index
    %c0_47 = arith.constant 0 : index
    %121 = vector.load %arg8[%c0_45, %c0_46, %c0_47] : memref<1x1x32xf32, #tpu.memory_space<vmem>>, vector<1x1x32xf32>
    %122 = vector.shape_cast %121 : vector<1x1x32xf32> to vector<1x32xf32>
    %123 = vector.broadcast %122 : vector<1x32xf32> to vector<16x32xf32>
    %124 = arith.addf %120, %123 : vector<16x32xf32>
    %125 = arith.addf %124, %3 : vector<16x32xf32>
    %c0_48 = arith.constant 0 : index
    %c0_49 = arith.constant 0 : index
    %c0_50 = arith.constant 0 : index
    %126 = vector.load %arg9[%c0_48, %c0_49, %c0_50] : memref<1x1x32xf32, #tpu.memory_space<vmem>>, vector<1x1x32xf32>
    %127 = vector.shape_cast %126 : vector<1x1x32xf32> to vector<1x32xf32>
    %c0_51 = arith.constant 0 : index
    %c0_52 = arith.constant 0 : index
    %c0_53 = arith.constant 0 : index
    %128 = vector.load %arg10[%c0_51, %c0_52, %c0_53] : memref<1x1x32xf32, #tpu.memory_space<vmem>>, vector<1x1x32xf32>
    %129 = vector.shape_cast %128 : vector<1x1x32xf32> to vector<1x32xf32>
    %cst_54 = arith.constant dense<0.000000e+00> : vector<16xf32>
    %130 = vector.multi_reduction <add>, %125, %cst_54 [1] : vector<16x32xf32> to vector<16xf32>
    %131 = vector.shape_cast %130 : vector<16xf32> to vector<16x1xf32>
    %cst_55 = arith.constant 3.200000e+01 : f32
    %132 = vector.broadcast %cst_55 : f32 to vector<16x1xf32>
    %133 = arith.divf %131, %132 : vector<16x1xf32>
    %134 = vector.broadcast %133 : vector<16x1xf32> to vector<16x32xf32>
    %135 = arith.subf %125, %134 : vector<16x32xf32>
    %136 = arith.mulf %135, %135 : vector<16x32xf32>
    %cst_56 = arith.constant dense<0.000000e+00> : vector<16xf32>
    %137 = vector.multi_reduction <add>, %136, %cst_56 [1] : vector<16x32xf32> to vector<16xf32>
    %138 = vector.shape_cast %137 : vector<16xf32> to vector<16x1xf32>
    %cst_57 = arith.constant 3.200000e+01 : f32
    %139 = vector.broadcast %cst_57 : f32 to vector<16x1xf32>
    %140 = arith.divf %138, %139 : vector<16x1xf32>
    %cst_58 = arith.constant 9.99999996E-13 : f32
    %141 = vector.broadcast %cst_58 : f32 to vector<16x1xf32>
    %142 = arith.addf %140, %141 : vector<16x1xf32>
    %143 = math.rsqrt %142 : vector<16x1xf32>
    %144 = vector.broadcast %143 : vector<16x1xf32> to vector<16x32xf32>
    %145 = arith.mulf %135, %144 : vector<16x32xf32>
    %146 = vector.broadcast %127 : vector<1x32xf32> to vector<16x32xf32>
    %147 = arith.mulf %145, %146 : vector<16x32xf32>
    %148 = vector.broadcast %129 : vector<1x32xf32> to vector<16x32xf32>
    %149 = arith.addf %147, %148 : vector<16x32xf32>
    %c0_59 = arith.constant 0 : index
    %c0_60 = arith.constant 0 : index
    %c0_61 = arith.constant 0 : index
    %150 = vector.load %arg11[%c0_59, %c0_60, %c0_61] : memref<1x32x64xf32, #tpu.memory_space<vmem>>, vector<1x32x64xf32>
    %151 = vector.shape_cast %150 : vector<1x32x64xf32> to vector<32x64xf32>
    %cst_62 = arith.constant dense<0.000000e+00> : vector<16x64xf32>
    %152 = tpu.matmul %149, %151, %cst_62 {dimension_numbers = #tpu.dot_dimension_numbers<[1], [0], [0], [1], [0, 0, 1, 1], [], []>} : vector<16x32xf32>, vector<32x64xf32>, vector<16x64xf32> -> vector<16x64xf32>
    %c0_63 = arith.constant 0 : index
    %c0_64 = arith.constant 0 : index
    %c0_65 = arith.constant 0 : index
    %153 = vector.load %arg12[%c0_63, %c0_64, %c0_65] : memref<1x1x64xf32, #tpu.memory_space<vmem>>, vector<1x1x64xf32>
    %154 = vector.shape_cast %153 : vector<1x1x64xf32> to vector<1x64xf32>
    %155 = vector.broadcast %154 : vector<1x64xf32> to vector<16x64xf32>
    %156 = arith.addf %152, %155 : vector<16x64xf32>
    %157 = arith.mulf %156, %156 : vector<16x64xf32>
    %158 = arith.mulf %156, %157 : vector<16x64xf32>
    %cst_66 = arith.constant 4.471500e-02 : f32
    %159 = vector.broadcast %cst_66 : f32 to vector<16x64xf32>
    %160 = arith.mulf %159, %158 : vector<16x64xf32>
    %161 = arith.addf %156, %160 : vector<16x64xf32>
    %cst_67 = arith.constant 0.797884583 : f32
    %162 = vector.broadcast %cst_67 : f32 to vector<16x64xf32>
    %163 = arith.mulf %162, %161 : vector<16x64xf32>
    %164 = math.tanh %163 : vector<16x64xf32>
    %cst_68 = arith.constant 1.000000e+00 : f32
    %165 = vector.broadcast %cst_68 : f32 to vector<16x64xf32>
    %166 = arith.addf %165, %164 : vector<16x64xf32>
    %cst_69 = arith.constant 5.000000e-01 : f32
    %167 = vector.broadcast %cst_69 : f32 to vector<16x64xf32>
    %168 = arith.mulf %167, %166 : vector<16x64xf32>
    %169 = arith.mulf %156, %168 : vector<16x64xf32>
    %c0_70 = arith.constant 0 : index
    %c0_71 = arith.constant 0 : index
    %c0_72 = arith.constant 0 : index
    %170 = vector.load %arg13[%c0_70, %c0_71, %c0_72] : memref<1x64x32xf32, #tpu.memory_space<vmem>>, vector<1x64x32xf32>
    %171 = vector.shape_cast %170 : vector<1x64x32xf32> to vector<64x32xf32>
    %cst_73 = arith.constant dense<0.000000e+00> : vector<16x32xf32>
    %172 = tpu.matmul %169, %171, %cst_73 {dimension_numbers = #tpu.dot_dimension_numbers<[1], [0], [0], [1], [0, 0, 1, 1], [], []>} : vector<16x64xf32>, vector<64x32xf32>, vector<16x32xf32> -> vector<16x32xf32>
    %c0_74 = arith.constant 0 : index
    %c0_75 = arith.constant 0 : index
    %c0_76 = arith.constant 0 : index
    %173 = vector.load %arg14[%c0_74, %c0_75, %c0_76] : memref<1x1x32xf32, #tpu.memory_space<vmem>>, vector<1x1x32xf32>
    %174 = vector.shape_cast %173 : vector<1x1x32xf32> to vector<1x32xf32>
    %175 = vector.broadcast %174 : vector<1x32xf32> to vector<16x32xf32>
    %176 = arith.addf %172, %175 : vector<16x32xf32>
    %177 = arith.addf %176, %149 : vector<16x32xf32>
    %c0_77 = arith.constant 0 : index
    %c0_78 = arith.constant 0 : index
    %c0_79 = arith.constant 0 : index
    %178 = vector.load %arg15[%c0_77, %c0_78, %c0_79] : memref<1x1x32xf32, #tpu.memory_space<vmem>>, vector<1x1x32xf32>
    %179 = vector.shape_cast %178 : vector<1x1x32xf32> to vector<1x32xf32>
    %c0_80 = arith.constant 0 : index
    %c0_81 = arith.constant 0 : index
    %c0_82 = arith.constant 0 : index
    %180 = vector.load %arg16[%c0_80, %c0_81, %c0_82] : memref<1x1x32xf32, #tpu.memory_space<vmem>>, vector<1x1x32xf32>
    %181 = vector.shape_cast %180 : vector<1x1x32xf32> to vector<1x32xf32>
    %cst_83 = arith.constant dense<0.000000e+00> : vector<16xf32>
    %182 = vector.multi_reduction <add>, %177, %cst_83 [1] : vector<16x32xf32> to vector<16xf32>
    %183 = vector.shape_cast %182 : vector<16xf32> to vector<16x1xf32>
    %cst_84 = arith.constant 3.200000e+01 : f32
    %184 = vector.broadcast %cst_84 : f32 to vector<16x1xf32>
    %185 = arith.divf %183, %184 : vector<16x1xf32>
    %186 = vector.broadcast %185 : vector<16x1xf32> to vector<16x32xf32>
    %187 = arith.subf %177, %186 : vector<16x32xf32>
    %188 = arith.mulf %187, %187 : vector<16x32xf32>
    %cst_85 = arith.constant dense<0.000000e+00> : vector<16xf32>
    %189 = vector.multi_reduction <add>, %188, %cst_85 [1] : vector<16x32xf32> to vector<16xf32>
    %190 = vector.shape_cast %189 : vector<16xf32> to vector<16x1xf32>
    %cst_86 = arith.constant 3.200000e+01 : f32
    %191 = vector.broadcast %cst_86 : f32 to vector<16x1xf32>
    %192 = arith.divf %190, %191 : vector<16x1xf32>
    %cst_87 = arith.constant 9.99999996E-13 : f32
    %193 = vector.broadcast %cst_87 : f32 to vector<16x1xf32>
    %194 = arith.addf %192, %193 : vector<16x1xf32>
    %195 = math.rsqrt %194 : vector<16x1xf32>
    %196 = vector.broadcast %195 : vector<16x1xf32> to vector<16x32xf32>
    %197 = arith.mulf %187, %196 : vector<16x32xf32>
    %198 = vector.broadcast %179 : vector<1x32xf32> to vector<16x32xf32>
    %199 = arith.mulf %197, %198 : vector<16x32xf32>
    %200 = vector.broadcast %181 : vector<1x32xf32> to vector<16x32xf32>
    %201 = arith.addf %199, %200 : vector<16x32xf32>
    %c0_88 = arith.constant 0 : index
    %c0_89 = arith.constant 0 : index
    %202 = vector.load %arg22[%c0_88, %c0_89] : memref<16x32xf32, #tpu.memory_space<vmem>>, vector<16x32xf32>
    tpu.vector_store %arg22[%c0_88, %c0_89], %201 {strides = array<i32>} : memref<16x32xf32, #tpu.memory_space<vmem>>, vector<16x32xf32>,
    %c1_i32 = arith.constant 1 : i32
    %203 = arith.cmpi eq, %arg0, %c1_i32 : i32
    %204 = arith.extui %203 : i1 to i32
    %c0_i32_90 = arith.constant 0 : i32
    %205 = arith.cmpi ne, %204, %c0_i32_90 : i32
    scf.if %205 {
      %c0_91 = arith.constant 0 : index
      %c0_92 = arith.constant 0 : index
      %206 = vector.load %arg17[%c0_91, %c0_92] : memref<32x32xf32, #tpu.memory_space<vmem>>, vector<32x32xf32>
      %cst_93 = arith.constant dense<0.000000e+00> : vector<16x32xf32>
      %207 = tpu.matmul %201, %206, %cst_93 {dimension_numbers = #tpu.dot_dimension_numbers<[1], [0], [0], [1], [0, 0, 1, 1], [], []>} : vector<16x32xf32>, vector<32x32xf32>, vector<16x32xf32> -> vector<16x32xf32>
      %c0_94 = arith.constant 0 : index
      %c0_95 = arith.constant 0 : index
      %208 = vector.load %arg18[%c0_94, %c0_95] : memref<1x32xf32, #tpu.memory_space<vmem>>, vector<1x32xf32>
      %209 = vector.broadcast %208 : vector<1x32xf32> to vector<16x32xf32>
      %210 = arith.addf %207, %209 : vector<16x32xf32>
      %211 = math.tanh %210 : vector<16x32xf32>
      %c0_96 = arith.constant 0 : index
      %c0_97 = arith.constant 0 : index
      %212 = vector.load %arg19[%c0_96, %c0_97] : memref<32x1xf32, #tpu.memory_space<vmem>>, vector<32x1xf32>
      %cst_98 = arith.constant dense<0.000000e+00> : vector<16x1xf32>
      %213 = tpu.matmul %211, %212, %cst_98 {dimension_numbers = #tpu.dot_dimension_numbers<[1], [0], [0], [1], [0, 0, 1, 1], [], []>} : vector<16x32xf32>, vector<32x1xf32>, vector<16x1xf32> -> vector<16x1xf32>
      %c0_99 = arith.constant 0 : index
      %c0_100 = arith.constant 0 : index
      %214 = vector.load %arg20[%c0_99, %c0_100] : memref<1x1xf32, #tpu.memory_space<vmem>>, vector<1x1xf32>
      %215 = vector.broadcast %214 : vector<1x1xf32> to vector<16x1xf32>
      %216 = arith.addf %213, %215 : vector<16x1xf32>
      %c0_101 = arith.constant 0 : index
      %c0_102 = arith.constant 0 : index
      %217 = vector.load %arg21[%c0_101, %c0_102] : memref<16x1xf32, #tpu.memory_space<vmem>>, vector<16x1xf32>
      tpu.vector_store %arg21[%c0_101, %c0_102], %216 {strides = array<i32>} : memref<16x1xf32, #tpu.memory_space<vmem>>, vector<16x1xf32>,
    } else {
    }
    return
  }
  func.func @transform_0(%arg0: i32) -> (i32, i32) {
    %c0_i32 = arith.constant 0 : i32
    %c0_i32_0 = arith.constant 0 : i32
    %c0_i32_1 = arith.constant 0 : i32
    return %c0_i32, %c0_i32_0 : i32, i32
  }
  func.func @transform_1(%arg0: i32) -> (i32, i32) {
    %c0_i32 = arith.constant 0 : i32
    %c0_i32_0 = arith.constant 0 : i32
    %c0_i32_1 = arith.constant 0 : i32
    return %c0_i32, %c0_i32_0 : i32, i32
  }
  func.func @transform_2(%arg0: i32) -> (i32, i32) {
    %c0_i32 = arith.constant 0 : i32
    %c0_i32_0 = arith.constant 0 : i32
    %c0_i32_1 = arith.constant 0 : i32
    return %c0_i32, %c0_i32_0 : i32, i32
  }
  func.func @transform_3(%arg0: i32) -> (i32, i32, i32) {
    %c0_i32 = arith.constant 0 : i32
    %c0_i32_0 = arith.constant 0 : i32
    %c0_i32_1 = arith.constant 0 : i32
    %c0_i32_2 = arith.constant 0 : i32
    return %c0_i32, %c0_i32_0, %c0_i32_1 : i32, i32, i32
  }
  func.func @transform_4(%arg0: i32) -> (i32, i32, i32) {
    %c0_i32 = arith.constant 0 : i32
    %c0_i32_0 = arith.constant 0 : i32
    %c0_i32_1 = arith.constant 0 : i32
    return %arg0, %c0_i32, %c0_i32_0 : i32, i32, i32
  }
  func.func @transform_5(%arg0: i32) -> (i32, i32, i32) {
    %c0_i32 = arith.constant 0 : i32
    %c0_i32_0 = arith.constant 0 : i32
    %c0_i32_1 = arith.constant 0 : i32
    return %arg0, %c0_i32, %c0_i32_0 : i32, i32, i32
  }
  func.func @transform_6(%arg0: i32) -> (i32, i32, i32) {
    %c0_i32 = arith.constant 0 : i32
    %c0_i32_0 = arith.constant 0 : i32
    %c0_i32_1 = arith.constant 0 : i32
    return %arg0, %c0_i32, %c0_i32_0 : i32, i32, i32
  }
  func.func @transform_7(%arg0: i32) -> (i32, i32, i32) {
    %c0_i32 = arith.constant 0 : i32
    %c0_i32_0 = arith.constant 0 : i32
    %c0_i32_1 = arith.constant 0 : i32
    return %arg0, %c0_i32, %c0_i32_0 : i32, i32, i32
  }
  func.func @transform_8(%arg0: i32) -> (i32, i32, i32) {
    %c0_i32 = arith.constant 0 : i32
    %c0_i32_0 = arith.constant 0 : i32
    %c0_i32_1 = arith.constant 0 : i32
    return %arg0, %c0_i32, %c0_i32_0 : i32, i32, i32
  }
  func.func @transform_9(%arg0: i32) -> (i32, i32, i32) {
    %c0_i32 = arith.constant 0 : i32
    %c0_i32_0 = arith.constant 0 : i32
    %c0_i32_1 = arith.constant 0 : i32
    return %arg0, %c0_i32, %c0_i32_0 : i32, i32, i32
  }
  func.func @transform_10(%arg0: i32) -> (i32, i32, i32) {
    %c0_i32 = arith.constant 0 : i32
    %c0_i32_0 = arith.constant 0 : i32
    %c0_i32_1 = arith.constant 0 : i32
    return %arg0, %c0_i32, %c0_i32_0 : i32, i32, i32
  }
  func.func @transform_11(%arg0: i32) -> (i32, i32, i32) {
    %c0_i32 = arith.constant 0 : i32
    %c0_i32_0 = arith.constant 0 : i32
    %c0_i32_1 = arith.constant 0 : i32
    return %arg0, %c0_i32, %c0_i32_0 : i32, i32, i32
  }
  func.func @transform_12(%arg0: i32) -> (i32, i32, i32) {
    %c0_i32 = arith.constant 0 : i32
    %c0_i32_0 = arith.constant 0 : i32
    %c0_i32_1 = arith.constant 0 : i32
    return %arg0, %c0_i32, %c0_i32_0 : i32, i32, i32
  }
  func.func @transform_13(%arg0: i32) -> (i32, i32, i32) {
    %c0_i32 = arith.constant 0 : i32
    %c0_i32_0 = arith.constant 0 : i32
    %c0_i32_1 = arith.constant 0 : i32
    return %arg0, %c0_i32, %c0_i32_0 : i32, i32, i32
  }
  func.func @transform_14(%arg0: i32) -> (i32, i32, i32) {
    %c0_i32 = arith.constant 0 : i32
    %c0_i32_0 = arith.constant 0 : i32
    %c0_i32_1 = arith.constant 0 : i32
    return %arg0, %c0_i32, %c0_i32_0 : i32, i32, i32
  }
  func.func @transform_15(%arg0: i32) -> (i32, i32, i32) {
    %c0_i32 = arith.constant 0 : i32
    %c0_i32_0 = arith.constant 0 : i32
    %c0_i32_1 = arith.constant 0 : i32
    return %arg0, %c0_i32, %c0_i32_0 : i32, i32, i32
  }
  func.func @transform_16(%arg0: i32) -> (i32, i32) {
    %c0_i32 = arith.constant 0 : i32
    %c0_i32_0 = arith.constant 0 : i32
    %c0_i32_1 = arith.constant 0 : i32
    return %c0_i32, %c0_i32_0 : i32, i32
  }
  func.func @transform_17(%arg0: i32) -> (i32, i32) {
    %c0_i32 = arith.constant 0 : i32
    %c0_i32_0 = arith.constant 0 : i32
    %c0_i32_1 = arith.constant 0 : i32
    return %c0_i32, %c0_i32_0 : i32, i32
  }
  func.func @transform_18(%arg0: i32) -> (i32, i32) {
    %c0_i32 = arith.constant 0 : i32
    %c0_i32_0 = arith.constant 0 : i32
    %c0_i32_1 = arith.constant 0 : i32
    return %c0_i32, %c0_i32_0 : i32, i32
  }
  func.func @transform_19(%arg0: i32) -> (i32, i32) {
    %c0_i32 = arith.constant 0 : i32
    %c0_i32_0 = arith.constant 0 : i32
    %c0_i32_1 = arith.constant 0 : i32
    return %c0_i32, %c0_i32_0 : i32, i32
  }
  func.func @transform_20(%arg0: i32) -> (i32, i32) {
    %c0_i32 = arith.constant 0 : i32
    %c0_i32_0 = arith.constant 0 : i32
    %c0_i32_1 = arith.constant 0 : i32
    return %c0_i32, %c0_i32_0 : i32, i32
  }
}

</mosaic_0001>

<llo_original>
// kernel: bert_similarity_forward.1
$region0: #{bert_similarity_forward.1}
  #allocation0 [shape = 'u32[]', space=smem, size = 0x4, offset = 0x4, fixed_abs, tag = 'smem constant byte address 0x4 - core index']
  #allocation1 [shape = 'u32[144,128]{1,0:T(1,128)}', space=vmem, size = 0x12000, scoped, tag = 'internal scratch']
  #allocation2 [shape = 'f32[16,32]{1,0:T(8,128)}', space=vmem, size = 0x2000, scoped, tag = 'scratch operand']
  #allocation3 [shape = 'f32[1,1]{1,0:T(1,128)S(1)}', space=vmem, size = 0x200, scoped, tag = 'scoped memory for bert_similarity_forward.1']
  %s0 = inlined_call_operand.vmem [shape: f32[16,32], index: 0, kind: input, shape index: {}]
  %s1 = inlined_call_operand.vmem [shape: f32[1,32], index: 1, kind: input, shape index: {}]
  %s2 = inlined_call_operand.vmem [shape: f32[1,32], index: 2, kind: input, shape index: {}]
  %s3 = inlined_call_operand.vmem [shape: f32[2,1,8], index: 3, kind: input, shape index: {}]
  %s4 = inlined_call_operand.vmem [shape: f32[2,32,96], index: 4, kind: input, shape index: {}]
  %s5 = inlined_call_operand.vmem [shape: f32[2,1,96], index: 5, kind: input, shape index: {}]
  %s6 = inlined_call_operand.vmem [shape: f32[2,32,32], index: 6, kind: input, shape index: {}]
  %s7 = inlined_call_operand.vmem [shape: f32[2,1,32], index: 7, kind: input, shape index: {}]
  %s8 = inlined_call_operand.vmem [shape: f32[2,1,32], index: 8, kind: input, shape index: {}]
  %s9 = inlined_call_operand.vmem [shape: f32[2,1,32], index: 9, kind: input, shape index: {}]
  %s10 = inlined_call_operand.vmem [shape: f32[2,32,64], index: 10, kind: input, shape index: {}]
  %s11 = inlined_call_operand.vmem [shape: f32[2,1,64], index: 11, kind: input, shape index: {}]
  %s12 = inlined_call_operand.vmem [shape: f32[2,64,32], index: 12, kind: input, shape index: {}]
  %s13 = inlined_call_operand.vmem [shape: f32[2,1,32], index: 13, kind: input, shape index: {}]
  %s14 = inlined_call_operand.vmem [shape: f32[2,1,32], index: 14, kind: input, shape index: {}]
  %s15 = inlined_call_operand.vmem [shape: f32[2,1,32], index: 15, kind: input, shape index: {}]
  %s16 = inlined_call_operand.vmem [shape: f32[32,32], index: 16, kind: input, shape index: {}]
  %s17 = inlined_call_operand.vmem [shape: f32[1,32], index: 17, kind: input, shape index: {}]
  %s18 = inlined_call_operand.vmem [shape: f32[32,1], index: 18, kind: input, shape index: {}]
  %s19 = inlined_call_operand.<no memory space> [shape: f32[1,1], index: 19, kind: input, shape index: {}]
  %s20 = inlined_call_operand.vmem [shape: f32[16,1], index: 20, kind: output, shape index: {}]
  %s21 = sld [smem:[#allocation0]]
  $region121: #{bert_similarity_forward.1} parent=0
    _
  %s23 = ssub.s32 1, %s21
  %s24 = scalar_select 0, %s23, %s21
  %v25 = vstv %s19
  %26 = vst [vmem:[#allocation3] sm:$0x1] %v25
  loop: start=0, step=1, limit=4
  $region2: #{bert_similarity_forward.1} parent=0 // loop_pre_header
    _
  $region3: #{bert_similarity_forward.1} parent=0 // loop_header
    %s28 = sphi 0, %s32
    %p29 = scmp.ge.s32.totalorder %s28, 4
    %s36 = sphi 0, %s36
    %s38 = sphi 0, %s36
    %s39 = sphi 0, %s38
    %s53 = sphi 0, %s39
    %s57 = sphi 0, %s57
    %s59 = sphi 0, %s57
    %s60 = sphi 0, %s59
    %s74 = sphi 0, %s60
    %s78 = sphi 0, %s78
    %s80 = sphi 0, %s78
    %s81 = sphi 0, %s80
    %s95 = sphi 0, %s81
    %s99 = sphi 0, %s99
    %s101 = sphi 0, %s99
    %s102 = sphi 0, %s101
    %s116 = sphi 0, %s102
    %s122 = sphi 0, %s124
    %s125 = sphi 0, %s122
    %s126 = sphi 0, %s125
    %s142 = sphi 0, %s126
    %s148 = sphi 0, %s150
    %s151 = sphi 0, %s148
    %s152 = sphi 0, %s151
    %s168 = sphi 0, %s152
    %s174 = sphi 0, %s176
    %s177 = sphi 0, %s174
    %s178 = sphi 0, %s177
    %s194 = sphi 0, %s178
    %s200 = sphi 0, %s202
    %s203 = sphi 0, %s200
    %s204 = sphi 0, %s203
    %s220 = sphi 0, %s204
    %s226 = sphi 0, %s228
    %s229 = sphi 0, %s226
    %s230 = sphi 0, %s229
    %s246 = sphi 0, %s230
    %s252 = sphi 0, %s254
    %s255 = sphi 0, %s252
    %s256 = sphi 0, %s255
    %s272 = sphi 0, %s256
    %s278 = sphi 0, %s280
    %s281 = sphi 0, %s278
    %s282 = sphi 0, %s281
    %s298 = sphi 0, %s282
    %s304 = sphi 0, %s306
    %s307 = sphi 0, %s304
    %s308 = sphi 0, %s307
    %s324 = sphi 0, %s308
    %s330 = sphi 0, %s332
    %s333 = sphi 0, %s330
    %s334 = sphi 0, %s333
    %s350 = sphi 0, %s334
    %s356 = sphi 0, %s358
    %s359 = sphi 0, %s356
    %s360 = sphi 0, %s359
    %s376 = sphi 0, %s360
    %s382 = sphi 0, %s384
    %s385 = sphi 0, %s382
    %s386 = sphi 0, %s385
    %s402 = sphi 0, %s386
    %s408 = sphi 0, %s410
    %s411 = sphi 0, %s408
    %s412 = sphi 0, %s411
    %s428 = sphi 0, %s412
    %s432 = sphi 0, %s432
    %s434 = sphi 0, %s432
    %s435 = sphi 0, %s434
    %s449 = sphi 0, %s435
    %s453 = sphi 0, %s453
    %s455 = sphi 0, %s453
    %s456 = sphi 0, %s455
    %s470 = sphi 0, %s456
    %s474 = sphi 0, %s474
    %s476 = sphi 0, %s474
    %s477 = sphi 0, %s476
    %s491 = sphi 0, %s477
    %s495 = sphi 0, %s495
    %s497 = sphi 0, %s495
    %s498 = sphi 0, %s497
    %s512 = sphi 0, %s498
    %s516 = sphi 0, %s516
    %s518 = sphi 0, %s516
    %s519 = sphi 0, %s518
    %s533 = sphi 0, %s519
  $region4: #{bert_similarity_forward.1} parent=0 // loop_header_branch
    %31 = sbr.rel (%p29) target = $region8
  $region5: #{bert_similarity_forward.1} parent=0 // loop_body
    %s33 = ssub.s32 %s28, 1
    %s34 = ssub.s32 %s28, 2
    %s35 = sadd.s32 %s28, 1
    %s37 = sadd.s32 %s36, 1
    %p40 = scmp.eq.s32.totalorder %s28, 1
    %p41 = scmp.ne.s32.totalorder %s36, %s38
    %p42 = scmp.eq.s32.totalorder %s28, 0
    %p43 = por %p41, %p42
    %p44 = scmp.ne.s32.totalorder %s36, %s38
    %p45 = scmp.eq.s32.totalorder %s33, 1
    %p46 = por %p44, %p45
    %p47 = scmp.ne.s32.totalorder %s38, %s39
    %p48 = scmp.eq.s32.totalorder %s33, 0
    %p49 = por %p47, %p48
    %p50 = scmp.ne.s32.totalorder %s38, %s39
    %p51 = scmp.eq.s32.totalorder %s34, 1
    %p52 = por %p50, %p51
    %p54 = scmp.ne.s32.totalorder %s39, %s53
    %p55 = scmp.eq.s32.totalorder %s34, 0
    %p56 = por %p54, %p55
    %s58 = sadd.s32 %s57, 1
    %p61 = scmp.eq.s32.totalorder %s28, 1
    %p62 = scmp.ne.s32.totalorder %s57, %s59
    %p63 = scmp.eq.s32.totalorder %s28, 0
    %p64 = por %p62, %p63
    %p65 = scmp.ne.s32.totalorder %s57, %s59
    %p66 = scmp.eq.s32.totalorder %s33, 1
    %p67 = por %p65, %p66
    %p68 = scmp.ne.s32.totalorder %s59, %s60
    %p69 = scmp.eq.s32.totalorder %s33, 0
    %p70 = por %p68, %p69
    %p71 = scmp.ne.s32.totalorder %s59, %s60
    %p72 = scmp.eq.s32.totalorder %s34, 1
    %p73 = por %p71, %p72
    %p75 = scmp.ne.s32.totalorder %s60, %s74
    %p76 = scmp.eq.s32.totalorder %s34, 0
    %p77 = por %p75, %p76
    %s79 = sadd.s32 %s78, 1
    %p82 = scmp.eq.s32.totalorder %s28, 1
    %p83 = scmp.ne.s32.totalorder %s78, %s80
    %p84 = scmp.eq.s32.totalorder %s28, 0
    %p85 = por %p83, %p84
    %p86 = scmp.ne.s32.totalorder %s78, %s80
    %p87 = scmp.eq.s32.totalorder %s33, 1
    %p88 = por %p86, %p87
    %p89 = scmp.ne.s32.totalorder %s80, %s81
    %p90 = scmp.eq.s32.totalorder %s33, 0
    %p91 = por %p89, %p90
    %p92 = scmp.ne.s32.totalorder %s80, %s81
    %p93 = scmp.eq.s32.totalorder %s34, 1
    %p94 = por %p92, %p93
    %p96 = scmp.ne.s32.totalorder %s81, %s95
    %p97 = scmp.eq.s32.totalorder %s34, 0
    %p98 = por %p96, %p97
    %s100 = sadd.s32 %s99, 1
    %p103 = scmp.eq.s32.totalorder %s28, 1
    %p104 = scmp.ne.s32.totalorder %s99, %s101
    %p105 = scmp.eq.s32.totalorder %s28, 0
    %p106 = por %p104, %p105
    %p107 = scmp.ne.s32.totalorder %s99, %s101
    %p108 = scmp.eq.s32.totalorder %s33, 1
    %p109 = por %p107, %p108
    %p110 = scmp.ne.s32.totalorder %s101, %s102
    %p111 = scmp.eq.s32.totalorder %s33, 0
    %p112 = por %p110, %p111
    %p113 = scmp.ne.s32.totalorder %s101, %s102
    %p114 = scmp.eq.s32.totalorder %s34, 1
    %p115 = por %p113, %p114
    %p117 = scmp.ne.s32.totalorder %s102, %s116
    %p118 = scmp.eq.s32.totalorder %s34, 0
    %p119 = por %p117, %p118
    %s120 = ssub.s32 %s28, %s35
    %p121 = scmp.eq.s32.totalorder %s120, 0
    %s123 = sadd.s32 %s122, 1
    %s124 = scalar_select %p121, %s122, %s123
    %p127 = pneg %p121
    %p128 = scmp.eq.s32.totalorder %s28, 1
    %p129 = por %p127, %p128
    %p130 = scmp.ne.s32.totalorder %s122, %s125
    %p131 = scmp.eq.s32.totalorder %s28, 0
    %p132 = por %p130, %p131
    %p133 = scmp.ne.s32.totalorder %s122, %s125
    %p134 = scmp.eq.s32.totalorder %s33, 1
    %p135 = por %p133, %p134
    %p136 = scmp.ne.s32.totalorder %s125, %s126
    %p137 = scmp.eq.s32.totalorder %s33, 0
    %p138 = por %p136, %p137
    %p139 = scmp.ne.s32.totalorder %s125, %s126
    %p140 = scmp.eq.s32.totalorder %s34, 1
    %p141 = por %p139, %p140
    %p143 = scmp.ne.s32.totalorder %s126, %s142
    %p144 = scmp.eq.s32.totalorder %s34, 0
    %p145 = por %p143, %p144
    %s146 = ssub.s32 %s28, %s35
    %p147 = scmp.eq.s32.totalorder %s146, 0
    %s149 = sadd.s32 %s148, 1
    %s150 = scalar_select %p147, %s148, %s149
    %p153 = pneg %p147
    %p154 = scmp.eq.s32.totalorder %s28, 1
    %p155 = por %p153, %p154
    %p156 = scmp.ne.s32.totalorder %s148, %s151
    %p157 = scmp.eq.s32.totalorder %s28, 0
    %p158 = por %p156, %p157
    %p159 = scmp.ne.s32.totalorder %s148, %s151
    %p160 = scmp.eq.s32.totalorder %s33, 1
    %p161 = por %p159, %p160
    %p162 = scmp.ne.s32.totalorder %s151, %s152
    %p163 = scmp.eq.s32.totalorder %s33, 0
    %p164 = por %p162, %p163
    %p165 = scmp.ne.s32.totalorder %s151, %s152
    %p166 = scmp.eq.s32.totalorder %s34, 1
    %p167 = por %p165, %p166
    %p169 = scmp.ne.s32.totalorder %s152, %s168
    %p170 = scmp.eq.s32.totalorder %s34, 0
    %p171 = por %p169, %p170
    %s172 = ssub.s32 %s28, %s35
    %p173 = scmp.eq.s32.totalorder %s172, 0
    %s175 = sadd.s32 %s174, 1
    %s176 = scalar_select %p173, %s174, %s175
    %p179 = pneg %p173
    %p180 = scmp.eq.s32.totalorder %s28, 1
    %p181 = por %p179, %p180
    %p182 = scmp.ne.s32.totalorder %s174, %s177
    %p183 = scmp.eq.s32.totalorder %s28, 0
    %p184 = por %p182, %p183
    %p185 = scmp.ne.s32.totalorder %s174, %s177
    %p186 = scmp.eq.s32.totalorder %s33, 1
    %p187 = por %p185, %p186
    %p188 = scmp.ne.s32.totalorder %s177, %s178
    %p189 = scmp.eq.s32.totalorder %s33, 0
    %p190 = por %p188, %p189
    %p191 = scmp.ne.s32.totalorder %s177, %s178
    %p192 = scmp.eq.s32.totalorder %s34, 1
    %p193 = por %p191, %p192
    %p195 = scmp.ne.s32.totalorder %s178, %s194
    %p196 = scmp.eq.s32.totalorder %s34, 0
    %p197 = por %p195, %p196
    %s198 = ssub.s32 %s28, %s35
    %p199 = scmp.eq.s32.totalorder %s198, 0
    %s201 = sadd.s32 %s200, 1
    %s202 = scalar_select %p199, %s200, %s201
    %p205 = pneg %p199
    %p206 = scmp.eq.s32.totalorder %s28, 1
    %p207 = por %p205, %p206
    %p208 = scmp.ne.s32.totalorder %s200, %s203
    %p209 = scmp.eq.s32.totalorder %s28, 0
    %p210 = por %p208, %p209
    %p211 = scmp.ne.s32.totalorder %s200, %s203
    %p212 = scmp.eq.s32.totalorder %s33, 1
    %p213 = por %p211, %p212
    %p214 = scmp.ne.s32.totalorder %s203, %s204
    %p215 = scmp.eq.s32.totalorder %s33, 0
    %p216 = por %p214, %p215
    %p217 = scmp.ne.s32.totalorder %s203, %s204
    %p218 = scmp.eq.s32.totalorder %s34, 1
    %p219 = por %p217, %p218
    %p221 = scmp.ne.s32.totalorder %s204, %s220
    %p222 = scmp.eq.s32.totalorder %s34, 0
    %p223 = por %p221, %p222
    %s224 = ssub.s32 %s28, %s35
    %p225 = scmp.eq.s32.totalorder %s224, 0
    %s227 = sadd.s32 %s226, 1
    %s228 = scalar_select %p225, %s226, %s227
    %p231 = pneg %p225
    %p232 = scmp.eq.s32.totalorder %s28, 1
    %p233 = por %p231, %p232
    %p234 = scmp.ne.s32.totalorder %s226, %s229
    %p235 = scmp.eq.s32.totalorder %s28, 0
    %p236 = por %p234, %p235
    %p237 = scmp.ne.s32.totalorder %s226, %s229
    %p238 = scmp.eq.s32.totalorder %s33, 1
    %p239 = por %p237, %p238
    %p240 = scmp.ne.s32.totalorder %s229, %s230
    %p241 = scmp.eq.s32.totalorder %s33, 0
    %p242 = por %p240, %p241
    %p243 = scmp.ne.s32.totalorder %s229, %s230
    %p244 = scmp.eq.s32.totalorder %s34, 1
    %p245 = por %p243, %p244
    %p247 = scmp.ne.s32.totalorder %s230, %s246
    %p248 = scmp.eq.s32.totalorder %s34, 0
    %p249 = por %p247, %p248
    %s250 = ssub.s32 %s28, %s35
    %p251 = scmp.eq.s32.totalorder %s250, 0
    %s253 = sadd.s32 %s252, 1
    %s254 = scalar_select %p251, %s252, %s253
    %p257 = pneg %p251
    %p258 = scmp.eq.s32.totalorder %s28, 1
    %p259 = por %p257, %p258
    %p260 = scmp.ne.s32.totalorder %s252, %s255
    %p261 = scmp.eq.s32.totalorder %s28, 0
    %p262 = por %p260, %p261
    %p263 = scmp.ne.s32.totalorder %s252, %s255
    %p264 = scmp.eq.s32.totalorder %s33, 1
    %p265 = por %p263, %p264
    %p266 = scmp.ne.s32.totalorder %s255, %s256
    %p267 = scmp.eq.s32.totalorder %s33, 0
    %p268 = por %p266, %p267
    %p269 = scmp.ne.s32.totalorder %s255, %s256
    %p270 = scmp.eq.s32.totalorder %s34, 1
    %p271 = por %p269, %p270
    %p273 = scmp.ne.s32.totalorder %s256, %s272
    %p274 = scmp.eq.s32.totalorder %s34, 0
    %p275 = por %p273, %p274
    %s276 = ssub.s32 %s28, %s35
    %p277 = scmp.eq.s32.totalorder %s276, 0
    %s279 = sadd.s32 %s278, 1
    %s280 = scalar_select %p277, %s278, %s279
    %p283 = pneg %p277
    %p284 = scmp.eq.s32.totalorder %s28, 1
    %p285 = por %p283, %p284
    %p286 = scmp.ne.s32.totalorder %s278, %s281
    %p287 = scmp.eq.s32.totalorder %s28, 0
    %p288 = por %p286, %p287
    %p289 = scmp.ne.s32.totalorder %s278, %s281
    %p290 = scmp.eq.s32.totalorder %s33, 1
    %p291 = por %p289, %p290
    %p292 = scmp.ne.s32.totalorder %s281, %s282
    %p293 = scmp.eq.s32.totalorder %s33, 0
    %p294 = por %p292, %p293
    %p295 = scmp.ne.s32.totalorder %s281, %s282
    %p296 = scmp.eq.s32.totalorder %s34, 1
    %p297 = por %p295, %p296
    %p299 = scmp.ne.s32.totalorder %s282, %s298
    %p300 = scmp.eq.s32.totalorder %s34, 0
    %p301 = por %p299, %p300
    %s302 = ssub.s32 %s28, %s35
    %p303 = scmp.eq.s32.totalorder %s302, 0
    %s305 = sadd.s32 %s304, 1
    %s306 = scalar_select %p303, %s304, %s305
    %p309 = pneg %p303
    %p310 = scmp.eq.s32.totalorder %s28, 1
    %p311 = por %p309, %p310
    %p312 = scmp.ne.s32.totalorder %s304, %s307
    %p313 = scmp.eq.s32.totalorder %s28, 0
    %p314 = por %p312, %p313
    %p315 = scmp.ne.s32.totalorder %s304, %s307
    %p316 = scmp.eq.s32.totalorder %s33, 1
    %p317 = por %p315, %p316
    %p318 = scmp.ne.s32.totalorder %s307, %s308
    %p319 = scmp.eq.s32.totalorder %s33, 0
    %p320 = por %p318, %p319
    %p321 = scmp.ne.s32.totalorder %s307, %s308
    %p322 = scmp.eq.s32.totalorder %s34, 1
    %p323 = por %p321, %p322
    %p325 = scmp.ne.s32.totalorder %s308, %s324
    %p326 = scmp.eq.s32.totalorder %s34, 0
    %p327 = por %p325, %p326
    %s328 = ssub.s32 %s28, %s35
    %p329 = scmp.eq.s32.totalorder %s328, 0
    %s331 = sadd.s32 %s330, 1
    %s332 = scalar_select %p329, %s330, %s331
    %p335 = pneg %p329
    %p336 = scmp.eq.s32.totalorder %s28, 1
    %p337 = por %p335, %p336
    %p338 = scmp.ne.s32.totalorder %s330, %s333
    %p339 = scmp.eq.s32.totalorder %s28, 0
    %p340 = por %p338, %p339
    %p341 = scmp.ne.s32.totalorder %s330, %s333
    %p342 = scmp.eq.s32.totalorder %s33, 1
    %p343 = por %p341, %p342
    %p344 = scmp.ne.s32.totalorder %s333, %s334
    %p345 = scmp.eq.s32.totalorder %s33, 0
    %p346 = por %p344, %p345
    %p347 = scmp.ne.s32.totalorder %s333, %s334
    %p348 = scmp.eq.s32.totalorder %s34, 1
    %p349 = por %p347, %p348
    %p351 = scmp.ne.s32.totalorder %s334, %s350
    %p352 = scmp.eq.s32.totalorder %s34, 0
    %p353 = por %p351, %p352
    %s354 = ssub.s32 %s28, %s35
    %p355 = scmp.eq.s32.totalorder %s354, 0
    %s357 = sadd.s32 %s356, 1
    %s358 = scalar_select %p355, %s356, %s357
    %p361 = pneg %p355
    %p362 = scmp.eq.s32.totalorder %s28, 1
    %p363 = por %p361, %p362
    %p364 = scmp.ne.s32.totalorder %s356, %s359
    %p365 = scmp.eq.s32.totalorder %s28, 0
    %p366 = por %p364, %p365
    %p367 = scmp.ne.s32.totalorder %s356, %s359
    %p368 = scmp.eq.s32.totalorder %s33, 1
    %p369 = por %p367, %p368
    %p370 = scmp.ne.s32.totalorder %s359, %s360
    %p371 = scmp.eq.s32.totalorder %s33, 0
    %p372 = por %p370, %p371
    %p373 = scmp.ne.s32.totalorder %s359, %s360
    %p374 = scmp.eq.s32.totalorder %s34, 1
    %p375 = por %p373, %p374
    %p377 = scmp.ne.s32.totalorder %s360, %s376
    %p378 = scmp.eq.s32.totalorder %s34, 0
    %p379 = por %p377, %p378
    %s380 = ssub.s32 %s28, %s35
    %p381 = scmp.eq.s32.totalorder %s380, 0
    %s383 = sadd.s32 %s382, 1
    %s384 = scalar_select %p381, %s382, %s383
    %p387 = pneg %p381
    %p388 = scmp.eq.s32.totalorder %s28, 1
    %p389 = por %p387, %p388
    %p390 = scmp.ne.s32.totalorder %s382, %s385
    %p391 = scmp.eq.s32.totalorder %s28, 0
    %p392 = por %p390, %p391
    %p393 = scmp.ne.s32.totalorder %s382, %s385
    %p394 = scmp.eq.s32.totalorder %s33, 1
    %p395 = por %p393, %p394
    %p396 = scmp.ne.s32.totalorder %s385, %s386
    %p397 = scmp.eq.s32.totalorder %s33, 0
    %p398 = por %p396, %p397
    %p399 = scmp.ne.s32.totalorder %s385, %s386
    %p400 = scmp.eq.s32.totalorder %s34, 1
    %p401 = por %p399, %p400
    %p403 = scmp.ne.s32.totalorder %s386, %s402
    %p404 = scmp.eq.s32.totalorder %s34, 0
    %p405 = por %p403, %p404
    %s406 = ssub.s32 %s28, %s35
    %p407 = scmp.eq.s32.totalorder %s406, 0
    %s409 = sadd.s32 %s408, 1
    %s410 = scalar_select %p407, %s408, %s409
    %p413 = pneg %p407
    %p414 = scmp.eq.s32.totalorder %s28, 1
    %p415 = por %p413, %p414
    %p416 = scmp.ne.s32.totalorder %s408, %s411
    %p417 = scmp.eq.s32.totalorder %s28, 0
    %p418 = por %p416, %p417
    %p419 = scmp.ne.s32.totalorder %s408, %s411
    %p420 = scmp.eq.s32.totalorder %s33, 1
    %p421 = por %p419, %p420
    %p422 = scmp.ne.s32.totalorder %s411, %s412
    %p423 = scmp.eq.s32.totalorder %s33, 0
    %p424 = por %p422, %p423
    %p425 = scmp.ne.s32.totalorder %s411, %s412
    %p426 = scmp.eq.s32.totalorder %s34, 1
    %p427 = por %p425, %p426
    %p429 = scmp.ne.s32.totalorder %s412, %s428
    %p430 = scmp.eq.s32.totalorder %s34, 0
    %p431 = por %p429, %p430
    %s433 = sadd.s32 %s432, 1
    %p436 = scmp.eq.s32.totalorder %s28, 1
    %p437 = scmp.ne.s32.totalorder %s432, %s434
    %p438 = scmp.eq.s32.totalorder %s28, 0
    %p439 = por %p437, %p438
    %p440 = scmp.ne.s32.totalorder %s432, %s434
    %p441 = scmp.eq.s32.totalorder %s33, 1
    %p442 = por %p440, %p441
    %p443 = scmp.ne.s32.totalorder %s434, %s435
    %p444 = scmp.eq.s32.totalorder %s33, 0
    %p445 = por %p443, %p444
    %p446 = scmp.ne.s32.totalorder %s434, %s435
    %p447 = scmp.eq.s32.totalorder %s34, 1
    %p448 = por %p446, %p447
    %p450 = scmp.ne.s32.totalorder %s435, %s449
    %p451 = scmp.eq.s32.totalorder %s34, 0
    %p452 = por %p450, %p451
    %s454 = sadd.s32 %s453, 1
    %p457 = scmp.eq.s32.totalorder %s28, 1
    %p458 = scmp.ne.s32.totalorder %s453, %s455
    %p459 = scmp.eq.s32.totalorder %s28, 0
    %p460 = por %p458, %p459
    %p461 = scmp.ne.s32.totalorder %s453, %s455
    %p462 = scmp.eq.s32.totalorder %s33, 1
    %p463 = por %p461, %p462
    %p464 = scmp.ne.s32.totalorder %s455, %s456
    %p465 = scmp.eq.s32.totalorder %s33, 0
    %p466 = por %p464, %p465
    %p467 = scmp.ne.s32.totalorder %s455, %s456
    %p468 = scmp.eq.s32.totalorder %s34, 1
    %p469 = por %p467, %p468
    %p471 = scmp.ne.s32.totalorder %s456, %s470
    %p472 = scmp.eq.s32.totalorder %s34, 0
    %p473 = por %p471, %p472
    %s475 = sadd.s32 %s474, 1
    %p478 = scmp.eq.s32.totalorder %s28, 1
    %p479 = scmp.ne.s32.totalorder %s474, %s476
    %p480 = scmp.eq.s32.totalorder %s28, 0
    %p481 = por %p479, %p480
    %p482 = scmp.ne.s32.totalorder %s474, %s476
    %p483 = scmp.eq.s32.totalorder %s33, 1
    %p484 = por %p482, %p483
    %p485 = scmp.ne.s32.totalorder %s476, %s477
    %p486 = scmp.eq.s32.totalorder %s33, 0
    %p487 = por %p485, %p486
    %p488 = scmp.ne.s32.totalorder %s476, %s477
    %p489 = scmp.eq.s32.totalorder %s34, 1
    %p490 = por %p488, %p489
    %p492 = scmp.ne.s32.totalorder %s477, %s491
    %p493 = scmp.eq.s32.totalorder %s34, 0
    %p494 = por %p492, %p493
    %s496 = sadd.s32 %s495, 1
    %p499 = scmp.eq.s32.totalorder %s28, 1
    %p500 = scmp.ne.s32.totalorder %s495, %s497
    %p501 = scmp.eq.s32.totalorder %s28, 0
    %p502 = por %p500, %p501
    %p503 = scmp.ne.s32.totalorder %s495, %s497
    %p504 = scmp.eq.s32.totalorder %s33, 1
    %p505 = por %p503, %p504
    %p506 = scmp.ne.s32.totalorder %s497, %s498
    %p507 = scmp.eq.s32.totalorder %s33, 0
    %p508 = por %p506, %p507
    %p509 = scmp.ne.s32.totalorder %s497, %s498
    %p510 = scmp.eq.s32.totalorder %s34, 1
    %p511 = por %p509, %p510
    %p513 = scmp.ne.s32.totalorder %s498, %s512
    %p514 = scmp.eq.s32.totalorder %s34, 0
    %p515 = por %p513, %p514
    %s517 = sadd.s32 %s516, 1
    %p520 = scmp.eq.s32.totalorder %s28, 1
    %p521 = scmp.ne.s32.totalorder %s516, %s518
    %p522 = scmp.eq.s32.totalorder %s28, 0
    %p523 = por %p521, %p522
    %p524 = scmp.ne.s32.totalorder %s516, %s518
    %p525 = scmp.eq.s32.totalorder %s33, 1
    %p526 = por %p524, %p525
    %p527 = scmp.ne.s32.totalorder %s518, %s519
    %p528 = scmp.eq.s32.totalorder %s33, 0
    %p529 = por %p527, %p528
    %p530 = scmp.ne.s32.totalorder %s518, %s519
    %p531 = scmp.eq.s32.totalorder %s34, 1
    %p532 = por %p530, %p531
    %p534 = scmp.ne.s32.totalorder %s519, %s533
    %p535 = scmp.eq.s32.totalorder %s34, 0
    %p536 = por %p534, %p535
    %p537 = scmp.le.s32.totalorder 1, %s28
    %p538 = scmp.lt.s32.totalorder %s28, 3
    %p539 = pnand %p537, %p538
    %p540 = pneg %p539
    // Predicated region
    $region9: #{bert_similarity_forward.1} parent=5 // pred_check
      _
    $region10: #{bert_similarity_forward.1} parent=5 // pred_check_branch
      %542 = sbr.rel (%p539) target = $region12
    $region11: #{bert_similarity_forward.1} parent=5 // pred_region
      %s543 = ssub.s32 %s28, 1
      // Predicated region
      $region13: #{bert_similarity_forward.1} parent=11 // pred_check
        %p544 = pneg %p49
      $region14: #{bert_similarity_forward.1} parent=11 // pred_check_branch
        %546 = sbr.rel (%p544) target = $region16
      $region15: #{bert_similarity_forward.1} parent=11 // pred_region
        _
      $region16: #{bert_similarity_forward.1} parent=11 // pred_fallthru
        _
      // Predicated region
      $region17: #{bert_similarity_forward.1} parent=11 // pred_check
        %p547 = pneg %p70
      $region18: #{bert_similarity_forward.1} parent=11 // pred_check_branch
        %549 = sbr.rel (%p547) target = $region20
      $region19: #{bert_similarity_forward.1} parent=11 // pred_region
        _
      $region20: #{bert_similarity_forward.1} parent=11 // pred_fallthru
        _
      // Predicated region
      $region21: #{bert_similarity_forward.1} parent=11 // pred_check
        %p550 = pneg %p91
      $region22: #{bert_similarity_forward.1} parent=11 // pred_check_branch
        %552 = sbr.rel (%p550) target = $region24
      $region23: #{bert_similarity_forward.1} parent=11 // pred_region
        _
      $region24: #{bert_similarity_forward.1} parent=11 // pred_fallthru
        _
      // Predicated region
      $region25: #{bert_similarity_forward.1} parent=11 // pred_check
        %p553 = pneg %p112
      $region26: #{bert_similarity_forward.1} parent=11 // pred_check_branch
        %555 = sbr.rel (%p553) target = $region28
      $region27: #{bert_similarity_forward.1} parent=11 // pred_region
        _
      $region28: #{bert_similarity_forward.1} parent=11 // pred_fallthru
        _
      // Predicated region
      $region29: #{bert_similarity_forward.1} parent=11 // pred_check
        %p556 = pneg %p445
      $region30: #{bert_similarity_forward.1} parent=11 // pred_check_branch
        %558 = sbr.rel (%p556) target = $region32
      $region31: #{bert_similarity_forward.1} parent=11 // pred_region
        _
      $region32: #{bert_similarity_forward.1} parent=11 // pred_fallthru
        _
      // Predicated region
      $region33: #{bert_similarity_forward.1} parent=11 // pred_check
        %p559 = pneg %p466
      $region34: #{bert_similarity_forward.1} parent=11 // pred_check_branch
        %561 = sbr.rel (%p559) target = $region36
      $region35: #{bert_similarity_forward.1} parent=11 // pred_region
        _
      $region36: #{bert_similarity_forward.1} parent=11 // pred_fallthru
        _
      // Predicated region
      $region37: #{bert_similarity_forward.1} parent=11 // pred_check
        %p562 = pneg %p487
      $region38: #{bert_similarity_forward.1} parent=11 // pred_check_branch
        %564 = sbr.rel (%p562) target = $region40
      $region39: #{bert_similarity_forward.1} parent=11 // pred_region
        _
      $region40: #{bert_similarity_forward.1} parent=11 // pred_fallthru
        _
      // Predicated region
      $region41: #{bert_similarity_forward.1} parent=11 // pred_check
        %p565 = pneg %p508
      $region42: #{bert_similarity_forward.1} parent=11 // pred_check_branch
        %567 = sbr.rel (%p565) target = $region44
      $region43: #{bert_similarity_forward.1} parent=11 // pred_region
        _
      $region44: #{bert_similarity_forward.1} parent=11 // pred_fallthru
        _
    $region12: #{bert_similarity_forward.1} parent=5 // pred_fallthru
      _
    %p568 = scmp.lt.s32.totalorder %s28, 2
    // Predicated region
    $region45: #{bert_similarity_forward.1} parent=5 // pred_check
      %p569 = pneg %p568
    $region46: #{bert_similarity_forward.1} parent=5 // pred_check_branch
      %571 = sbr.rel (%p569) target = $region48
    $region47: #{bert_similarity_forward.1} parent=5 // pred_region
      // Predicated region
      $region49: #{bert_similarity_forward.1} parent=47 // pred_check
        %p572 = pneg %p132
      $region50: #{bert_similarity_forward.1} parent=47 // pred_check_branch
        %574 = sbr.rel (%p572) target = $region52
      $region51: #{bert_similarity_forward.1} parent=47 // pred_region
        %p575 = scmp.lt.s32.totalorder %s28, 1
        %s576 = scalar_select %p575, %s28, 1
        %s577 = smul.addr %s576, 4
        %s578 = smul.addr %s577, 8
        %s579 = scalar_lea.vmem %s4, %s578
      $region52: #{bert_similarity_forward.1} parent=47 // pred_fallthru
        _
      // Predicated region
      $region53: #{bert_similarity_forward.1} parent=47 // pred_check
        %p580 = pneg %p158
      $region54: #{bert_similarity_forward.1} parent=47 // pred_check_branch
        %582 = sbr.rel (%p580) target = $region56
      $region55: #{bert_similarity_forward.1} parent=47 // pred_region
        %p583 = scmp.lt.s32.totalorder %s28, 1
        %s584 = scalar_select %p583, %s28, 1
        %s585 = scalar_lea.vmem %s5, %s584
      $region56: #{bert_similarity_forward.1} parent=47 // pred_fallthru
        _
      // Predicated region
      $region57: #{bert_similarity_forward.1} parent=47 // pred_check
        %p586 = pneg %p184
      $region58: #{bert_similarity_forward.1} parent=47 // pred_check_branch
        %588 = sbr.rel (%p586) target = $region60
      $region59: #{bert_similarity_forward.1} parent=47 // pred_region
        %p589 = scmp.lt.s32.totalorder %s28, 1
        %s590 = scalar_select %p589, %s28, 1
        %s591 = smul.addr %s590, 4
        %s592 = smul.addr %s591, 8
        %s593 = scalar_lea.vmem %s6, %s592
      $region60: #{bert_similarity_forward.1} parent=47 // pred_fallthru
        _
      // Predicated region
      $region61: #{bert_similarity_forward.1} parent=47 // pred_check
        %p594 = pneg %p210
      $region62: #{bert_similarity_forward.1} parent=47 // pred_check_branch
        %596 = sbr.rel (%p594) target = $region64
      $region63: #{bert_similarity_forward.1} parent=47 // pred_region
        %p597 = scmp.lt.s32.totalorder %s28, 1
        %s598 = scalar_select %p597, %s28, 1
        %s599 = scalar_lea.vmem %s7, %s598
      $region64: #{bert_similarity_forward.1} parent=47 // pred_fallthru
        _
      // Predicated region
      $region65: #{bert_similarity_forward.1} parent=47 // pred_check
        %p600 = pneg %p236
      $region66: #{bert_similarity_forward.1} parent=47 // pred_check_branch
        %602 = sbr.rel (%p600) target = $region68
      $region67: #{bert_similarity_forward.1} parent=47 // pred_region
        %p603 = scmp.lt.s32.totalorder %s28, 1
        %s604 = scalar_select %p603, %s28, 1
        %s605 = scalar_lea.vmem %s8, %s604
      $region68: #{bert_similarity_forward.1} parent=47 // pred_fallthru
        _
      // Predicated region
      $region69: #{bert_similarity_forward.1} parent=47 // pred_check
        %p606 = pneg %p262
      $region70: #{bert_similarity_forward.1} parent=47 // pred_check_branch
        %608 = sbr.rel (%p606) target = $region72
      $region71: #{bert_similarity_forward.1} parent=47 // pred_region
        %p609 = scmp.lt.s32.totalorder %s28, 1
        %s610 = scalar_select %p609, %s28, 1
        %s611 = scalar_lea.vmem %s9, %s610
      $region72: #{bert_similarity_forward.1} parent=47 // pred_fallthru
        _
      // Predicated region
      $region73: #{bert_similarity_forward.1} parent=47 // pred_check
        %p612 = pneg %p288
      $region74: #{bert_similarity_forward.1} parent=47 // pred_check_branch
        %614 = sbr.rel (%p612) target = $region76
      $region75: #{bert_similarity_forward.1} parent=47 // pred_region
        %p615 = scmp.lt.s32.totalorder %s28, 1
        %s616 = scalar_select %p615, %s28, 1
        %s617 = smul.addr %s616, 4
        %s618 = smul.addr %s617, 8
        %s619 = scalar_lea.vmem %s10, %s618
      $region76: #{bert_similarity_forward.1} parent=47 // pred_fallthru
        _
      // Predicated region
      $region77: #{bert_similarity_forward.1} parent=47 // pred_check
        %p620 = pneg %p314
      $region78: #{bert_similarity_forward.1} parent=47 // pred_check_branch
        %622 = sbr.rel (%p620) target = $region80
      $region79: #{bert_similarity_forward.1} parent=47 // pred_region
        %p623 = scmp.lt.s32.totalorder %s28, 1
        %s624 = scalar_select %p623, %s28, 1
        %s625 = scalar_lea.vmem %s11, %s624
      $region80: #{bert_similarity_forward.1} parent=47 // pred_fallthru
        _
      // Predicated region
      $region81: #{bert_similarity_forward.1} parent=47 // pred_check
        %p626 = pneg %p340
      $region82: #{bert_similarity_forward.1} parent=47 // pred_check_branch
        %628 = sbr.rel (%p626) target = $region84
      $region83: #{bert_similarity_forward.1} parent=47 // pred_region
        %p629 = scmp.lt.s32.totalorder %s28, 1
        %s630 = scalar_select %p629, %s28, 1
        %s631 = smul.addr %s630, 8
        %s632 = smul.addr %s631, 8
        %s633 = scalar_lea.vmem %s12, %s632
      $region84: #{bert_similarity_forward.1} parent=47 // pred_fallthru
        _
      // Predicated region
      $region85: #{bert_similarity_forward.1} parent=47 // pred_check
        %p634 = pneg %p366
      $region86: #{bert_similarity_forward.1} parent=47 // pred_check_branch
        %636 = sbr.rel (%p634) target = $region88
      $region87: #{bert_similarity_forward.1} parent=47 // pred_region
        %p637 = scmp.lt.s32.totalorder %s28, 1
        %s638 = scalar_select %p637, %s28, 1
        %s639 = scalar_lea.vmem %s13, %s638
      $region88: #{bert_similarity_forward.1} parent=47 // pred_fallthru
        _
      // Predicated region
      $region89: #{bert_similarity_forward.1} parent=47 // pred_check
        %p640 = pneg %p392
      $region90: #{bert_similarity_forward.1} parent=47 // pred_check_branch
        %642 = sbr.rel (%p640) target = $region92
      $region91: #{bert_similarity_forward.1} parent=47 // pred_region
        %p643 = scmp.lt.s32.totalorder %s28, 1
        %s644 = scalar_select %p643, %s28, 1
        %s645 = scalar_lea.vmem %s14, %s644
      $region92: #{bert_similarity_forward.1} parent=47 // pred_fallthru
        _
      // Predicated region
      $region93: #{bert_similarity_forward.1} parent=47 // pred_check
        %p646 = pneg %p418
      $region94: #{bert_similarity_forward.1} parent=47 // pred_check_branch
        %648 = sbr.rel (%p646) target = $region96
      $region95: #{bert_similarity_forward.1} parent=47 // pred_region
        %p649 = scmp.lt.s32.totalorder %s28, 1
        %s650 = scalar_select %p649, %s28, 1
        %s651 = scalar_lea.vmem %s15, %s650
      $region96: #{bert_similarity_forward.1} parent=47 // pred_fallthru
        _
    $region48: #{bert_similarity_forward.1} parent=5 // pred_fallthru
      _
    %p652 = scmp.le.s32.totalorder 1, %s28
    %p653 = scmp.lt.s32.totalorder %s28, 3
    %p654 = pnand %p652, %p653
    %p655 = pneg %p654
    // Predicated region
    $region97: #{bert_similarity_forward.1} parent=5 // pred_check
      _
    $region98: #{bert_similarity_forward.1} parent=5 // pred_check_branch
      %657 = sbr.rel (%p654) target = $region100
    $region99: #{bert_similarity_forward.1} parent=5 // pred_region
      %s658 = ssub.s32 %s28, 1
      %p659 = pneg %p49
      %p660 = pneg %p46
      %p661 = pneg %p70
      %p662 = pneg %p67
      %p663 = pneg %p91
      %p664 = pneg %p88
      %p665 = pneg %p112
      %p666 = pneg %p109
      %p667 = scmp.lt.s32.totalorder %s33, 1
      %s668 = scalar_select %p667, %s33, 1
      %s669 = smul.addr %s668, 4
      %s670 = smul.addr %s669, 8
      %s671 = scalar_lea.vmem %s4, %s670
      %p672 = pneg %p138
      %p673 = pneg %p135
      %p674 = scmp.lt.s32.totalorder %s33, 1
      %s675 = scalar_select %p674, %s33, 1
      %s676 = scalar_lea.vmem %s5, %s675
      %p677 = pneg %p164
      %p678 = pneg %p161
      %p679 = scmp.lt.s32.totalorder %s33, 1
      %s680 = scalar_select %p679, %s33, 1
      %s681 = smul.addr %s680, 4
      %s682 = smul.addr %s681, 8
      %s683 = scalar_lea.vmem %s6, %s682
      %p684 = pneg %p190
      %p685 = pneg %p187
      %p686 = scmp.lt.s32.totalorder %s33, 1
      %s687 = scalar_select %p686, %s33, 1
      %s688 = scalar_lea.vmem %s7, %s687
      %p689 = pneg %p216
      %p690 = pneg %p213
      %p691 = scmp.lt.s32.totalorder %s33, 1
      %s692 = scalar_select %p691, %s33, 1
      %s693 = scalar_lea.vmem %s8, %s692
      %p694 = pneg %p242
      %p695 = pneg %p239
      %p696 = scmp.lt.s32.totalorder %s33, 1
      %s697 = scalar_select %p696, %s33, 1
      %s698 = scalar_lea.vmem %s9, %s697
      %p699 = pneg %p268
      %p700 = pneg %p265
      %p701 = scmp.lt.s32.totalorder %s33, 1
      %s702 = scalar_select %p701, %s33, 1
      %s703 = smul.addr %s702, 4
      %s704 = smul.addr %s703, 8
      %s705 = scalar_lea.vmem %s10, %s704
      %p706 = pneg %p294
      %p707 = pneg %p291
      %p708 = scmp.lt.s32.totalorder %s33, 1
      %s709 = scalar_select %p708, %s33, 1
      %s710 = scalar_lea.vmem %s11, %s709
      %p711 = pneg %p320
      %p712 = pneg %p317
      %p713 = scmp.lt.s32.totalorder %s33, 1
      %s714 = scalar_select %p713, %s33, 1
      %s715 = smul.addr %s714, 8
      %s716 = smul.addr %s715, 8
      %s717 = scalar_lea.vmem %s12, %s716
      %p718 = pneg %p346
      %p719 = pneg %p343
      %p720 = scmp.lt.s32.totalorder %s33, 1
      %s721 = scalar_select %p720, %s33, 1
      %s722 = scalar_lea.vmem %s13, %s721
      %p723 = pneg %p372
      %p724 = pneg %p369
      %p725 = scmp.lt.s32.totalorder %s33, 1
      %s726 = scalar_select %p725, %s33, 1
      %s727 = scalar_lea.vmem %s14, %s726
      %p728 = pneg %p398
      %p729 = pneg %p395
      %p730 = scmp.lt.s32.totalorder %s33, 1
      %s731 = scalar_select %p730, %s33, 1
      %s732 = scalar_lea.vmem %s15, %s731
      %p733 = pneg %p424
      %p734 = pneg %p421
      %p735 = pneg %p445
      %p736 = pneg %p442
      %p737 = pneg %p466
      %p738 = pneg %p463
      %p739 = pneg %p487
      %p740 = pneg %p484
      %p741 = pneg %p508
      %p742 = pneg %p505
      %p743 = pneg %p529
      %p744 = pneg %p526
      %p745 = scmp.lt.s32.totalorder %s33, 1
      %s746 = scalar_select %p745, %s33, 1
      %s747 = smul.addr %s746, 4
      %s748 = smul.addr %s747, 8
      %s749 = scalar_lea.vmem %s4, %s748
      %p750 = scmp.lt.s32.totalorder %s33, 1
      %s751 = scalar_select %p750, %s33, 1
      %s752 = scalar_lea.vmem %s5, %s751
      %p753 = scmp.lt.s32.totalorder %s33, 1
      %s754 = scalar_select %p753, %s33, 1
      %s755 = smul.addr %s754, 4
      %s756 = smul.addr %s755, 8
      %s757 = scalar_lea.vmem %s6, %s756
      %p758 = scmp.lt.s32.totalorder %s33, 1
      %s759 = scalar_select %p758, %s33, 1
      %s760 = scalar_lea.vmem %s7, %s759
      %p761 = scmp.lt.s32.totalorder %s33, 1
      %s762 = scalar_select %p761, %s33, 1
      %s763 = scalar_lea.vmem %s8, %s762
      %p764 = scmp.lt.s32.totalorder %s33, 1
      %s765 = scalar_select %p764, %s33, 1
      %s766 = scalar_lea.vmem %s9, %s765
      %p767 = scmp.lt.s32.totalorder %s33, 1
      %s768 = scalar_select %p767, %s33, 1
      %s769 = smul.addr %s768, 4
      %s770 = smul.addr %s769, 8
      %s771 = scalar_lea.vmem %s10, %s770
      %p772 = scmp.lt.s32.totalorder %s33, 1
      %s773 = scalar_select %p772, %s33, 1
      %s774 = scalar_lea.vmem %s11, %s773
      %p775 = scmp.lt.s32.totalorder %s33, 1
      %s776 = scalar_select %p775, %s33, 1
      %s777 = smul.addr %s776, 8
      %s778 = smul.addr %s777, 8
      %s779 = scalar_lea.vmem %s12, %s778
      %p780 = scmp.lt.s32.totalorder %s33, 1
      %s781 = scalar_select %p780, %s33, 1
      %s782 = scalar_lea.vmem %s13, %s781
      %p783 = scmp.lt.s32.totalorder %s33, 1
      %s784 = scalar_select %p783, %s33, 1
      %s785 = scalar_lea.vmem %s14, %s784
      %p786 = scmp.lt.s32.totalorder %s33, 1
      %s787 = scalar_select %p786, %s33, 1
      %s788 = scalar_lea.vmem %s15, %s787
      %p789 = scmp.eq.s32.totalorder %s33, 0
      // Predicated region
      $region101: #{bert_similarity_forward.1} parent=99 // pred_check
        %p790 = pneg %p789
      $region102: #{bert_similarity_forward.1} parent=99 // pred_check_branch
        %792 = sbr.rel (%p790) target = $region104
      $region103: #{bert_similarity_forward.1} parent=99 // pred_region
        %v793 = vld [vmem:[%s0] sm:$0xff]
        %v794 = vld [vmem:[%s0 + $0x8] sm:$0xff]
        %v795 = vld [vmem:[%s1] sm:$0x1]
        %v796 = vld [vmem:[%s2] sm:$0x1]
        %vm797 = vcmask 261120
        %v798 = vsel %vm797, %v793, 0.0
        %799 = vadd.xlane.f32.xlu0 %v798
        %v800 = vpop.xlane.xlu0 %799
        %v801 = vsel %vm797, %v794, 0.0
        %802 = vadd.xlane.f32.xlu0 %v801
        %v803 = vpop.xlane.xlu0 %802
        %v804 = vrcp.pop 32.0
        %v805 = vmul.f32 %v800, %v804
        %v806 = vmul.f32 %v803, %v804
        %v807 = vsub.f32 %v793, %v805
        %v808 = vsub.f32 %v794, %v806
        %v809 = vmul.f32 %v807, %v807
        %v810 = vmul.f32 %v808, %v808
        %v811 = vsel %vm797, %v809, 0.0
        %812 = vadd.xlane.f32.xlu0 %v811
        %v813 = vpop.xlane.xlu0 %812
        %v814 = vsel %vm797, %v810, 0.0
        %815 = vadd.xlane.f32.xlu0 %v814
        %v816 = vpop.xlane.xlu0 %815
        %v817 = vmul.f32 %v813, %v804
        %v818 = vmul.f32 %v816, %v804
        %v819 = vadd.f32 %v817, 1e-12
        %v820 = vadd.f32 %v818, 1e-12
        %v821 = vrsqrt.pop %v819
        %v822 = vrsqrt.pop %v820
        %v823 = vmul.f32 %v807, %v821
        %v824 = vmul.f32 %v808, %v822
        %v826 = vlaneseq
        %v827 = vshrl.u32 %v826, 7
        %v828 = vsub.s32 0, %v827
        %v829 = vrot.slane %v795, %v828
        %v831 = vmul.f32 %v823, %v829
        %v832 = vmul.f32 %v824, %v829
        %v834 = vlaneseq
        %v835 = vshrl.u32 %v834, 7
        %v836 = vsub.s32 0, %v835
        %v837 = vrot.slane %v796, %v836
        %v839 = vadd.f32 %v831, %v837
        %v840 = vadd.f32 %v832, %v837
        %841 = vst.msk [vmem:[#allocation2] sm:$0xff] %vm797, %v839
        %842 = vst.msk [vmem:[#allocation2 + $0x8] sm:$0xff] %vm797, %v840
      $region104: #{bert_similarity_forward.1} parent=99 // pred_fallthru
        _
      %v843 = vld [vmem:[#allocation2] sm:$0xff]
      %v844 = vld [vmem:[#allocation2 + $0x8] sm:$0xff]
      %v845 = vld [vmem:[%s749] sm:$0xff]
      %v846 = vld [vmem:[%s749 + $0x8] sm:$0xff]
      %v847 = vld [vmem:[%s749 + $0x10] sm:$0xff]
      %v848 = vld [vmem:[%s749 + $0x18] sm:$0xff]
      %v849 = vld [vmem:[%s752] sm:$0x1]
      %v851 = vlaneseq
      %v852 = vshrl.u32 %v851, 7
      %v853 = vsub.s32 0, %v852
      %v854 = vrot.slane %v849, %v853
      %vm856 = vcmask 261120
      %v858 = vsel %vm856, %v843, 0
      %v861 = vsel %vm856, %v844, 0
      %863 = vmatprep.subr.mxu0 0.0
      %864 = vmatpush1.msra.mxu0 %v845
      %865 = vmatprep.subr.mxu0 0.0
      %866 = vmatpush1.msra.mxu0 %v846
      %867 = vmatprep.subr.mxu0 0.0
      %868 = vmatpush1.msra.mxu0 %v847
      %869 = vmatprep.subr.mxu0 0.0
      %870 = vmatpush1.msra.mxu0 %v848
      %871 = vmatprep.subr.mxu0 0.0
      %872 = vmatpush1.msra.mxu0 0.0
      %873 = vmatprep.subr.mxu0 0.0
      %874 = vmatpush1.msra.mxu0 0.0
      %875 = vmatprep.subr.mxu0 0.0
      %876 = vmatpush1.msra.mxu0 0.0
      %877 = vmatprep.subr.mxu0 0.0
      %878 = vmatpush1.msra.mxu0 0.0
      %879 = vmatprep.subr.mxu0 0.0
      %880 = vmatpush1.msra.mxu0 0.0
      %881 = vmatprep.subr.mxu0 0.0
      %882 = vmatpush1.msra.mxu0 0.0
      %883 = vmatprep.subr.mxu0 0.0
      %884 = vmatpush1.msra.mxu0 0.0
      %885 = vmatprep.subr.mxu0 0.0
      %886 = vmatpush1.msra.mxu0 0.0
      %887 = vmatprep.subr.mxu0 0.0
      %888 = vmatpush1.msra.mxu0 0.0
      %889 = vmatprep.subr.mxu0 0.0
      %890 = vmatpush1.msra.mxu0 0.0
      %891 = vmatprep.subr.mxu0 0.0
      %892 = vmatpush1.msra.mxu0 0.0
      %893 = vmatprep.subr.mxu0 0.0
      %894 = vmatpush1.msra.mxu0 0.0
      %895 = vmatprep.subr.mxu0 0.0
      %896 = vmatpush1.msra.mxu0 0.0
      %897 = vmatprep.subr.mxu0 0.0
      %898 = vmatpush1.msra.mxu0 0.0
      %899 = vmatprep.subr.mxu0 0.0
      %900 = vmatpush1.msra.mxu0 0.0
      %901 = vmatprep.subr.mxu0 0.0
      %902 = vmatpush1.msra.mxu0 0.0
      %903 = vmatprep.subr.mxu0 0.0
      %904 = vmatpush1.msra.mxu0 0.0
      %905 = vmatprep.subr.mxu0 0.0
      %906 = vmatpush1.msra.mxu0 0.0
      %907 = vmatprep.subr.mxu0 0.0
      %908 = vmatpush1.msra.mxu0 0.0
      %909 = vmatprep.subr.mxu0 0.0
      %910 = vmatpush1.msra.mxu0 0.0
      %911 = vmatprep.subr.mxu0 0.0
      %912 = vmatpush1.msra.mxu0 0.0
      %913 = vmatprep.subr.mxu0 0.0
      %914 = vmatpush1.msra.mxu0 0.0
      %915 = vmatprep.subr.mxu0 0.0
      %916 = vmatpush1.msra.mxu0 0.0
      %917 = vmatprep.subr.mxu0 0.0
      %918 = vmatpush1.msra.mxu0 0.0
      %919 = vmatprep.subr.mxu0 0.0
      %920 = vmatpush1.msra.mxu0 0.0
      %921 = vmatprep.subr.mxu0 0.0
      %922 = vmatpush1.msra.mxu0 0.0
      %923 = vmatprep.subr.mxu0 0.0
      %924 = vmatpush1.msra.mxu0 0.0
      %925 = vmatprep.subr.mxu0 0.0
      %926 = vmatpush1.msra.mxu0 0.0
      %927 = vmatprep.mubr.f32.mxu0 0.0
      %928 = vmatmul.mubr.f32.gmra.mrb[0].mxu0 %v858
      %v929 = vpop.f32.mrb[0].mxu0
      %v930 = vadd.f32 %v854, %v929
      %v931 = vpop.f32.mrb[0].mxu0
      %932 = vmatprep.mubr.f32.mxu0 0.0
      %933 = vmatmul.mubr.f32.gmra.mrb[0].mxu0 %v861
      %v934 = vpop.f32.mrb[0].mxu0
      %v935 = vadd.f32 %v854, %v934
      %v936 = vpop.f32.mrb[0].mxu0
      %937 = vdwg.mxu0
      %v938 = vld [vmem:[%s3] sm:$0x1]
      %v939 = vld [vmem:[%s3 + $0x1] sm:$0x1]
      %941 = vrot.lane.b32.xlu0 %v930, 96
      %v942 = vpop.permute.xlu0 %941
      %vm943 = vcmask 64512
      %v944 = vsel %vm943, %v930, 0
      %v946 = vsel %vm943, %v942, 0
      %948 = vmatprep.subr.mxu0 0.0
      %949 = vmatpush1.xpose.msra.mxu0 %v946
      %950 = vmatprep.subr.mxu0 0.0
      %951 = vmatpush1.xpose.msra.mxu0 0.0
      %952 = vmatprep.subr.mxu0 0.0
      %953 = vmatpush1.xpose.msra.mxu0 0.0
      %954 = vmatprep.subr.mxu0 0.0
      %955 = vmatpush1.xpose.msra.mxu0 0.0
      %956 = vmatprep.subr.mxu0 0.0
      %957 = vmatpush1.xpose.msra.mxu0 0.0
      %958 = vmatprep.subr.mxu0 0.0
      %959 = vmatpush1.xpose.msra.mxu0 0.0
      %960 = vmatprep.subr.mxu0 0.0
      %961 = vmatpush1.xpose.msra.mxu0 0.0
      %962 = vmatprep.subr.mxu0 0.0
      %963 = vmatpush1.xpose.msra.mxu0 0.0
      %964 = vmatprep.subr.mxu0 0.0
      %965 = vmatpush1.xpose.msra.mxu0 0.0
      %966 = vmatprep.subr.mxu0 0.0
      %967 = vmatpush1.xpose.msra.mxu0 0.0
      %968 = vmatprep.subr.mxu0 0.0
      %969 = vmatpush1.xpose.msra.mxu0 0.0
      %970 = vmatprep.subr.mxu0 0.0
      %971 = vmatpush1.xpose.msra.mxu0 0.0
      %972 = vmatprep.subr.mxu0 0.0
      %973 = vmatpush1.xpose.msra.mxu0 0.0
      %974 = vmatprep.subr.mxu0 0.0
      %975 = vmatpush1.xpose.msra.mxu0 0.0
      %976 = vmatprep.subr.mxu0 0.0
      %977 = vmatpush1.xpose.msra.mxu0 0.0
      %978 = vmatprep.subr.mxu0 0.0
      %979 = vmatpush1.xpose.msra.mxu0 0.0
      %980 = vmatprep.subr.mxu0 0.0
      %981 = vmatpush1.xpose.msra.mxu0 0.0
      %982 = vmatprep.subr.mxu0 0.0
      %983 = vmatpush1.xpose.msra.mxu0 0.0
      %984 = vmatprep.subr.mxu0 0.0
      %985 = vmatpush1.xpose.msra.mxu0 0.0
      %986 = vmatprep.subr.mxu0 0.0
      %987 = vmatpush1.xpose.msra.mxu0 0.0
      %988 = vmatprep.subr.mxu0 0.0
      %989 = vmatpush1.xpose.msra.mxu0 0.0
      %990 = vmatprep.subr.mxu0 0.0
      %991 = vmatpush1.xpose.msra.mxu0 0.0
      %992 = vmatprep.subr.mxu0 0.0
      %993 = vmatpush1.xpose.msra.mxu0 0.0
      %994 = vmatprep.subr.mxu0 0.0
      %995 = vmatpush1.xpose.msra.mxu0 0.0
      %996 = vmatprep.subr.mxu0 0.0
      %997 = vmatpush1.xpose.msra.mxu0 0.0
      %998 = vmatprep.subr.mxu0 0.0
      %999 = vmatpush1.xpose.msra.mxu0 0.0
      %1000 = vmatprep.subr.mxu0 0.0
      %1001 = vmatpush1.xpose.msra.mxu0 0.0
      %1002 = vmatprep.subr.mxu0 0.0
      %1003 = vmatpush1.xpose.msra.mxu0 0.0
      %1004 = vmatprep.subr.mxu0 0.0
      %1005 = vmatpush1.xpose.msra.mxu0 0.0
      %1006 = vmatprep.subr.mxu0 0.0
      %1007 = vmatpush1.xpose.msra.mxu0 0.0
      %1008 = vmatprep.subr.mxu0 0.0
      %1009 = vmatpush1.xpose.msra.mxu0 0.0
      %1010 = vmatprep.subr.mxu0 0.0
      %1011 = vmatpush1.xpose.msra.mxu0 0.0
      %1012 = vmatprep.mubr.f32.mxu0 0.0
      %1013 = vmatmul.mubr.f32.gmra.mrb[0].mxu0 %v944
      %v1014 = vpop.f32.mrb[0].mxu0
      %v1015 = vadd.f32 0.0, %v1014
      %v1016 = vpop.f32.mrb[0].mxu0
      %1017 = vdwg.mxu0
      %1019 = vrot.lane.b32.xlu0 %v935, 96
      %v1020 = vpop.permute.xlu0 %1019
      %v1021 = vsel %vm943, %v935, 0
      %v1023 = vsel %vm943, %v1020, 0
      %1025 = vmatprep.subr.mxu0 0.0
      %1026 = vmatpush1.xpose.msra.mxu0 %v1023
      %1027 = vmatprep.subr.mxu0 0.0
      %1028 = vmatpush1.xpose.msra.mxu0 0.0
      %1029 = vmatprep.subr.mxu0 0.0
      %1030 = vmatpush1.xpose.msra.mxu0 0.0
      %1031 = vmatprep.subr.mxu0 0.0
      %1032 = vmatpush1.xpose.msra.mxu0 0.0
      %1033 = vmatprep.subr.mxu0 0.0
      %1034 = vmatpush1.xpose.msra.mxu0 0.0
      %1035 = vmatprep.subr.mxu0 0.0
      %1036 = vmatpush1.xpose.msra.mxu0 0.0
      %1037 = vmatprep.subr.mxu0 0.0
      %1038 = vmatpush1.xpose.msra.mxu0 0.0
      %1039 = vmatprep.subr.mxu0 0.0
      %1040 = vmatpush1.xpose.msra.mxu0 0.0
      %1041 = vmatprep.subr.mxu0 0.0
      %1042 = vmatpush1.xpose.msra.mxu0 0.0
      %1043 = vmatprep.subr.mxu0 0.0
      %1044 = vmatpush1.xpose.msra.mxu0 0.0
      %1045 = vmatprep.subr.mxu0 0.0
      %1046 = vmatpush1.xpose.msra.mxu0 0.0
      %1047 = vmatprep.subr.mxu0 0.0
      %1048 = vmatpush1.xpose.msra.mxu0 0.0
      %1049 = vmatprep.subr.mxu0 0.0
      %1050 = vmatpush1.xpose.msra.mxu0 0.0
      %1051 = vmatprep.subr.mxu0 0.0
      %1052 = vmatpush1.xpose.msra.mxu0 0.0
      %1053 = vmatprep.subr.mxu0 0.0
      %1054 = vmatpush1.xpose.msra.mxu0 0.0
      %1055 = vmatprep.subr.mxu0 0.0
      %1056 = vmatpush1.xpose.msra.mxu0 0.0
      %1057 = vmatprep.subr.mxu0 0.0
      %1058 = vmatpush1.xpose.msra.mxu0 0.0
      %1059 = vmatprep.subr.mxu0 0.0
      %1060 = vmatpush1.xpose.msra.mxu0 0.0
      %1061 = vmatprep.subr.mxu0 0.0
      %1062 = vmatpush1.xpose.msra.mxu0 0.0
      %1063 = vmatprep.subr.mxu0 0.0
      %1064 = vmatpush1.xpose.msra.mxu0 0.0
      %1065 = vmatprep.subr.mxu0 0.0
      %1066 = vmatpush1.xpose.msra.mxu0 0.0
      %1067 = vmatprep.subr.mxu0 0.0
      %1068 = vmatpush1.xpose.msra.mxu0 0.0
      %1069 = vmatprep.subr.mxu0 0.0
      %1070 = vmatpush1.xpose.msra.mxu0 0.0
      %1071 = vmatprep.subr.mxu0 0.0
      %1072 = vmatpush1.xpose.msra.mxu0 0.0
      %1073 = vmatprep.subr.mxu0 0.0
      %1074 = vmatpush1.xpose.msra.mxu0 0.0
      %1075 = vmatprep.subr.mxu0 0.0
      %1076 = vmatpush1.xpose.msra.mxu0 0.0
      %1077 = vmatprep.subr.mxu0 0.0
      %1078 = vmatpush1.xpose.msra.mxu0 0.0
      %1079 = vmatprep.subr.mxu0 0.0
      %1080 = vmatpush1.xpose.msra.mxu0 0.0
      %1081 = vmatprep.subr.mxu0 0.0
      %1082 = vmatpush1.xpose.msra.mxu0 0.0
      %1083 = vmatprep.subr.mxu0 0.0
      %1084 = vmatpush1.xpose.msra.mxu0 0.0
      %1085 = vmatprep.subr.mxu0 0.0
      %1086 = vmatpush1.xpose.msra.mxu0 0.0
      %1087 = vmatprep.subr.mxu0 0.0
      %1088 = vmatpush1.xpose.msra.mxu0 0.0
      %1089 = vmatprep.mubr.f32.mxu0 0.0
      %1090 = vmatmul.mubr.f32.gmra.mrb[0].mxu0 %v1021
      %v1091 = vpop.f32.mrb[0].mxu0
      %v1092 = vadd.f32 0.0, %v1091
      %v1093 = vpop.f32.mrb[0].mxu0
      %1094 = vdwg.mxu0
      %v1095 = vmul.f32 %v1015, 0.35355338
      %v1096 = vmul.f32 %v1092, 0.35355338
      %v1099 = vlaneseq
      %v1100 = vshrl.u32 %v1099, 7
      %v1101 = vsub.s32 0, %v1100
      %v1102 = vrot.slane %v938, %v1101
      %v1103 = vlaneseq
      %v1104 = vshrl.u32 %v1103, 7
      %v1105 = vsub.s32 0, %v1104
      %v1106 = vrot.slane %v939, %v1105
      %v1109 = vadd.f32 %v1095, %v1102
      %v1110 = vadd.f32 %v1096, %v1106
      %v1111 = vsel %vm943, %v1109, -inf
      %1112 = vmax.xlane.f32.xlu0 %v1111
      %v1113 = vpop.xlane.xlu0 %1112
      %v1114 = vsel %vm943, %v1110, -inf
      %1115 = vmax.xlane.f32.xlu0 %v1114
      %v1116 = vpop.xlane.xlu0 %1115
      %v1117 = vsub.f32 %v1109, %v1113
      %v1118 = vsub.f32 %v1110, %v1116
      %v1119 = vmul.f32 %v1117, 1.442695
      %v1120 = vpow.pop %v1119
      %v1121 = vmul.f32 %v1118, 1.442695
      %v1122 = vpow.pop %v1121
      %v1123 = vsel %vm943, %v1120, 0.0
      %1124 = vadd.xlane.f32.xlu0 %v1123
      %v1125 = vpop.xlane.xlu0 %1124
      %v1126 = vsel %vm943, %v1122, 0.0
      %1127 = vadd.xlane.f32.xlu0 %v1126
      %v1128 = vpop.xlane.xlu0 %1127
      %v1129 = vrcp.pop %v1125
      %v1130 = vrcp.pop %v1128
      %v1131 = vmul.f32 %v1120, %v1129
      %v1132 = vmul.f32 %v1122, %v1130
      %1133 = vrot.lane.b32.xlu0 %v930, 64
      %v1134 = vpop.permute.xlu0 %1133
      %v1137 = vsel %vm943, %v1131, 0
      %1139 = vmatprep.subr.mxu0 0.0
      %1140 = vmatpush1.msra.mxu0 %v1134
      %1141 = vmatprep.subr.mxu0 0.0
      %1142 = vmatpush1.msra.mxu0 0.0
      %1143 = vmatprep.subr.mxu0 0.0
      %1144 = vmatpush1.msra.mxu0 0.0
      %1145 = vmatprep.subr.mxu0 0.0
      %1146 = vmatpush1.msra.mxu0 0.0
      %1147 = vmatprep.subr.mxu0 0.0
      %1148 = vmatpush1.msra.mxu0 0.0
      %1149 = vmatprep.subr.mxu0 0.0
      %1150 = vmatpush1.msra.mxu0 0.0
      %1151 = vmatprep.subr.mxu0 0.0
      %1152 = vmatpush1.msra.mxu0 0.0
      %1153 = vmatprep.subr.mxu0 0.0
      %1154 = vmatpush1.msra.mxu0 0.0
      %1155 = vmatprep.subr.mxu0 0.0
      %1156 = vmatpush1.msra.mxu0 0.0
      %1157 = vmatprep.subr.mxu0 0.0
      %1158 = vmatpush1.msra.mxu0 0.0
      %1159 = vmatprep.subr.mxu0 0.0
      %1160 = vmatpush1.msra.mxu0 0.0
      %1161 = vmatprep.subr.mxu0 0.0
      %1162 = vmatpush1.msra.mxu0 0.0
      %1163 = vmatprep.subr.mxu0 0.0
      %1164 = vmatpush1.msra.mxu0 0.0
      %1165 = vmatprep.subr.mxu0 0.0
      %1166 = vmatpush1.msra.mxu0 0.0
      %1167 = vmatprep.subr.mxu0 0.0
      %1168 = vmatpush1.msra.mxu0 0.0
      %1169 = vmatprep.subr.mxu0 0.0
      %1170 = vmatpush1.msra.mxu0 0.0
      %1171 = vmatprep.subr.mxu0 0.0
      %1172 = vmatpush1.msra.mxu0 0.0
      %1173 = vmatprep.subr.mxu0 0.0
      %1174 = vmatpush1.msra.mxu0 0.0
      %1175 = vmatprep.subr.mxu0 0.0
      %1176 = vmatpush1.msra.mxu0 0.0
      %1177 = vmatprep.subr.mxu0 0.0
      %1178 = vmatpush1.msra.mxu0 0.0
      %1179 = vmatprep.subr.mxu0 0.0
      %1180 = vmatpush1.msra.mxu0 0.0
      %1181 = vmatprep.subr.mxu0 0.0
      %1182 = vmatpush1.msra.mxu0 0.0
      %1183 = vmatprep.subr.mxu0 0.0
      %1184 = vmatpush1.msra.mxu0 0.0
      %1185 = vmatprep.subr.mxu0 0.0
      %1186 = vmatpush1.msra.mxu0 0.0
      %1187 = vmatprep.subr.mxu0 0.0
      %1188 = vmatpush1.msra.mxu0 0.0
      %1189 = vmatprep.subr.mxu0 0.0
      %1190 = vmatpush1.msra.mxu0 0.0
      %1191 = vmatprep.subr.mxu0 0.0
      %1192 = vmatpush1.msra.mxu0 0.0
      %1193 = vmatprep.subr.mxu0 0.0
      %1194 = vmatpush1.msra.mxu0 0.0
      %1195 = vmatprep.subr.mxu0 0.0
      %1196 = vmatpush1.msra.mxu0 0.0
      %1197 = vmatprep.subr.mxu0 0.0
      %1198 = vmatpush1.msra.mxu0 0.0
      %1199 = vmatprep.subr.mxu0 0.0
      %1200 = vmatpush1.msra.mxu0 0.0
      %1201 = vmatprep.subr.mxu0 0.0
      %1202 = vmatpush1.msra.mxu0 0.0
      %1203 = vmatprep.mubr.f32.mxu0 0.0
      %1204 = vmatmul.mubr.f32.gmra.mrb[0].mxu0 %v1137
      %v1205 = vpop.f32.mrb[0].mxu0
      %v1206 = vadd.f32 0.0, %v1205
      %v1207 = vpop.f32.mrb[0].mxu0
      %1208 = vdwg.mxu0
      %1209 = vrot.lane.b32.xlu0 %v935, 64
      %v1210 = vpop.permute.xlu0 %1209
      %v1213 = vsel %vm943, %v1132, 0
      %1215 = vmatprep.subr.mxu0 0.0
      %1216 = vmatpush1.msra.mxu0 %v1210
      %1217 = vmatprep.subr.mxu0 0.0
      %1218 = vmatpush1.msra.mxu0 0.0
      %1219 = vmatprep.subr.mxu0 0.0
      %1220 = vmatpush1.msra.mxu0 0.0
      %1221 = vmatprep.subr.mxu0 0.0
      %1222 = vmatpush1.msra.mxu0 0.0
      %1223 = vmatprep.subr.mxu0 0.0
      %1224 = vmatpush1.msra.mxu0 0.0
      %1225 = vmatprep.subr.mxu0 0.0
      %1226 = vmatpush1.msra.mxu0 0.0
      %1227 = vmatprep.subr.mxu0 0.0
      %1228 = vmatpush1.msra.mxu0 0.0
      %1229 = vmatprep.subr.mxu0 0.0
      %1230 = vmatpush1.msra.mxu0 0.0
      %1231 = vmatprep.subr.mxu0 0.0
      %1232 = vmatpush1.msra.mxu0 0.0
      %1233 = vmatprep.subr.mxu0 0.0
      %1234 = vmatpush1.msra.mxu0 0.0
      %1235 = vmatprep.subr.mxu0 0.0
      %1236 = vmatpush1.msra.mxu0 0.0
      %1237 = vmatprep.subr.mxu0 0.0
      %1238 = vmatpush1.msra.mxu0 0.0
      %1239 = vmatprep.subr.mxu0 0.0
      %1240 = vmatpush1.msra.mxu0 0.0
      %1241 = vmatprep.subr.mxu0 0.0
      %1242 = vmatpush1.msra.mxu0 0.0
      %1243 = vmatprep.subr.mxu0 0.0
      %1244 = vmatpush1.msra.mxu0 0.0
      %1245 = vmatprep.subr.mxu0 0.0
      %1246 = vmatpush1.msra.mxu0 0.0
      %1247 = vmatprep.subr.mxu0 0.0
      %1248 = vmatpush1.msra.mxu0 0.0
      %1249 = vmatprep.subr.mxu0 0.0
      %1250 = vmatpush1.msra.mxu0 0.0
      %1251 = vmatprep.subr.mxu0 0.0
      %1252 = vmatpush1.msra.mxu0 0.0
      %1253 = vmatprep.subr.mxu0 0.0
      %1254 = vmatpush1.msra.mxu0 0.0
      %1255 = vmatprep.subr.mxu0 0.0
      %1256 = vmatpush1.msra.mxu0 0.0
      %1257 = vmatprep.subr.mxu0 0.0
      %1258 = vmatpush1.msra.mxu0 0.0
      %1259 = vmatprep.subr.mxu0 0.0
      %1260 = vmatpush1.msra.mxu0 0.0
      %1261 = vmatprep.subr.mxu0 0.0
      %1262 = vmatpush1.msra.mxu0 0.0
      %1263 = vmatprep.subr.mxu0 0.0
      %1264 = vmatpush1.msra.mxu0 0.0
      %1265 = vmatprep.subr.mxu0 0.0
      %1266 = vmatpush1.msra.mxu0 0.0
      %1267 = vmatprep.subr.mxu0 0.0
      %1268 = vmatpush1.msra.mxu0 0.0
      %1269 = vmatprep.subr.mxu0 0.0
      %1270 = vmatpush1.msra.mxu0 0.0
      %1271 = vmatprep.subr.mxu0 0.0
      %1272 = vmatpush1.msra.mxu0 0.0
      %1273 = vmatprep.subr.mxu0 0.0
      %1274 = vmatpush1.msra.mxu0 0.0
      %1275 = vmatprep.subr.mxu0 0.0
      %1276 = vmatpush1.msra.mxu0 0.0
      %1277 = vmatprep.subr.mxu0 0.0
      %1278 = vmatpush1.msra.mxu0 0.0
      %1279 = vmatprep.mubr.f32.mxu0 0.0
      %1280 = vmatmul.mubr.f32.gmra.mrb[0].mxu0 %v1213
      %v1281 = vpop.f32.mrb[0].mxu0
      %v1282 = vadd.f32 0.0, %v1281
      %v1283 = vpop.f32.mrb[0].mxu0
      %1284 = vdwg.mxu0
      %v1285 = vld [vmem:[%s757] sm:$0xff]
      %1286 = vrot.lane.b32.xlu0 %v930, 120
      %v1287 = vpop.permute.xlu0 %1286
      %1288 = vrot.lane.b32.xlu0 %v930, 88
      %v1289 = vpop.permute.xlu0 %1288
      %v1290 = vsel %vm943, %v1287, 0
      %v1292 = vsel %vm943, %v1289, 0
      %1294 = vmatprep.subr.mxu0 0.0
      %1295 = vmatpush1.xpose.msra.mxu0 %v1292
      %1296 = vmatprep.subr.mxu0 0.0
      %1297 = vmatpush1.xpose.msra.mxu0 0.0
      %1298 = vmatprep.subr.mxu0 0.0
      %1299 = vmatpush1.xpose.msra.mxu0 0.0
      %1300 = vmatprep.subr.mxu0 0.0
      %1301 = vmatpush1.xpose.msra.mxu0 0.0
      %1302 = vmatprep.subr.mxu0 0.0
      %1303 = vmatpush1.xpose.msra.mxu0 0.0
      %1304 = vmatprep.subr.mxu0 0.0
      %1305 = vmatpush1.xpose.msra.mxu0 0.0
      %1306 = vmatprep.subr.mxu0 0.0
      %1307 = vmatpush1.xpose.msra.mxu0 0.0
      %1308 = vmatprep.subr.mxu0 0.0
      %1309 = vmatpush1.xpose.msra.mxu0 0.0
      %1310 = vmatprep.subr.mxu0 0.0
      %1311 = vmatpush1.xpose.msra.mxu0 0.0
      %1312 = vmatprep.subr.mxu0 0.0
      %1313 = vmatpush1.xpose.msra.mxu0 0.0
      %1314 = vmatprep.subr.mxu0 0.0
      %1315 = vmatpush1.xpose.msra.mxu0 0.0
      %1316 = vmatprep.subr.mxu0 0.0
      %1317 = vmatpush1.xpose.msra.mxu0 0.0
      %1318 = vmatprep.subr.mxu0 0.0
      %1319 = vmatpush1.xpose.msra.mxu0 0.0
      %1320 = vmatprep.subr.mxu0 0.0
      %1321 = vmatpush1.xpose.msra.mxu0 0.0
      %1322 = vmatprep.subr.mxu0 0.0
      %1323 = vmatpush1.xpose.msra.mxu0 0.0
      %1324 = vmatprep.subr.mxu0 0.0
      %1325 = vmatpush1.xpose.msra.mxu0 0.0
      %1326 = vmatprep.subr.mxu0 0.0
      %1327 = vmatpush1.xpose.msra.mxu0 0.0
      %1328 = vmatprep.subr.mxu0 0.0
      %1329 = vmatpush1.xpose.msra.mxu0 0.0
      %1330 = vmatprep.subr.mxu0 0.0
      %1331 = vmatpush1.xpose.msra.mxu0 0.0
      %1332 = vmatprep.subr.mxu0 0.0
      %1333 = vmatpush1.xpose.msra.mxu0 0.0
      %1334 = vmatprep.subr.mxu0 0.0
      %1335 = vmatpush1.xpose.msra.mxu0 0.0
      %1336 = vmatprep.subr.mxu0 0.0
      %1337 = vmatpush1.xpose.msra.mxu0 0.0
      %1338 = vmatprep.subr.mxu0 0.0
      %1339 = vmatpush1.xpose.msra.mxu0 0.0
      %1340 = vmatprep.subr.mxu0 0.0
      %1341 = vmatpush1.xpose.msra.mxu0 0.0
      %1342 = vmatprep.subr.mxu0 0.0
      %1343 = vmatpush1.xpose.msra.mxu0 0.0
      %1344 = vmatprep.subr.mxu0 0.0
      %1345 = vmatpush1.xpose.msra.mxu0 0.0
      %1346 = vmatprep.subr.mxu0 0.0
      %1347 = vmatpush1.xpose.msra.mxu0 0.0
      %1348 = vmatprep.subr.mxu0 0.0
      %1349 = vmatpush1.xpose.msra.mxu0 0.0
      %1350 = vmatprep.subr.mxu0 0.0
      %1351 = vmatpush1.xpose.msra.mxu0 0.0
      %1352 = vmatprep.subr.mxu0 0.0
      %1353 = vmatpush1.xpose.msra.mxu0 0.0
      %1354 = vmatprep.subr.mxu0 0.0
      %1355 = vmatpush1.xpose.msra.mxu0 0.0
      %1356 = vmatprep.subr.mxu0 0.0
      %1357 = vmatpush1.xpose.msra.mxu0 0.0
      %1358 = vmatprep.mubr.f32.mxu0 0.0
      %1359 = vmatmul.mubr.f32.gmra.mrb[0].mxu0 %v1290
      %v1360 = vpop.f32.mrb[0].mxu0
      %v1361 = vadd.f32 0.0, %v1360
      %v1362 = vpop.f32.mrb[0].mxu0
      %1363 = vdwg.mxu0
      %1364 = vrot.lane.b32.xlu0 %v935, 120
      %v1365 = vpop.permute.xlu0 %1364
      %1366 = vrot.lane.b32.xlu0 %v935, 88
      %v1367 = vpop.permute.xlu0 %1366
      %v1368 = vsel %vm943, %v1365, 0
      %v1370 = vsel %vm943, %v1367, 0
      %1372 = vmatprep.subr.mxu0 0.0
      %1373 = vmatpush1.xpose.msra.mxu0 %v1370
      %1374 = vmatprep.subr.mxu0 0.0
      %1375 = vmatpush1.xpose.msra.mxu0 0.0
      %1376 = vmatprep.subr.mxu0 0.0
      %1377 = vmatpush1.xpose.msra.mxu0 0.0
      %1378 = vmatprep.subr.mxu0 0.0
      %1379 = vmatpush1.xpose.msra.mxu0 0.0
      %1380 = vmatprep.subr.mxu0 0.0
      %1381 = vmatpush1.xpose.msra.mxu0 0.0
      %1382 = vmatprep.subr.mxu0 0.0
      %1383 = vmatpush1.xpose.msra.mxu0 0.0
      %1384 = vmatprep.subr.mxu0 0.0
      %1385 = vmatpush1.xpose.msra.mxu0 0.0
      %1386 = vmatprep.subr.mxu0 0.0
      %1387 = vmatpush1.xpose.msra.mxu0 0.0
      %1388 = vmatprep.subr.mxu0 0.0
      %1389 = vmatpush1.xpose.msra.mxu0 0.0
      %1390 = vmatprep.subr.mxu0 0.0
      %1391 = vmatpush1.xpose.msra.mxu0 0.0
      %1392 = vmatprep.subr.mxu0 0.0
      %1393 = vmatpush1.xpose.msra.mxu0 0.0
      %1394 = vmatprep.subr.mxu0 0.0
      %1395 = vmatpush1.xpose.msra.mxu0 0.0
      %1396 = vmatprep.subr.mxu0 0.0
      %1397 = vmatpush1.xpose.msra.mxu0 0.0
      %1398 = vmatprep.subr.mxu0 0.0
      %1399 = vmatpush1.xpose.msra.mxu0 0.0
      %1400 = vmatprep.subr.mxu0 0.0
      %1401 = vmatpush1.xpose.msra.mxu0 0.0
      %1402 = vmatprep.subr.mxu0 0.0
      %1403 = vmatpush1.xpose.msra.mxu0 0.0
      %1404 = vmatprep.subr.mxu0 0.0
      %1405 = vmatpush1.xpose.msra.mxu0 0.0
      %1406 = vmatprep.subr.mxu0 0.0
      %1407 = vmatpush1.xpose.msra.mxu0 0.0
      %1408 = vmatprep.subr.mxu0 0.0
      %1409 = vmatpush1.xpose.msra.mxu0 0.0
      %1410 = vmatprep.subr.mxu0 0.0
      %1411 = vmatpush1.xpose.msra.mxu0 0.0
      %1412 = vmatprep.subr.mxu0 0.0
      %1413 = vmatpush1.xpose.msra.mxu0 0.0
      %1414 = vmatprep.subr.mxu0 0.0
      %1415 = vmatpush1.xpose.msra.mxu0 0.0
      %1416 = vmatprep.subr.mxu0 0.0
      %1417 = vmatpush1.xpose.msra.mxu0 0.0
      %1418 = vmatprep.subr.mxu0 0.0
      %1419 = vmatpush1.xpose.msra.mxu0 0.0
      %1420 = vmatprep.subr.mxu0 0.0
      %1421 = vmatpush1.xpose.msra.mxu0 0.0
      %1422 = vmatprep.subr.mxu0 0.0
      %1423 = vmatpush1.xpose.msra.mxu0 0.0
      %1424 = vmatprep.subr.mxu0 0.0
      %1425 = vmatpush1.xpose.msra.mxu0 0.0
      %1426 = vmatprep.subr.mxu0 0.0
      %1427 = vmatpush1.xpose.msra.mxu0 0.0
      %1428 = vmatprep.subr.mxu0 0.0
      %1429 = vmatpush1.xpose.msra.mxu0 0.0
      %1430 = vmatprep.subr.mxu0 0.0
      %1431 = vmatpush1.xpose.msra.mxu0 0.0
      %1432 = vmatprep.subr.mxu0 0.0
      %1433 = vmatpush1.xpose.msra.mxu0 0.0
      %1434 = vmatprep.subr.mxu0 0.0
      %1435 = vmatpush1.xpose.msra.mxu0 0.0
      %1436 = vmatprep.mubr.f32.mxu0 0.0
      %1437 = vmatmul.mubr.f32.gmra.mrb[0].mxu0 %v1368
      %v1438 = vpop.f32.mrb[0].mxu0
      %v1439 = vadd.f32 0.0, %v1438
      %v1440 = vpop.f32.mrb[0].mxu0
      %1441 = vdwg.mxu0
      %v1442 = vmul.f32 %v1361, 0.35355338
      %v1443 = vmul.f32 %v1439, 0.35355338
      %v1444 = vadd.f32 %v1442, %v1102
      %v1445 = vadd.f32 %v1443, %v1106
      %v1446 = vsel %vm943, %v1444, -inf
      %1447 = vmax.xlane.f32.xlu0 %v1446
      %v1448 = vpop.xlane.xlu0 %1447
      %v1449 = vsel %vm943, %v1445, -inf
      %1450 = vmax.xlane.f32.xlu0 %v1449
      %v1451 = vpop.xlane.xlu0 %1450
      %v1452 = vsub.f32 %v1444, %v1448
      %v1453 = vsub.f32 %v1445, %v1451
      %v1454 = vmul.f32 %v1452, 1.442695
      %v1455 = vpow.pop %v1454
      %v1456 = vmul.f32 %v1453, 1.442695
      %v1457 = vpow.pop %v1456
      %v1458 = vsel %vm943, %v1455, 0.0
      %1459 = vadd.xlane.f32.xlu0 %v1458
      %v1460 = vpop.xlane.xlu0 %1459
      %v1461 = vsel %vm943, %v1457, 0.0
      %1462 = vadd.xlane.f32.xlu0 %v1461
      %v1463 = vpop.xlane.xlu0 %1462
      %v1464 = vrcp.pop %v1460
      %v1465 = vrcp.pop %v1463
      %v1466 = vmul.f32 %v1455, %v1464
      %v1467 = vmul.f32 %v1457, %v1465
      %1468 = vrot.lane.b32.xlu0 %v930, 56
      %v1469 = vpop.permute.xlu0 %1468
      %v1472 = vsel %vm943, %v1466, 0
      %1474 = vmatprep.subr.mxu0 0.0
      %1475 = vmatpush1.msra.mxu0 %v1469
      %1476 = vmatprep.subr.mxu0 0.0
      %1477 = vmatpush1.msra.mxu0 0.0
      %1478 = vmatprep.subr.mxu0 0.0
      %1479 = vmatpush1.msra.mxu0 0.0
      %1480 = vmatprep.subr.mxu0 0.0
      %1481 = vmatpush1.msra.mxu0 0.0
      %1482 = vmatprep.subr.mxu0 0.0
      %1483 = vmatpush1.msra.mxu0 0.0
      %1484 = vmatprep.subr.mxu0 0.0
      %1485 = vmatpush1.msra.mxu0 0.0
      %1486 = vmatprep.subr.mxu0 0.0
      %1487 = vmatpush1.msra.mxu0 0.0
      %1488 = vmatprep.subr.mxu0 0.0
      %1489 = vmatpush1.msra.mxu0 0.0
      %1490 = vmatprep.subr.mxu0 0.0
      %1491 = vmatpush1.msra.mxu0 0.0
      %1492 = vmatprep.subr.mxu0 0.0
      %1493 = vmatpush1.msra.mxu0 0.0
      %1494 = vmatprep.subr.mxu0 0.0
      %1495 = vmatpush1.msra.mxu0 0.0
      %1496 = vmatprep.subr.mxu0 0.0
      %1497 = vmatpush1.msra.mxu0 0.0
      %1498 = vmatprep.subr.mxu0 0.0
      %1499 = vmatpush1.msra.mxu0 0.0
      %1500 = vmatprep.subr.mxu0 0.0
      %1501 = vmatpush1.msra.mxu0 0.0
      %1502 = vmatprep.subr.mxu0 0.0
      %1503 = vmatpush1.msra.mxu0 0.0
      %1504 = vmatprep.subr.mxu0 0.0
      %1505 = vmatpush1.msra.mxu0 0.0
      %1506 = vmatprep.subr.mxu0 0.0
      %1507 = vmatpush1.msra.mxu0 0.0
      %1508 = vmatprep.subr.mxu0 0.0
      %1509 = vmatpush1.msra.mxu0 0.0
      %1510 = vmatprep.subr.mxu0 0.0
      %1511 = vmatpush1.msra.mxu0 0.0
      %1512 = vmatprep.subr.mxu0 0.0
      %1513 = vmatpush1.msra.mxu0 0.0
      %1514 = vmatprep.subr.mxu0 0.0
      %1515 = vmatpush1.msra.mxu0 0.0
      %1516 = vmatprep.subr.mxu0 0.0
      %1517 = vmatpush1.msra.mxu0 0.0
      %1518 = vmatprep.subr.mxu0 0.0
      %1519 = vmatpush1.msra.mxu0 0.0
      %1520 = vmatprep.subr.mxu0 0.0
      %1521 = vmatpush1.msra.mxu0 0.0
      %1522 = vmatprep.subr.mxu0 0.0
      %1523 = vmatpush1.msra.mxu0 0.0
      %1524 = vmatprep.subr.mxu0 0.0
      %1525 = vmatpush1.msra.mxu0 0.0
      %1526 = vmatprep.subr.mxu0 0.0
      %1527 = vmatpush1.msra.mxu0 0.0
      %1528 = vmatprep.subr.mxu0 0.0
      %1529 = vmatpush1.msra.mxu0 0.0
      %1530 = vmatprep.subr.mxu0 0.0
      %1531 = vmatpush1.msra.mxu0 0.0
      %1532 = vmatprep.subr.mxu0 0.0
      %1533 = vmatpush1.msra.mxu0 0.0
      %1534 = vmatprep.subr.mxu0 0.0
      %1535 = vmatpush1.msra.mxu0 0.0
      %1536 = vmatprep.subr.mxu0 0.0
      %1537 = vmatpush1.msra.mxu0 0.0
      %1538 = vmatprep.mubr.f32.mxu0 0.0
      %1539 = vmatmul.mubr.f32.gmra.mrb[0].mxu0 %v1472
      %v1540 = vpop.f32.mrb[0].mxu0
      %v1541 = vadd.f32 0.0, %v1540
      %v1542 = vpop.f32.mrb[0].mxu0
      %1543 = vdwg.mxu0
      %1544 = vrot.lane.b32.xlu0 %v935, 56
      %v1545 = vpop.permute.xlu0 %1544
      %v1548 = vsel %vm943, %v1467, 0
      %1550 = vmatprep.subr.mxu0 0.0
      %1551 = vmatpush1.msra.mxu0 %v1545
      %1552 = vmatprep.subr.mxu0 0.0
      %1553 = vmatpush1.msra.mxu0 0.0
      %1554 = vmatprep.subr.mxu0 0.0
      %1555 = vmatpush1.msra.mxu0 0.0
      %1556 = vmatprep.subr.mxu0 0.0
      %1557 = vmatpush1.msra.mxu0 0.0
      %1558 = vmatprep.subr.mxu0 0.0
      %1559 = vmatpush1.msra.mxu0 0.0
      %1560 = vmatprep.subr.mxu0 0.0
      %1561 = vmatpush1.msra.mxu0 0.0
      %1562 = vmatprep.subr.mxu0 0.0
      %1563 = vmatpush1.msra.mxu0 0.0
      %1564 = vmatprep.subr.mxu0 0.0
      %1565 = vmatpush1.msra.mxu0 0.0
      %1566 = vmatprep.subr.mxu0 0.0
      %1567 = vmatpush1.msra.mxu0 0.0
      %1568 = vmatprep.subr.mxu0 0.0
      %1569 = vmatpush1.msra.mxu0 0.0
      %1570 = vmatprep.subr.mxu0 0.0
      %1571 = vmatpush1.msra.mxu0 0.0
      %1572 = vmatprep.subr.mxu0 0.0
      %1573 = vmatpush1.msra.mxu0 0.0
      %1574 = vmatprep.subr.mxu0 0.0
      %1575 = vmatpush1.msra.mxu0 0.0
      %1576 = vmatprep.subr.mxu0 0.0
      %1577 = vmatpush1.msra.mxu0 0.0
      %1578 = vmatprep.subr.mxu0 0.0
      %1579 = vmatpush1.msra.mxu0 0.0
      %1580 = vmatprep.subr.mxu0 0.0
      %1581 = vmatpush1.msra.mxu0 0.0
      %1582 = vmatprep.subr.mxu0 0.0
      %1583 = vmatpush1.msra.mxu0 0.0
      %1584 = vmatprep.subr.mxu0 0.0
      %1585 = vmatpush1.msra.mxu0 0.0
      %1586 = vmatprep.subr.mxu0 0.0
      %1587 = vmatpush1.msra.mxu0 0.0
      %1588 = vmatprep.subr.mxu0 0.0
      %1589 = vmatpush1.msra.mxu0 0.0
      %1590 = vmatprep.subr.mxu0 0.0
      %1591 = vmatpush1.msra.mxu0 0.0
      %1592 = vmatprep.subr.mxu0 0.0
      %1593 = vmatpush1.msra.mxu0 0.0
      %1594 = vmatprep.subr.mxu0 0.0
      %1595 = vmatpush1.msra.mxu0 0.0
      %1596 = vmatprep.subr.mxu0 0.0
      %1597 = vmatpush1.msra.mxu0 0.0
      %1598 = vmatprep.subr.mxu0 0.0
      %1599 = vmatpush1.msra.mxu0 0.0
      %1600 = vmatprep.subr.mxu0 0.0
      %1601 = vmatpush1.msra.mxu0 0.0
      %1602 = vmatprep.subr.mxu0 0.0
      %1603 = vmatpush1.msra.mxu0 0.0
      %1604 = vmatprep.subr.mxu0 0.0
      %1605 = vmatpush1.msra.mxu0 0.0
      %1606 = vmatprep.subr.mxu0 0.0
      %1607 = vmatpush1.msra.mxu0 0.0
      %1608 = vmatprep.subr.mxu0 0.0
      %1609 = vmatpush1.msra.mxu0 0.0
      %1610 = vmatprep.subr.mxu0 0.0
      %1611 = vmatpush1.msra.mxu0 0.0
      %1612 = vmatprep.subr.mxu0 0.0
      %1613 = vmatpush1.msra.mxu0 0.0
      %1614 = vmatprep.mubr.f32.mxu0 0.0
      %1615 = vmatmul.mubr.f32.gmra.mrb[0].mxu0 %v1548
      %v1616 = vpop.f32.mrb[0].mxu0
      %v1617 = vadd.f32 0.0, %v1616
      %v1618 = vpop.f32.mrb[0].mxu0
      %1619 = vdwg.mxu0
      %v1620 = vld [vmem:[%s757 + $0x8] sm:$0xff]
      %v1622 = vsel %vm943, %v1541, 0
      %v1625 = vsel %vm943, %v1617, 0
      %1627 = vmatprep.subr.mxu0 0.0
      %1628 = vmatpush1.msra.mxu0 %v1620
      %1629 = vmatprep.subr.mxu0 0.0
      %1630 = vmatpush1.msra.mxu0 0.0
      %1631 = vmatprep.subr.mxu0 0.0
      %1632 = vmatpush1.msra.mxu0 0.0
      %1633 = vmatprep.subr.mxu0 0.0
      %1634 = vmatpush1.msra.mxu0 0.0
      %1635 = vmatprep.subr.mxu0 0.0
      %1636 = vmatpush1.msra.mxu0 0.0
      %1637 = vmatprep.subr.mxu0 0.0
      %1638 = vmatpush1.msra.mxu0 0.0
      %1639 = vmatprep.subr.mxu0 0.0
      %1640 = vmatpush1.msra.mxu0 0.0
      %1641 = vmatprep.subr.mxu0 0.0
      %1642 = vmatpush1.msra.mxu0 0.0
      %1643 = vmatprep.subr.mxu0 0.0
      %1644 = vmatpush1.msra.mxu0 0.0
      %1645 = vmatprep.subr.mxu0 0.0
      %1646 = vmatpush1.msra.mxu0 0.0
      %1647 = vmatprep.subr.mxu0 0.0
      %1648 = vmatpush1.msra.mxu0 0.0
      %1649 = vmatprep.subr.mxu0 0.0
      %1650 = vmatpush1.msra.mxu0 0.0
      %1651 = vmatprep.subr.mxu0 0.0
      %1652 = vmatpush1.msra.mxu0 0.0
      %1653 = vmatprep.subr.mxu0 0.0
      %1654 = vmatpush1.msra.mxu0 0.0
      %1655 = vmatprep.subr.mxu0 0.0
      %1656 = vmatpush1.msra.mxu0 0.0
      %1657 = vmatprep.subr.mxu0 0.0
      %1658 = vmatpush1.msra.mxu0 0.0
      %1659 = vmatprep.subr.mxu0 0.0
      %1660 = vmatpush1.msra.mxu0 0.0
      %1661 = vmatprep.subr.mxu0 0.0
      %1662 = vmatpush1.msra.mxu0 0.0
      %1663 = vmatprep.subr.mxu0 0.0
      %1664 = vmatpush1.msra.mxu0 0.0
      %1665 = vmatprep.subr.mxu0 0.0
      %1666 = vmatpush1.msra.mxu0 0.0
      %1667 = vmatprep.subr.mxu0 0.0
      %1668 = vmatpush1.msra.mxu0 0.0
      %1669 = vmatprep.subr.mxu0 0.0
      %1670 = vmatpush1.msra.mxu0 0.0
      %1671 = vmatprep.subr.mxu0 0.0
      %1672 = vmatpush1.msra.mxu0 0.0
      %1673 = vmatprep.subr.mxu0 0.0
      %1674 = vmatpush1.msra.mxu0 0.0
      %1675 = vmatprep.subr.mxu0 0.0
      %1676 = vmatpush1.msra.mxu0 0.0
      %1677 = vmatprep.subr.mxu0 0.0
      %1678 = vmatpush1.msra.mxu0 0.0
      %1679 = vmatprep.subr.mxu0 0.0
      %1680 = vmatpush1.msra.mxu0 0.0
      %1681 = vmatprep.subr.mxu0 0.0
      %1682 = vmatpush1.msra.mxu0 0.0
      %1683 = vmatprep.subr.mxu0 0.0
      %1684 = vmatpush1.msra.mxu0 0.0
      %1685 = vmatprep.subr.mxu0 0.0
      %1686 = vmatpush1.msra.mxu0 0.0
      %1687 = vmatprep.subr.mxu0 0.0
      %1688 = vmatpush1.msra.mxu0 0.0
      %1689 = vmatprep.subr.mxu0 0.0
      %1690 = vmatpush1.msra.mxu0 0.0
      %1691 = vmatprep.mubr.f32.mxu0 0.0
      %1692 = vmatmul.mubr.f32.gmra.mrb[0].mxu0 %v1622
      %v1693 = vpop.f32.mrb[0].mxu0
      %v1694 = vadd.f32 0.0, %v1693
      %v1695 = vpop.f32.mrb[0].mxu0
      %1696 = vmatprep.mubr.f32.mxu0 0.0
      %1697 = vmatmul.mubr.f32.gmra.mrb[0].mxu0 %v1625
      %v1698 = vpop.f32.mrb[0].mxu0
      %v1699 = vadd.f32 0.0, %v1698
      %v1700 = vpop.f32.mrb[0].mxu0
      %1701 = vdwg.mxu0
      %v1703 = vsel %vm943, %v1206, 0
      %v1706 = vsel %vm943, %v1282, 0
      %1708 = vmatprep.subr.mxu0 0.0
      %1709 = vmatpush1.msra.mxu0 %v1285
      %1710 = vmatprep.subr.mxu0 0.0
      %1711 = vmatpush1.msra.mxu0 0.0
      %1712 = vmatprep.subr.mxu0 0.0
      %1713 = vmatpush1.msra.mxu0 0.0
      %1714 = vmatprep.subr.mxu0 0.0
      %1715 = vmatpush1.msra.mxu0 0.0
      %1716 = vmatprep.subr.mxu0 0.0
      %1717 = vmatpush1.msra.mxu0 0.0
      %1718 = vmatprep.subr.mxu0 0.0
      %1719 = vmatpush1.msra.mxu0 0.0
      %1720 = vmatprep.subr.mxu0 0.0
      %1721 = vmatpush1.msra.mxu0 0.0
      %1722 = vmatprep.subr.mxu0 0.0
      %1723 = vmatpush1.msra.mxu0 0.0
      %1724 = vmatprep.subr.mxu0 0.0
      %1725 = vmatpush1.msra.mxu0 0.0
      %1726 = vmatprep.subr.mxu0 0.0
      %1727 = vmatpush1.msra.mxu0 0.0
      %1728 = vmatprep.subr.mxu0 0.0
      %1729 = vmatpush1.msra.mxu0 0.0
      %1730 = vmatprep.subr.mxu0 0.0
      %1731 = vmatpush1.msra.mxu0 0.0
      %1732 = vmatprep.subr.mxu0 0.0
      %1733 = vmatpush1.msra.mxu0 0.0
      %1734 = vmatprep.subr.mxu0 0.0
      %1735 = vmatpush1.msra.mxu0 0.0
      %1736 = vmatprep.subr.mxu0 0.0
      %1737 = vmatpush1.msra.mxu0 0.0
      %1738 = vmatprep.subr.mxu0 0.0
      %1739 = vmatpush1.msra.mxu0 0.0
      %1740 = vmatprep.subr.mxu0 0.0
      %1741 = vmatpush1.msra.mxu0 0.0
      %1742 = vmatprep.subr.mxu0 0.0
      %1743 = vmatpush1.msra.mxu0 0.0
      %1744 = vmatprep.subr.mxu0 0.0
      %1745 = vmatpush1.msra.mxu0 0.0
      %1746 = vmatprep.subr.mxu0 0.0
      %1747 = vmatpush1.msra.mxu0 0.0
      %1748 = vmatprep.subr.mxu0 0.0
      %1749 = vmatpush1.msra.mxu0 0.0
      %1750 = vmatprep.subr.mxu0 0.0
      %1751 = vmatpush1.msra.mxu0 0.0
      %1752 = vmatprep.subr.mxu0 0.0
      %1753 = vmatpush1.msra.mxu0 0.0
      %1754 = vmatprep.subr.mxu0 0.0
      %1755 = vmatpush1.msra.mxu0 0.0
      %1756 = vmatprep.subr.mxu0 0.0
      %1757 = vmatpush1.msra.mxu0 0.0
      %1758 = vmatprep.subr.mxu0 0.0
      %1759 = vmatpush1.msra.mxu0 0.0
      %1760 = vmatprep.subr.mxu0 0.0
      %1761 = vmatpush1.msra.mxu0 0.0
      %1762 = vmatprep.subr.mxu0 0.0
      %1763 = vmatpush1.msra.mxu0 0.0
      %1764 = vmatprep.subr.mxu0 0.0
      %1765 = vmatpush1.msra.mxu0 0.0
      %1766 = vmatprep.subr.mxu0 0.0
      %1767 = vmatpush1.msra.mxu0 0.0
      %1768 = vmatprep.subr.mxu0 0.0
      %1769 = vmatpush1.msra.mxu0 0.0
      %1770 = vmatprep.subr.mxu0 0.0
      %1771 = vmatpush1.msra.mxu0 0.0
      %1772 = vmatprep.mubr.f32.mxu0 0.0
      %1773 = vmatmul.mubr.f32.gmra.mrb[0].mxu0 %v1703
      %v1774 = vpop.f32.mrb[0].mxu0
      %v1775 = vadd.f32 %v1694, %v1774
      %v1776 = vpop.f32.mrb[0].mxu0
      %1777 = vmatprep.mubr.f32.mxu0 0.0
      %1778 = vmatmul.mubr.f32.gmra.mrb[0].mxu0 %v1706
      %v1779 = vpop.f32.mrb[0].mxu0
      %v1780 = vadd.f32 %v1699, %v1779
      %v1781 = vpop.f32.mrb[0].mxu0
      %1782 = vdwg.mxu0
      %1783 = vrot.lane.b32.xlu0 %v930, 112
      %v1784 = vpop.permute.xlu0 %1783
      %1785 = vrot.lane.b32.xlu0 %v930, 80
      %v1786 = vpop.permute.xlu0 %1785
      %v1787 = vsel %vm943, %v1784, 0
      %v1789 = vsel %vm943, %v1786, 0
      %1791 = vmatprep.subr.mxu0 0.0
      %1792 = vmatpush1.xpose.msra.mxu0 %v1789
      %1793 = vmatprep.subr.mxu0 0.0
      %1794 = vmatpush1.xpose.msra.mxu0 0.0
      %1795 = vmatprep.subr.mxu0 0.0
      %1796 = vmatpush1.xpose.msra.mxu0 0.0
      %1797 = vmatprep.subr.mxu0 0.0
      %1798 = vmatpush1.xpose.msra.mxu0 0.0
      %1799 = vmatprep.subr.mxu0 0.0
      %1800 = vmatpush1.xpose.msra.mxu0 0.0
      %1801 = vmatprep.subr.mxu0 0.0
      %1802 = vmatpush1.xpose.msra.mxu0 0.0
      %1803 = vmatprep.subr.mxu0 0.0
      %1804 = vmatpush1.xpose.msra.mxu0 0.0
      %1805 = vmatprep.subr.mxu0 0.0
      %1806 = vmatpush1.xpose.msra.mxu0 0.0
      %1807 = vmatprep.subr.mxu0 0.0
      %1808 = vmatpush1.xpose.msra.mxu0 0.0
      %1809 = vmatprep.subr.mxu0 0.0
      %1810 = vmatpush1.xpose.msra.mxu0 0.0
      %1811 = vmatprep.subr.mxu0 0.0
      %1812 = vmatpush1.xpose.msra.mxu0 0.0
      %1813 = vmatprep.subr.mxu0 0.0
      %1814 = vmatpush1.xpose.msra.mxu0 0.0
      %1815 = vmatprep.subr.mxu0 0.0
      %1816 = vmatpush1.xpose.msra.mxu0 0.0
      %1817 = vmatprep.subr.mxu0 0.0
      %1818 = vmatpush1.xpose.msra.mxu0 0.0
      %1819 = vmatprep.subr.mxu0 0.0
      %1820 = vmatpush1.xpose.msra.mxu0 0.0
      %1821 = vmatprep.subr.mxu0 0.0
      %1822 = vmatpush1.xpose.msra.mxu0 0.0
      %1823 = vmatprep.subr.mxu0 0.0
      %1824 = vmatpush1.xpose.msra.mxu0 0.0
      %1825 = vmatprep.subr.mxu0 0.0
      %1826 = vmatpush1.xpose.msra.mxu0 0.0
      %1827 = vmatprep.subr.mxu0 0.0
      %1828 = vmatpush1.xpose.msra.mxu0 0.0
      %1829 = vmatprep.subr.mxu0 0.0
      %1830 = vmatpush1.xpose.msra.mxu0 0.0
      %1831 = vmatprep.subr.mxu0 0.0
      %1832 = vmatpush1.xpose.msra.mxu0 0.0
      %1833 = vmatprep.subr.mxu0 0.0
      %1834 = vmatpush1.xpose.msra.mxu0 0.0
      %1835 = vmatprep.subr.mxu0 0.0
      %1836 = vmatpush1.xpose.msra.mxu0 0.0
      %1837 = vmatprep.subr.mxu0 0.0
      %1838 = vmatpush1.xpose.msra.mxu0 0.0
      %1839 = vmatprep.subr.mxu0 0.0
      %1840 = vmatpush1.xpose.msra.mxu0 0.0
      %1841 = vmatprep.subr.mxu0 0.0
      %1842 = vmatpush1.xpose.msra.mxu0 0.0
      %1843 = vmatprep.subr.mxu0 0.0
      %1844 = vmatpush1.xpose.msra.mxu0 0.0
      %1845 = vmatprep.subr.mxu0 0.0
      %1846 = vmatpush1.xpose.msra.mxu0 0.0
      %1847 = vmatprep.subr.mxu0 0.0
      %1848 = vmatpush1.xpose.msra.mxu0 0.0
      %1849 = vmatprep.subr.mxu0 0.0
      %1850 = vmatpush1.xpose.msra.mxu0 0.0
      %1851 = vmatprep.subr.mxu0 0.0
      %1852 = vmatpush1.xpose.msra.mxu0 0.0
      %1853 = vmatprep.subr.mxu0 0.0
      %1854 = vmatpush1.xpose.msra.mxu0 0.0
      %1855 = vmatprep.mubr.f32.mxu0 0.0
      %1856 = vmatmul.mubr.f32.gmra.mrb[0].mxu0 %v1787
      %v1857 = vpop.f32.mrb[0].mxu0
      %v1858 = vadd.f32 0.0, %v1857
      %v1859 = vpop.f32.mrb[0].mxu0
      %1860 = vdwg.mxu0
      %1861 = vrot.lane.b32.xlu0 %v935, 112
      %v1862 = vpop.permute.xlu0 %1861
      %1863 = vrot.lane.b32.xlu0 %v935, 80
      %v1864 = vpop.permute.xlu0 %1863
      %v1865 = vsel %vm943, %v1862, 0
      %v1867 = vsel %vm943, %v1864, 0
      %1869 = vmatprep.subr.mxu0 0.0
      %1870 = vmatpush1.xpose.msra.mxu0 %v1867
      %1871 = vmatprep.subr.mxu0 0.0
      %1872 = vmatpush1.xpose.msra.mxu0 0.0
      %1873 = vmatprep.subr.mxu0 0.0
      %1874 = vmatpush1.xpose.msra.mxu0 0.0
      %1875 = vmatprep.subr.mxu0 0.0
      %1876 = vmatpush1.xpose.msra.mxu0 0.0
      %1877 = vmatprep.subr.mxu0 0.0
      %1878 = vmatpush1.xpose.msra.mxu0 0.0
      %1879 = vmatprep.subr.mxu0 0.0
      %1880 = vmatpush1.xpose.msra.mxu0 0.0
      %1881 = vmatprep.subr.mxu0 0.0
      %1882 = vmatpush1.xpose.msra.mxu0 0.0
      %1883 = vmatprep.subr.mxu0 0.0
      %1884 = vmatpush1.xpose.msra.mxu0 0.0
      %1885 = vmatprep.subr.mxu0 0.0
      %1886 = vmatpush1.xpose.msra.mxu0 0.0
      %1887 = vmatprep.subr.mxu0 0.0
      %1888 = vmatpush1.xpose.msra.mxu0 0.0
      %1889 = vmatprep.subr.mxu0 0.0
      %1890 = vmatpush1.xpose.msra.mxu0 0.0
      %1891 = vmatprep.subr.mxu0 0.0
      %1892 = vmatpush1.xpose.msra.mxu0 0.0
      %1893 = vmatprep.subr.mxu0 0.0
      %1894 = vmatpush1.xpose.msra.mxu0 0.0
      %1895 = vmatprep.subr.mxu0 0.0
      %1896 = vmatpush1.xpose.msra.mxu0 0.0
      %1897 = vmatprep.subr.mxu0 0.0
      %1898 = vmatpush1.xpose.msra.mxu0 0.0
      %1899 = vmatprep.subr.mxu0 0.0
      %1900 = vmatpush1.xpose.msra.mxu0 0.0
      %1901 = vmatprep.subr.mxu0 0.0
      %1902 = vmatpush1.xpose.msra.mxu0 0.0
      %1903 = vmatprep.subr.mxu0 0.0
      %1904 = vmatpush1.xpose.msra.mxu0 0.0
      %1905 = vmatprep.subr.mxu0 0.0
      %1906 = vmatpush1.xpose.msra.mxu0 0.0
      %1907 = vmatprep.subr.mxu0 0.0
      %1908 = vmatpush1.xpose.msra.mxu0 0.0
      %1909 = vmatprep.subr.mxu0 0.0
      %1910 = vmatpush1.xpose.msra.mxu0 0.0
      %1911 = vmatprep.subr.mxu0 0.0
      %1912 = vmatpush1.xpose.msra.mxu0 0.0
      %1913 = vmatprep.subr.mxu0 0.0
      %1914 = vmatpush1.xpose.msra.mxu0 0.0
      %1915 = vmatprep.subr.mxu0 0.0
      %1916 = vmatpush1.xpose.msra.mxu0 0.0
      %1917 = vmatprep.subr.mxu0 0.0
      %1918 = vmatpush1.xpose.msra.mxu0 0.0
      %1919 = vmatprep.subr.mxu0 0.0
      %1920 = vmatpush1.xpose.msra.mxu0 0.0
      %1921 = vmatprep.subr.mxu0 0.0
      %1922 = vmatpush1.xpose.msra.mxu0 0.0
      %1923 = vmatprep.subr.mxu0 0.0
      %1924 = vmatpush1.xpose.msra.mxu0 0.0
      %1925 = vmatprep.subr.mxu0 0.0
      %1926 = vmatpush1.xpose.msra.mxu0 0.0
      %1927 = vmatprep.subr.mxu0 0.0
      %1928 = vmatpush1.xpose.msra.mxu0 0.0
      %1929 = vmatprep.subr.mxu0 0.0
      %1930 = vmatpush1.xpose.msra.mxu0 0.0
      %1931 = vmatprep.subr.mxu0 0.0
      %1932 = vmatpush1.xpose.msra.mxu0 0.0
      %1933 = vmatprep.mubr.f32.mxu0 0.0
      %1934 = vmatmul.mubr.f32.gmra.mrb[0].mxu0 %v1865
      %v1935 = vpop.f32.mrb[0].mxu0
      %v1936 = vadd.f32 0.0, %v1935
      %v1937 = vpop.f32.mrb[0].mxu0
      %1938 = vdwg.mxu0
      %v1939 = vmul.f32 %v1858, 0.35355338
      %v1940 = vmul.f32 %v1936, 0.35355338
      %v1941 = vadd.f32 %v1939, %v1102
      %v1942 = vadd.f32 %v1940, %v1106
      %v1943 = vsel %vm943, %v1941, -inf
      %1944 = vmax.xlane.f32.xlu0 %v1943
      %v1945 = vpop.xlane.xlu0 %1944
      %v1946 = vsel %vm943, %v1942, -inf
      %1947 = vmax.xlane.f32.xlu0 %v1946
      %v1948 = vpop.xlane.xlu0 %1947
      %v1949 = vsub.f32 %v1941, %v1945
      %v1950 = vsub.f32 %v1942, %v1948
      %v1951 = vmul.f32 %v1949, 1.442695
      %v1952 = vpow.pop %v1951
      %v1953 = vmul.f32 %v1950, 1.442695
      %v1954 = vpow.pop %v1953
      %v1955 = vsel %vm943, %v1952, 0.0
      %1956 = vadd.xlane.f32.xlu0 %v1955
      %v1957 = vpop.xlane.xlu0 %1956
      %v1958 = vsel %vm943, %v1954, 0.0
      %1959 = vadd.xlane.f32.xlu0 %v1958
      %v1960 = vpop.xlane.xlu0 %1959
      %v1961 = vrcp.pop %v1957
      %v1962 = vrcp.pop %v1960
      %v1963 = vmul.f32 %v1952, %v1961
      %v1964 = vmul.f32 %v1954, %v1962
      %1965 = vrot.lane.b32.xlu0 %v930, 48
      %v1966 = vpop.permute.xlu0 %1965
      %v1969 = vsel %vm943, %v1963, 0
      %1971 = vmatprep.subr.mxu0 0.0
      %1972 = vmatpush1.msra.mxu0 %v1966
      %1973 = vmatprep.subr.mxu0 0.0
      %1974 = vmatpush1.msra.mxu0 0.0
      %1975 = vmatprep.subr.mxu0 0.0
      %1976 = vmatpush1.msra.mxu0 0.0
      %1977 = vmatprep.subr.mxu0 0.0
      %1978 = vmatpush1.msra.mxu0 0.0
      %1979 = vmatprep.subr.mxu0 0.0
      %1980 = vmatpush1.msra.mxu0 0.0
      %1981 = vmatprep.subr.mxu0 0.0
      %1982 = vmatpush1.msra.mxu0 0.0
      %1983 = vmatprep.subr.mxu0 0.0
      %1984 = vmatpush1.msra.mxu0 0.0
      %1985 = vmatprep.subr.mxu0 0.0
      %1986 = vmatpush1.msra.mxu0 0.0
      %1987 = vmatprep.subr.mxu0 0.0
      %1988 = vmatpush1.msra.mxu0 0.0
      %1989 = vmatprep.subr.mxu0 0.0
      %1990 = vmatpush1.msra.mxu0 0.0
      %1991 = vmatprep.subr.mxu0 0.0
      %1992 = vmatpush1.msra.mxu0 0.0
      %1993 = vmatprep.subr.mxu0 0.0
      %1994 = vmatpush1.msra.mxu0 0.0
      %1995 = vmatprep.subr.mxu0 0.0
      %1996 = vmatpush1.msra.mxu0 0.0
      %1997 = vmatprep.subr.mxu0 0.0
      %1998 = vmatpush1.msra.mxu0 0.0
      %1999 = vmatprep.subr.mxu0 0.0
      %2000 = vmatpush1.msra.mxu0 0.0
      %2001 = vmatprep.subr.mxu0 0.0
      %2002 = vmatpush1.msra.mxu0 0.0
      %2003 = vmatprep.subr.mxu0 0.0
      %2004 = vmatpush1.msra.mxu0 0.0
      %2005 = vmatprep.subr.mxu0 0.0
      %2006 = vmatpush1.msra.mxu0 0.0
      %2007 = vmatprep.subr.mxu0 0.0
      %2008 = vmatpush1.msra.mxu0 0.0
      %2009 = vmatprep.subr.mxu0 0.0
      %2010 = vmatpush1.msra.mxu0 0.0
      %2011 = vmatprep.subr.mxu0 0.0
      %2012 = vmatpush1.msra.mxu0 0.0
      %2013 = vmatprep.subr.mxu0 0.0
      %2014 = vmatpush1.msra.mxu0 0.0
      %2015 = vmatprep.subr.mxu0 0.0
      %2016 = vmatpush1.msra.mxu0 0.0
      %2017 = vmatprep.subr.mxu0 0.0
      %2018 = vmatpush1.msra.mxu0 0.0
      %2019 = vmatprep.subr.mxu0 0.0
      %2020 = vmatpush1.msra.mxu0 0.0
      %2021 = vmatprep.subr.mxu0 0.0
      %2022 = vmatpush1.msra.mxu0 0.0
      %2023 = vmatprep.subr.mxu0 0.0
      %2024 = vmatpush1.msra.mxu0 0.0
      %2025 = vmatprep.subr.mxu0 0.0
      %2026 = vmatpush1.msra.mxu0 0.0
      %2027 = vmatprep.subr.mxu0 0.0
      %2028 = vmatpush1.msra.mxu0 0.0
      %2029 = vmatprep.subr.mxu0 0.0
      %2030 = vmatpush1.msra.mxu0 0.0
      %2031 = vmatprep.subr.mxu0 0.0
      %2032 = vmatpush1.msra.mxu0 0.0
      %2033 = vmatprep.subr.mxu0 0.0
      %2034 = vmatpush1.msra.mxu0 0.0
      %2035 = vmatprep.mubr.f32.mxu0 0.0
      %2036 = vmatmul.mubr.f32.gmra.mrb[0].mxu0 %v1969
      %v2037 = vpop.f32.mrb[0].mxu0
      %v2038 = vadd.f32 0.0, %v2037
      %v2039 = vpop.f32.mrb[0].mxu0
      %2040 = vdwg.mxu0
      %2041 = vrot.lane.b32.xlu0 %v935, 48
      %v2042 = vpop.permute.xlu0 %2041
      %v2045 = vsel %vm943, %v1964, 0
      %2047 = vmatprep.subr.mxu0 0.0
      %2048 = vmatpush1.msra.mxu0 %v2042
      %2049 = vmatprep.subr.mxu0 0.0
      %2050 = vmatpush1.msra.mxu0 0.0
      %2051 = vmatprep.subr.mxu0 0.0
      %2052 = vmatpush1.msra.mxu0 0.0
      %2053 = vmatprep.subr.mxu0 0.0
      %2054 = vmatpush1.msra.mxu0 0.0
      %2055 = vmatprep.subr.mxu0 0.0
      %2056 = vmatpush1.msra.mxu0 0.0
      %2057 = vmatprep.subr.mxu0 0.0
      %2058 = vmatpush1.msra.mxu0 0.0
      %2059 = vmatprep.subr.mxu0 0.0
      %2060 = vmatpush1.msra.mxu0 0.0
      %2061 = vmatprep.subr.mxu0 0.0
      %2062 = vmatpush1.msra.mxu0 0.0
      %2063 = vmatprep.subr.mxu0 0.0
      %2064 = vmatpush1.msra.mxu0 0.0
      %2065 = vmatprep.subr.mxu0 0.0
      %2066 = vmatpush1.msra.mxu0 0.0
      %2067 = vmatprep.subr.mxu0 0.0
      %2068 = vmatpush1.msra.mxu0 0.0
      %2069 = vmatprep.subr.mxu0 0.0
      %2070 = vmatpush1.msra.mxu0 0.0
      %2071 = vmatprep.subr.mxu0 0.0
      %2072 = vmatpush1.msra.mxu0 0.0
      %2073 = vmatprep.subr.mxu0 0.0
      %2074 = vmatpush1.msra.mxu0 0.0
      %2075 = vmatprep.subr.mxu0 0.0
      %2076 = vmatpush1.msra.mxu0 0.0
      %2077 = vmatprep.subr.mxu0 0.0
      %2078 = vmatpush1.msra.mxu0 0.0
      %2079 = vmatprep.subr.mxu0 0.0
      %2080 = vmatpush1.msra.mxu0 0.0
      %2081 = vmatprep.subr.mxu0 0.0
      %2082 = vmatpush1.msra.mxu0 0.0
      %2083 = vmatprep.subr.mxu0 0.0
      %2084 = vmatpush1.msra.mxu0 0.0
      %2085 = vmatprep.subr.mxu0 0.0
      %2086 = vmatpush1.msra.mxu0 0.0
      %2087 = vmatprep.subr.mxu0 0.0
      %2088 = vmatpush1.msra.mxu0 0.0
      %2089 = vmatprep.subr.mxu0 0.0
      %2090 = vmatpush1.msra.mxu0 0.0
      %2091 = vmatprep.subr.mxu0 0.0
      %2092 = vmatpush1.msra.mxu0 0.0
      %2093 = vmatprep.subr.mxu0 0.0
      %2094 = vmatpush1.msra.mxu0 0.0
      %2095 = vmatprep.subr.mxu0 0.0
      %2096 = vmatpush1.msra.mxu0 0.0
      %2097 = vmatprep.subr.mxu0 0.0
      %2098 = vmatpush1.msra.mxu0 0.0
      %2099 = vmatprep.subr.mxu0 0.0
      %2100 = vmatpush1.msra.mxu0 0.0
      %2101 = vmatprep.subr.mxu0 0.0
      %2102 = vmatpush1.msra.mxu0 0.0
      %2103 = vmatprep.subr.mxu0 0.0
      %2104 = vmatpush1.msra.mxu0 0.0
      %2105 = vmatprep.subr.mxu0 0.0
      %2106 = vmatpush1.msra.mxu0 0.0
      %2107 = vmatprep.subr.mxu0 0.0
      %2108 = vmatpush1.msra.mxu0 0.0
      %2109 = vmatprep.subr.mxu0 0.0
      %2110 = vmatpush1.msra.mxu0 0.0
      %2111 = vmatprep.mubr.f32.mxu0 0.0
      %2112 = vmatmul.mubr.f32.gmra.mrb[0].mxu0 %v2045
      %v2113 = vpop.f32.mrb[0].mxu0
      %v2114 = vadd.f32 0.0, %v2113
      %v2115 = vpop.f32.mrb[0].mxu0
      %2116 = vdwg.mxu0
      %v2117 = vld [vmem:[%s757 + $0x10] sm:$0xff]
      %v2119 = vsel %vm943, %v2038, 0
      %v2122 = vsel %vm943, %v2114, 0
      %2124 = vmatprep.subr.mxu0 0.0
      %2125 = vmatpush1.msra.mxu0 %v2117
      %2126 = vmatprep.subr.mxu0 0.0
      %2127 = vmatpush1.msra.mxu0 0.0
      %2128 = vmatprep.subr.mxu0 0.0
      %2129 = vmatpush1.msra.mxu0 0.0
      %2130 = vmatprep.subr.mxu0 0.0
      %2131 = vmatpush1.msra.mxu0 0.0
      %2132 = vmatprep.subr.mxu0 0.0
      %2133 = vmatpush1.msra.mxu0 0.0
      %2134 = vmatprep.subr.mxu0 0.0
      %2135 = vmatpush1.msra.mxu0 0.0
      %2136 = vmatprep.subr.mxu0 0.0
      %2137 = vmatpush1.msra.mxu0 0.0
      %2138 = vmatprep.subr.mxu0 0.0
      %2139 = vmatpush1.msra.mxu0 0.0
      %2140 = vmatprep.subr.mxu0 0.0
      %2141 = vmatpush1.msra.mxu0 0.0
      %2142 = vmatprep.subr.mxu0 0.0
      %2143 = vmatpush1.msra.mxu0 0.0
      %2144 = vmatprep.subr.mxu0 0.0
      %2145 = vmatpush1.msra.mxu0 0.0
      %2146 = vmatprep.subr.mxu0 0.0
      %2147 = vmatpush1.msra.mxu0 0.0
      %2148 = vmatprep.subr.mxu0 0.0
      %2149 = vmatpush1.msra.mxu0 0.0
      %2150 = vmatprep.subr.mxu0 0.0
      %2151 = vmatpush1.msra.mxu0 0.0
      %2152 = vmatprep.subr.mxu0 0.0
      %2153 = vmatpush1.msra.mxu0 0.0
      %2154 = vmatprep.subr.mxu0 0.0
      %2155 = vmatpush1.msra.mxu0 0.0
      %2156 = vmatprep.subr.mxu0 0.0
      %2157 = vmatpush1.msra.mxu0 0.0
      %2158 = vmatprep.subr.mxu0 0.0
      %2159 = vmatpush1.msra.mxu0 0.0
      %2160 = vmatprep.subr.mxu0 0.0
      %2161 = vmatpush1.msra.mxu0 0.0
      %2162 = vmatprep.subr.mxu0 0.0
      %2163 = vmatpush1.msra.mxu0 0.0
      %2164 = vmatprep.subr.mxu0 0.0
      %2165 = vmatpush1.msra.mxu0 0.0
      %2166 = vmatprep.subr.mxu0 0.0
      %2167 = vmatpush1.msra.mxu0 0.0
      %2168 = vmatprep.subr.mxu0 0.0
      %2169 = vmatpush1.msra.mxu0 0.0
      %2170 = vmatprep.subr.mxu0 0.0
      %2171 = vmatpush1.msra.mxu0 0.0
      %2172 = vmatprep.subr.mxu0 0.0
      %2173 = vmatpush1.msra.mxu0 0.0
      %2174 = vmatprep.subr.mxu0 0.0
      %2175 = vmatpush1.msra.mxu0 0.0
      %2176 = vmatprep.subr.mxu0 0.0
      %2177 = vmatpush1.msra.mxu0 0.0
      %2178 = vmatprep.subr.mxu0 0.0
      %2179 = vmatpush1.msra.mxu0 0.0
      %2180 = vmatprep.subr.mxu0 0.0
      %2181 = vmatpush1.msra.mxu0 0.0
      %2182 = vmatprep.subr.mxu0 0.0
      %2183 = vmatpush1.msra.mxu0 0.0
      %2184 = vmatprep.subr.mxu0 0.0
      %2185 = vmatpush1.msra.mxu0 0.0
      %2186 = vmatprep.subr.mxu0 0.0
      %2187 = vmatpush1.msra.mxu0 0.0
      %2188 = vmatprep.mubr.f32.mxu0 0.0
      %2189 = vmatmul.mubr.f32.gmra.mrb[0].mxu0 %v2119
      %v2190 = vpop.f32.mrb[0].mxu0
      %v2191 = vadd.f32 0.0, %v2190
      %v2192 = vpop.f32.mrb[0].mxu0
      %2193 = vmatprep.mubr.f32.mxu0 0.0
      %2194 = vmatmul.mubr.f32.gmra.mrb[0].mxu0 %v2122
      %v2195 = vpop.f32.mrb[0].mxu0
      %v2196 = vadd.f32 0.0, %v2195
      %v2197 = vpop.f32.mrb[0].mxu0
      %2198 = vdwg.mxu0
      %v2199 = vadd.f32 %v1775, %v2191
      %v2200 = vadd.f32 %v1780, %v2196
      %2201 = vrot.lane.b32.xlu0 %v930, 104
      %v2202 = vpop.permute.xlu0 %2201
      %2203 = vrot.lane.b32.xlu0 %v930, 72
      %v2204 = vpop.permute.xlu0 %2203
      %v2205 = vsel %vm943, %v2202, 0
      %v2207 = vsel %vm943, %v2204, 0
      %2209 = vmatprep.subr.mxu0 0.0
      %2210 = vmatpush1.xpose.msra.mxu0 %v2207
      %2211 = vmatprep.subr.mxu0 0.0
      %2212 = vmatpush1.xpose.msra.mxu0 0.0
      %2213 = vmatprep.subr.mxu0 0.0
      %2214 = vmatpush1.xpose.msra.mxu0 0.0
      %2215 = vmatprep.subr.mxu0 0.0
      %2216 = vmatpush1.xpose.msra.mxu0 0.0
      %2217 = vmatprep.subr.mxu0 0.0
      %2218 = vmatpush1.xpose.msra.mxu0 0.0
      %2219 = vmatprep.subr.mxu0 0.0
      %2220 = vmatpush1.xpose.msra.mxu0 0.0
      %2221 = vmatprep.subr.mxu0 0.0
      %2222 = vmatpush1.xpose.msra.mxu0 0.0
      %2223 = vmatprep.subr.mxu0 0.0
      %2224 = vmatpush1.xpose.msra.mxu0 0.0
      %2225 = vmatprep.subr.mxu0 0.0
      %2226 = vmatpush1.xpose.msra.mxu0 0.0
      %2227 = vmatprep.subr.mxu0 0.0
      %2228 = vmatpush1.xpose.msra.mxu0 0.0
      %2229 = vmatprep.subr.mxu0 0.0
      %2230 = vmatpush1.xpose.msra.mxu0 0.0
      %2231 = vmatprep.subr.mxu0 0.0
      %2232 = vmatpush1.xpose.msra.mxu0 0.0
      %2233 = vmatprep.subr.mxu0 0.0
      %2234 = vmatpush1.xpose.msra.mxu0 0.0
      %2235 = vmatprep.subr.mxu0 0.0
      %2236 = vmatpush1.xpose.msra.mxu0 0.0
      %2237 = vmatprep.subr.mxu0 0.0
      %2238 = vmatpush1.xpose.msra.mxu0 0.0
      %2239 = vmatprep.subr.mxu0 0.0
      %2240 = vmatpush1.xpose.msra.mxu0 0.0
      %2241 = vmatprep.subr.mxu0 0.0
      %2242 = vmatpush1.xpose.msra.mxu0 0.0
      %2243 = vmatprep.subr.mxu0 0.0
      %2244 = vmatpush1.xpose.msra.mxu0 0.0
      %2245 = vmatprep.subr.mxu0 0.0
      %2246 = vmatpush1.xpose.msra.mxu0 0.0
      %2247 = vmatprep.subr.mxu0 0.0
      %2248 = vmatpush1.xpose.msra.mxu0 0.0
      %2249 = vmatprep.subr.mxu0 0.0
      %2250 = vmatpush1.xpose.msra.mxu0 0.0
      %2251 = vmatprep.subr.mxu0 0.0
      %2252 = vmatpush1.xpose.msra.mxu0 0.0
      %2253 = vmatprep.subr.mxu0 0.0
      %2254 = vmatpush1.xpose.msra.mxu0 0.0
      %2255 = vmatprep.subr.mxu0 0.0
      %2256 = vmatpush1.xpose.msra.mxu0 0.0
      %2257 = vmatprep.subr.mxu0 0.0
      %2258 = vmatpush1.xpose.msra.mxu0 0.0
      %2259 = vmatprep.subr.mxu0 0.0
      %2260 = vmatpush1.xpose.msra.mxu0 0.0
      %2261 = vmatprep.subr.mxu0 0.0
      %2262 = vmatpush1.xpose.msra.mxu0 0.0
      %2263 = vmatprep.subr.mxu0 0.0
      %2264 = vmatpush1.xpose.msra.mxu0 0.0
      %2265 = vmatprep.subr.mxu0 0.0
      %2266 = vmatpush1.xpose.msra.mxu0 0.0
      %2267 = vmatprep.subr.mxu0 0.0
      %2268 = vmatpush1.xpose.msra.mxu0 0.0
      %2269 = vmatprep.subr.mxu0 0.0
      %2270 = vmatpush1.xpose.msra.mxu0 0.0
      %2271 = vmatprep.subr.mxu0 0.0
      %2272 = vmatpush1.xpose.msra.mxu0 0.0
      %2273 = vmatprep.mubr.f32.mxu0 0.0
      %2274 = vmatmul.mubr.f32.gmra.mrb[0].mxu0 %v2205
      %v2275 = vpop.f32.mrb[0].mxu0
      %v2276 = vadd.f32 0.0, %v2275
      %v2277 = vpop.f32.mrb[0].mxu0
      %2278 = vdwg.mxu0
      %2279 = vrot.lane.b32.xlu0 %v935, 104
      %v2280 = vpop.permute.xlu0 %2279
      %2281 = vrot.lane.b32.xlu0 %v935, 72
      %v2282 = vpop.permute.xlu0 %2281
      %v2283 = vsel %vm943, %v2280, 0
      %v2285 = vsel %vm943, %v2282, 0
      %2287 = vmatprep.subr.mxu0 0.0
      %2288 = vmatpush1.xpose.msra.mxu0 %v2285
      %2289 = vmatprep.subr.mxu0 0.0
      %2290 = vmatpush1.xpose.msra.mxu0 0.0
      %2291 = vmatprep.subr.mxu0 0.0
      %2292 = vmatpush1.xpose.msra.mxu0 0.0
      %2293 = vmatprep.subr.mxu0 0.0
      %2294 = vmatpush1.xpose.msra.mxu0 0.0
      %2295 = vmatprep.subr.mxu0 0.0
      %2296 = vmatpush1.xpose.msra.mxu0 0.0
      %2297 = vmatprep.subr.mxu0 0.0
      %2298 = vmatpush1.xpose.msra.mxu0 0.0
      %2299 = vmatprep.subr.mxu0 0.0
      %2300 = vmatpush1.xpose.msra.mxu0 0.0
      %2301 = vmatprep.subr.mxu0 0.0
      %2302 = vmatpush1.xpose.msra.mxu0 0.0
      %2303 = vmatprep.subr.mxu0 0.0
      %2304 = vmatpush1.xpose.msra.mxu0 0.0
      %2305 = vmatprep.subr.mxu0 0.0
      %2306 = vmatpush1.xpose.msra.mxu0 0.0
      %2307 = vmatprep.subr.mxu0 0.0
      %2308 = vmatpush1.xpose.msra.mxu0 0.0
      %2309 = vmatprep.subr.mxu0 0.0
      %2310 = vmatpush1.xpose.msra.mxu0 0.0
      %2311 = vmatprep.subr.mxu0 0.0
      %2312 = vmatpush1.xpose.msra.mxu0 0.0
      %2313 = vmatprep.subr.mxu0 0.0
      %2314 = vmatpush1.xpose.msra.mxu0 0.0
      %2315 = vmatprep.subr.mxu0 0.0
      %2316 = vmatpush1.xpose.msra.mxu0 0.0
      %2317 = vmatprep.subr.mxu0 0.0
      %2318 = vmatpush1.xpose.msra.mxu0 0.0
      %2319 = vmatprep.subr.mxu0 0.0
      %2320 = vmatpush1.xpose.msra.mxu0 0.0
      %2321 = vmatprep.subr.mxu0 0.0
      %2322 = vmatpush1.xpose.msra.mxu0 0.0
      %2323 = vmatprep.subr.mxu0 0.0
      %2324 = vmatpush1.xpose.msra.mxu0 0.0
      %2325 = vmatprep.subr.mxu0 0.0
      %2326 = vmatpush1.xpose.msra.mxu0 0.0
      %2327 = vmatprep.subr.mxu0 0.0
      %2328 = vmatpush1.xpose.msra.mxu0 0.0
      %2329 = vmatprep.subr.mxu0 0.0
      %2330 = vmatpush1.xpose.msra.mxu0 0.0
      %2331 = vmatprep.subr.mxu0 0.0
      %2332 = vmatpush1.xpose.msra.mxu0 0.0
      %2333 = vmatprep.subr.mxu0 0.0
      %2334 = vmatpush1.xpose.msra.mxu0 0.0
      %2335 = vmatprep.subr.mxu0 0.0
      %2336 = vmatpush1.xpose.msra.mxu0 0.0
      %2337 = vmatprep.subr.mxu0 0.0
      %2338 = vmatpush1.xpose.msra.mxu0 0.0
      %2339 = vmatprep.subr.mxu0 0.0
      %2340 = vmatpush1.xpose.msra.mxu0 0.0
      %2341 = vmatprep.subr.mxu0 0.0
      %2342 = vmatpush1.xpose.msra.mxu0 0.0
      %2343 = vmatprep.subr.mxu0 0.0
      %2344 = vmatpush1.xpose.msra.mxu0 0.0
      %2345 = vmatprep.subr.mxu0 0.0
      %2346 = vmatpush1.xpose.msra.mxu0 0.0
      %2347 = vmatprep.subr.mxu0 0.0
      %2348 = vmatpush1.xpose.msra.mxu0 0.0
      %2349 = vmatprep.subr.mxu0 0.0
      %2350 = vmatpush1.xpose.msra.mxu0 0.0
      %2351 = vmatprep.mubr.f32.mxu0 0.0
      %2352 = vmatmul.mubr.f32.gmra.mrb[0].mxu0 %v2283
      %v2353 = vpop.f32.mrb[0].mxu0
      %v2354 = vadd.f32 0.0, %v2353
      %v2355 = vpop.f32.mrb[0].mxu0
      %2356 = vdwg.mxu0
      %v2357 = vmul.f32 %v2276, 0.35355338
      %v2358 = vmul.f32 %v2354, 0.35355338
      %v2359 = vadd.f32 %v2357, %v1102
      %v2360 = vadd.f32 %v2358, %v1106
      %v2361 = vsel %vm943, %v2359, -inf
      %2362 = vmax.xlane.f32.xlu0 %v2361
      %v2363 = vpop.xlane.xlu0 %2362
      %v2364 = vsel %vm943, %v2360, -inf
      %2365 = vmax.xlane.f32.xlu0 %v2364
      %v2366 = vpop.xlane.xlu0 %2365
      %v2367 = vsub.f32 %v2359, %v2363
      %v2368 = vsub.f32 %v2360, %v2366
      %v2369 = vmul.f32 %v2367, 1.442695
      %v2370 = vpow.pop %v2369
      %v2371 = vmul.f32 %v2368, 1.442695
      %v2372 = vpow.pop %v2371
      %v2373 = vsel %vm943, %v2370, 0.0
      %2374 = vadd.xlane.f32.xlu0 %v2373
      %v2375 = vpop.xlane.xlu0 %2374
      %v2376 = vsel %vm943, %v2372, 0.0
      %2377 = vadd.xlane.f32.xlu0 %v2376
      %v2378 = vpop.xlane.xlu0 %2377
      %v2379 = vrcp.pop %v2375
      %v2380 = vrcp.pop %v2378
      %v2381 = vmul.f32 %v2370, %v2379
      %v2382 = vmul.f32 %v2372, %v2380
      %2383 = vrot.lane.b32.xlu0 %v930, 40
      %v2384 = vpop.permute.xlu0 %2383
      %v2387 = vsel %vm943, %v2381, 0
      %2389 = vmatprep.subr.mxu0 0.0
      %2390 = vmatpush1.msra.mxu0 %v2384
      %2391 = vmatprep.subr.mxu0 0.0
      %2392 = vmatpush1.msra.mxu0 0.0
      %2393 = vmatprep.subr.mxu0 0.0
      %2394 = vmatpush1.msra.mxu0 0.0
      %2395 = vmatprep.subr.mxu0 0.0
      %2396 = vmatpush1.msra.mxu0 0.0
      %2397 = vmatprep.subr.mxu0 0.0
      %2398 = vmatpush1.msra.mxu0 0.0
      %2399 = vmatprep.subr.mxu0 0.0
      %2400 = vmatpush1.msra.mxu0 0.0
      %2401 = vmatprep.subr.mxu0 0.0
      %2402 = vmatpush1.msra.mxu0 0.0
      %2403 = vmatprep.subr.mxu0 0.0
      %2404 = vmatpush1.msra.mxu0 0.0
      %2405 = vmatprep.subr.mxu0 0.0
      %2406 = vmatpush1.msra.mxu0 0.0
      %2407 = vmatprep.subr.mxu0 0.0
      %2408 = vmatpush1.msra.mxu0 0.0
      %2409 = vmatprep.subr.mxu0 0.0
      %2410 = vmatpush1.msra.mxu0 0.0
      %2411 = vmatprep.subr.mxu0 0.0
      %2412 = vmatpush1.msra.mxu0 0.0
      %2413 = vmatprep.subr.mxu0 0.0
      %2414 = vmatpush1.msra.mxu0 0.0
      %2415 = vmatprep.subr.mxu0 0.0
      %2416 = vmatpush1.msra.mxu0 0.0
      %2417 = vmatprep.subr.mxu0 0.0
      %2418 = vmatpush1.msra.mxu0 0.0
      %2419 = vmatprep.subr.mxu0 0.0
      %2420 = vmatpush1.msra.mxu0 0.0
      %2421 = vmatprep.subr.mxu0 0.0
      %2422 = vmatpush1.msra.mxu0 0.0
      %2423 = vmatprep.subr.mxu0 0.0
      %2424 = vmatpush1.msra.mxu0 0.0
      %2425 = vmatprep.subr.mxu0 0.0
      %2426 = vmatpush1.msra.mxu0 0.0
      %2427 = vmatprep.subr.mxu0 0.0
      %2428 = vmatpush1.msra.mxu0 0.0
      %2429 = vmatprep.subr.mxu0 0.0
      %2430 = vmatpush1.msra.mxu0 0.0
      %2431 = vmatprep.subr.mxu0 0.0
      %2432 = vmatpush1.msra.mxu0 0.0
      %2433 = vmatprep.subr.mxu0 0.0
      %2434 = vmatpush1.msra.mxu0 0.0
      %2435 = vmatprep.subr.mxu0 0.0
      %2436 = vmatpush1.msra.mxu0 0.0
      %2437 = vmatprep.subr.mxu0 0.0
      %2438 = vmatpush1.msra.mxu0 0.0
      %2439 = vmatprep.subr.mxu0 0.0
      %2440 = vmatpush1.msra.mxu0 0.0
      %2441 = vmatprep.subr.mxu0 0.0
      %2442 = vmatpush1.msra.mxu0 0.0
      %2443 = vmatprep.subr.mxu0 0.0
      %2444 = vmatpush1.msra.mxu0 0.0
      %2445 = vmatprep.subr.mxu0 0.0
      %2446 = vmatpush1.msra.mxu0 0.0
      %2447 = vmatprep.subr.mxu0 0.0
      %2448 = vmatpush1.msra.mxu0 0.0
      %2449 = vmatprep.subr.mxu0 0.0
      %2450 = vmatpush1.msra.mxu0 0.0
      %2451 = vmatprep.subr.mxu0 0.0
      %2452 = vmatpush1.msra.mxu0 0.0
      %2453 = vmatprep.mubr.f32.mxu0 0.0
      %2454 = vmatmul.mubr.f32.gmra.mrb[0].mxu0 %v2387
      %v2455 = vpop.f32.mrb[0].mxu0
      %v2456 = vadd.f32 0.0, %v2455
      %v2457 = vpop.f32.mrb[0].mxu0
      %2458 = vdwg.mxu0
      %2459 = vrot.lane.b32.xlu0 %v935, 40
      %v2460 = vpop.permute.xlu0 %2459
      %v2463 = vsel %vm943, %v2382, 0
      %2465 = vmatprep.subr.mxu0 0.0
      %2466 = vmatpush1.msra.mxu0 %v2460
      %2467 = vmatprep.subr.mxu0 0.0
      %2468 = vmatpush1.msra.mxu0 0.0
      %2469 = vmatprep.subr.mxu0 0.0
      %2470 = vmatpush1.msra.mxu0 0.0
      %2471 = vmatprep.subr.mxu0 0.0
      %2472 = vmatpush1.msra.mxu0 0.0
      %2473 = vmatprep.subr.mxu0 0.0
      %2474 = vmatpush1.msra.mxu0 0.0
      %2475 = vmatprep.subr.mxu0 0.0
      %2476 = vmatpush1.msra.mxu0 0.0
      %2477 = vmatprep.subr.mxu0 0.0
      %2478 = vmatpush1.msra.mxu0 0.0
      %2479 = vmatprep.subr.mxu0 0.0
      %2480 = vmatpush1.msra.mxu0 0.0
      %2481 = vmatprep.subr.mxu0 0.0
      %2482 = vmatpush1.msra.mxu0 0.0
      %2483 = vmatprep.subr.mxu0 0.0
      %2484 = vmatpush1.msra.mxu0 0.0
      %2485 = vmatprep.subr.mxu0 0.0
      %2486 = vmatpush1.msra.mxu0 0.0
      %2487 = vmatprep.subr.mxu0 0.0
      %2488 = vmatpush1.msra.mxu0 0.0
      %2489 = vmatprep.subr.mxu0 0.0
      %2490 = vmatpush1.msra.mxu0 0.0
      %2491 = vmatprep.subr.mxu0 0.0
      %2492 = vmatpush1.msra.mxu0 0.0
      %2493 = vmatprep.subr.mxu0 0.0
      %2494 = vmatpush1.msra.mxu0 0.0
      %2495 = vmatprep.subr.mxu0 0.0
      %2496 = vmatpush1.msra.mxu0 0.0
      %2497 = vmatprep.subr.mxu0 0.0
      %2498 = vmatpush1.msra.mxu0 0.0
      %2499 = vmatprep.subr.mxu0 0.0
      %2500 = vmatpush1.msra.mxu0 0.0
      %2501 = vmatprep.subr.mxu0 0.0
      %2502 = vmatpush1.msra.mxu0 0.0
      %2503 = vmatprep.subr.mxu0 0.0
      %2504 = vmatpush1.msra.mxu0 0.0
      %2505 = vmatprep.subr.mxu0 0.0
      %2506 = vmatpush1.msra.mxu0 0.0
      %2507 = vmatprep.subr.mxu0 0.0
      %2508 = vmatpush1.msra.mxu0 0.0
      %2509 = vmatprep.subr.mxu0 0.0
      %2510 = vmatpush1.msra.mxu0 0.0
      %2511 = vmatprep.subr.mxu0 0.0
      %2512 = vmatpush1.msra.mxu0 0.0
      %2513 = vmatprep.subr.mxu0 0.0
      %2514 = vmatpush1.msra.mxu0 0.0
      %2515 = vmatprep.subr.mxu0 0.0
      %2516 = vmatpush1.msra.mxu0 0.0
      %2517 = vmatprep.subr.mxu0 0.0
      %2518 = vmatpush1.msra.mxu0 0.0
      %2519 = vmatprep.subr.mxu0 0.0
      %2520 = vmatpush1.msra.mxu0 0.0
      %2521 = vmatprep.subr.mxu0 0.0
      %2522 = vmatpush1.msra.mxu0 0.0
      %2523 = vmatprep.subr.mxu0 0.0
      %2524 = vmatpush1.msra.mxu0 0.0
      %2525 = vmatprep.subr.mxu0 0.0
      %2526 = vmatpush1.msra.mxu0 0.0
      %2527 = vmatprep.subr.mxu0 0.0
      %2528 = vmatpush1.msra.mxu0 0.0
      %2529 = vmatprep.mubr.f32.mxu0 0.0
      %2530 = vmatmul.mubr.f32.gmra.mrb[0].mxu0 %v2463
      %v2531 = vpop.f32.mrb[0].mxu0
      %v2532 = vadd.f32 0.0, %v2531
      %v2533 = vpop.f32.mrb[0].mxu0
      %2534 = vdwg.mxu0
      %v2535 = vld [vmem:[%s757 + $0x18] sm:$0xff]
      %v2537 = vsel %vm943, %v2456, 0
      %v2540 = vsel %vm943, %v2532, 0
      %2542 = vmatprep.subr.mxu0 0.0
      %2543 = vmatpush1.msra.mxu0 %v2535
      %2544 = vmatprep.subr.mxu0 0.0
      %2545 = vmatpush1.msra.mxu0 0.0
      %2546 = vmatprep.subr.mxu0 0.0
      %2547 = vmatpush1.msra.mxu0 0.0
      %2548 = vmatprep.subr.mxu0 0.0
      %2549 = vmatpush1.msra.mxu0 0.0
      %2550 = vmatprep.subr.mxu0 0.0
      %2551 = vmatpush1.msra.mxu0 0.0
      %2552 = vmatprep.subr.mxu0 0.0
      %2553 = vmatpush1.msra.mxu0 0.0
      %2554 = vmatprep.subr.mxu0 0.0
      %2555 = vmatpush1.msra.mxu0 0.0
      %2556 = vmatprep.subr.mxu0 0.0
      %2557 = vmatpush1.msra.mxu0 0.0
      %2558 = vmatprep.subr.mxu0 0.0
      %2559 = vmatpush1.msra.mxu0 0.0
      %2560 = vmatprep.subr.mxu0 0.0
      %2561 = vmatpush1.msra.mxu0 0.0
      %2562 = vmatprep.subr.mxu0 0.0
      %2563 = vmatpush1.msra.mxu0 0.0
      %2564 = vmatprep.subr.mxu0 0.0
      %2565 = vmatpush1.msra.mxu0 0.0
      %2566 = vmatprep.subr.mxu0 0.0
      %2567 = vmatpush1.msra.mxu0 0.0
      %2568 = vmatprep.subr.mxu0 0.0
      %2569 = vmatpush1.msra.mxu0 0.0
      %2570 = vmatprep.subr.mxu0 0.0
      %2571 = vmatpush1.msra.mxu0 0.0
      %2572 = vmatprep.subr.mxu0 0.0
      %2573 = vmatpush1.msra.mxu0 0.0
      %2574 = vmatprep.subr.mxu0 0.0
      %2575 = vmatpush1.msra.mxu0 0.0
      %2576 = vmatprep.subr.mxu0 0.0
      %2577 = vmatpush1.msra.mxu0 0.0
      %2578 = vmatprep.subr.mxu0 0.0
      %2579 = vmatpush1.msra.mxu0 0.0
      %2580 = vmatprep.subr.mxu0 0.0
      %2581 = vmatpush1.msra.mxu0 0.0
      %2582 = vmatprep.subr.mxu0 0.0
      %2583 = vmatpush1.msra.mxu0 0.0
      %2584 = vmatprep.subr.mxu0 0.0
      %2585 = vmatpush1.msra.mxu0 0.0
      %2586 = vmatprep.subr.mxu0 0.0
      %2587 = vmatpush1.msra.mxu0 0.0
      %2588 = vmatprep.subr.mxu0 0.0
      %2589 = vmatpush1.msra.mxu0 0.0
      %2590 = vmatprep.subr.mxu0 0.0
      %2591 = vmatpush1.msra.mxu0 0.0
      %2592 = vmatprep.subr.mxu0 0.0
      %2593 = vmatpush1.msra.mxu0 0.0
      %2594 = vmatprep.subr.mxu0 0.0
      %2595 = vmatpush1.msra.mxu0 0.0
      %2596 = vmatprep.subr.mxu0 0.0
      %2597 = vmatpush1.msra.mxu0 0.0
      %2598 = vmatprep.subr.mxu0 0.0
      %2599 = vmatpush1.msra.mxu0 0.0
      %2600 = vmatprep.subr.mxu0 0.0
      %2601 = vmatpush1.msra.mxu0 0.0
      %2602 = vmatprep.subr.mxu0 0.0
      %2603 = vmatpush1.msra.mxu0 0.0
      %2604 = vmatprep.subr.mxu0 0.0
      %2605 = vmatpush1.msra.mxu0 0.0
      %2606 = vmatprep.mubr.f32.mxu0 0.0
      %2607 = vmatmul.mubr.f32.gmra.mrb[0].mxu0 %v2537
      %v2608 = vpop.f32.mrb[0].mxu0
      %v2609 = vadd.f32 0.0, %v2608
      %v2610 = vpop.f32.mrb[0].mxu0
      %2611 = vmatprep.mubr.f32.mxu0 0.0
      %2612 = vmatmul.mubr.f32.gmra.mrb[0].mxu0 %v2540
      %v2613 = vpop.f32.mrb[0].mxu0
      %v2614 = vadd.f32 0.0, %v2613
      %v2615 = vpop.f32.mrb[0].mxu0
      %2616 = vdwg.mxu0
      %v2617 = vadd.f32 %v2199, %v2609
      %v2618 = vadd.f32 %v2200, %v2614
      %v2619 = vld [vmem:[%s760] sm:$0x1]
      %v2621 = vlaneseq
      %v2622 = vshrl.u32 %v2621, 7
      %v2623 = vsub.s32 0, %v2622
      %v2624 = vrot.slane %v2619, %v2623
      %v2626 = vadd.f32 %v2617, %v2624
      %v2627 = vadd.f32 %v2618, %v2624
      %v2628 = vadd.f32 %v2626, %v843
      %v2629 = vadd.f32 %v2627, %v844
      %v2630 = vld [vmem:[%s763] sm:$0x1]
      %v2631 = vld [vmem:[%s766] sm:$0x1]
      %v2632 = vsel %vm856, %v2628, 0.0
      %2633 = vadd.xlane.f32.xlu0 %v2632
      %v2634 = vpop.xlane.xlu0 %2633
      %v2635 = vsel %vm856, %v2629, 0.0
      %2636 = vadd.xlane.f32.xlu0 %v2635
      %v2637 = vpop.xlane.xlu0 %2636
      %v2638 = vrcp.pop 32.0
      %v2639 = vmul.f32 %v2634, %v2638
      %v2640 = vmul.f32 %v2637, %v2638
      %v2641 = vsub.f32 %v2628, %v2639
      %v2642 = vsub.f32 %v2629, %v2640
      %v2643 = vmul.f32 %v2641, %v2641
      %v2644 = vmul.f32 %v2642, %v2642
      %v2645 = vsel %vm856, %v2643, 0.0
      %2646 = vadd.xlane.f32.xlu0 %v2645
      %v2647 = vpop.xlane.xlu0 %2646
      %v2648 = vsel %vm856, %v2644, 0.0
      %2649 = vadd.xlane.f32.xlu0 %v2648
      %v2650 = vpop.xlane.xlu0 %2649
      %v2651 = vmul.f32 %v2647, %v2638
      %v2652 = vmul.f32 %v2650, %v2638
      %v2653 = vadd.f32 %v2651, 1e-12
      %v2654 = vadd.f32 %v2652, 1e-12
      %v2655 = vrsqrt.pop %v2653
      %v2656 = vrsqrt.pop %v2654
      %v2657 = vmul.f32 %v2641, %v2655
      %v2658 = vmul.f32 %v2642, %v2656
      %v2660 = vlaneseq
      %v2661 = vshrl.u32 %v2660, 7
      %v2662 = vsub.s32 0, %v2661
      %v2663 = vrot.slane %v2630, %v2662
      %v2665 = vmul.f32 %v2657, %v2663
      %v2666 = vmul.f32 %v2658, %v2663
      %v2668 = vlaneseq
      %v2669 = vshrl.u32 %v2668, 7
      %v2670 = vsub.s32 0, %v2669
      %v2671 = vrot.slane %v2631, %v2670
      %v2673 = vadd.f32 %v2665, %v2671
      %v2674 = vadd.f32 %v2666, %v2671
      %v2675 = vld [vmem:[%s771] sm:$0xff]
      %v2676 = vld [vmem:[%s771 + $0x8] sm:$0xff]
      %v2677 = vld [vmem:[%s771 + $0x10] sm:$0xff]
      %v2678 = vld [vmem:[%s771 + $0x18] sm:$0xff]
      %v2679 = vld [vmem:[%s774] sm:$0x1]
      %v2681 = vlaneseq
      %v2682 = vshrl.u32 %v2681, 7
      %v2683 = vsub.s32 0, %v2682
      %v2684 = vrot.slane %v2679, %v2683
      %v2687 = vsel %vm856, %v2673, 0
      %v2690 = vsel %vm856, %v2674, 0
      %2692 = vmatprep.subr.mxu0 0.0
      %2693 = vmatpush1.msra.mxu0 %v2675
      %2694 = vmatprep.subr.mxu0 0.0
      %2695 = vmatpush1.msra.mxu0 %v2676
      %2696 = vmatprep.subr.mxu0 0.0
      %2697 = vmatpush1.msra.mxu0 %v2677
      %2698 = vmatprep.subr.mxu0 0.0
      %2699 = vmatpush1.msra.mxu0 %v2678
      %2700 = vmatprep.subr.mxu0 0.0
      %2701 = vmatpush1.msra.mxu0 0.0
      %2702 = vmatprep.subr.mxu0 0.0
      %2703 = vmatpush1.msra.mxu0 0.0
      %2704 = vmatprep.subr.mxu0 0.0
      %2705 = vmatpush1.msra.mxu0 0.0
      %2706 = vmatprep.subr.mxu0 0.0
      %2707 = vmatpush1.msra.mxu0 0.0
      %2708 = vmatprep.subr.mxu0 0.0
      %2709 = vmatpush1.msra.mxu0 0.0
      %2710 = vmatprep.subr.mxu0 0.0
      %2711 = vmatpush1.msra.mxu0 0.0
      %2712 = vmatprep.subr.mxu0 0.0
      %2713 = vmatpush1.msra.mxu0 0.0
      %2714 = vmatprep.subr.mxu0 0.0
      %2715 = vmatpush1.msra.mxu0 0.0
      %2716 = vmatprep.subr.mxu0 0.0
      %2717 = vmatpush1.msra.mxu0 0.0
      %2718 = vmatprep.subr.mxu0 0.0
      %2719 = vmatpush1.msra.mxu0 0.0
      %2720 = vmatprep.subr.mxu0 0.0
      %2721 = vmatpush1.msra.mxu0 0.0
      %2722 = vmatprep.subr.mxu0 0.0
      %2723 = vmatpush1.msra.mxu0 0.0
      %2724 = vmatprep.subr.mxu0 0.0
      %2725 = vmatpush1.msra.mxu0 0.0
      %2726 = vmatprep.subr.mxu0 0.0
      %2727 = vmatpush1.msra.mxu0 0.0
      %2728 = vmatprep.subr.mxu0 0.0
      %2729 = vmatpush1.msra.mxu0 0.0
      %2730 = vmatprep.subr.mxu0 0.0
      %2731 = vmatpush1.msra.mxu0 0.0
      %2732 = vmatprep.subr.mxu0 0.0
      %2733 = vmatpush1.msra.mxu0 0.0
      %2734 = vmatprep.subr.mxu0 0.0
      %2735 = vmatpush1.msra.mxu0 0.0
      %2736 = vmatprep.subr.mxu0 0.0
      %2737 = vmatpush1.msra.mxu0 0.0
      %2738 = vmatprep.subr.mxu0 0.0
      %2739 = vmatpush1.msra.mxu0 0.0
      %2740 = vmatprep.subr.mxu0 0.0
      %2741 = vmatpush1.msra.mxu0 0.0
      %2742 = vmatprep.subr.mxu0 0.0
      %2743 = vmatpush1.msra.mxu0 0.0
      %2744 = vmatprep.subr.mxu0 0.0
      %2745 = vmatpush1.msra.mxu0 0.0
      %2746 = vmatprep.subr.mxu0 0.0
      %2747 = vmatpush1.msra.mxu0 0.0
      %2748 = vmatprep.subr.mxu0 0.0
      %2749 = vmatpush1.msra.mxu0 0.0
      %2750 = vmatprep.subr.mxu0 0.0
      %2751 = vmatpush1.msra.mxu0 0.0
      %2752 = vmatprep.subr.mxu0 0.0
      %2753 = vmatpush1.msra.mxu0 0.0
      %2754 = vmatprep.subr.mxu0 0.0
      %2755 = vmatpush1.msra.mxu0 0.0
      %2756 = vmatprep.mubr.f32.mxu0 0.0
      %2757 = vmatmul.mubr.f32.gmra.mrb[0].mxu0 %v2687
      %v2758 = vpop.f32.mrb[0].mxu0
      %v2759 = vadd.f32 %v2684, %v2758
      %v2760 = vpop.f32.mrb[0].mxu0
      %2761 = vmatprep.mubr.f32.mxu0 0.0
      %2762 = vmatmul.mubr.f32.gmra.mrb[0].mxu0 %v2690
      %v2763 = vpop.f32.mrb[0].mxu0
      %v2764 = vadd.f32 %v2684, %v2763
      %v2765 = vpop.f32.mrb[0].mxu0
      %2766 = vdwg.mxu0
      %v2767 = vmul.f32 %v2759, %v2759
      %v2768 = vmul.f32 %v2764, %v2764
      %v2769 = vmul.f32 %v2759, %v2767
      %v2770 = vmul.f32 %v2764, %v2768
      %v2771 = vmul.f32 %v2769, 0.044715
      %v2772 = vmul.f32 %v2770, 0.044715
      %v2773 = vadd.f32 %v2759, %v2771
      %v2774 = vadd.f32 %v2764, %v2772
      %v2775 = vmul.f32 %v2773, 0.7978846
      %v2776 = vmul.f32 %v2774, 0.7978846
      %v2777 = vtanh.pop %v2775
      %v2778 = vtanh.pop %v2776
      %v2779 = vadd.f32 %v2777, 1.0
      %v2780 = vadd.f32 %v2778, 1.0
      %v2781 = vmul.f32 %v2779, 0.5
      %v2782 = vmul.f32 %v2780, 0.5
      %v2783 = vmul.f32 %v2759, %v2781
      %v2784 = vmul.f32 %v2764, %v2782
      %v2785 = vld [vmem:[%s779] sm:$0xff]
      %v2786 = vld [vmem:[%s779 + $0x8] sm:$0xff]
      %v2787 = vld [vmem:[%s779 + $0x10] sm:$0xff]
      %v2788 = vld [vmem:[%s779 + $0x18] sm:$0xff]
      %v2789 = vld [vmem:[%s779 + $0x20] sm:$0xff]
      %v2790 = vld [vmem:[%s779 + $0x28] sm:$0xff]
      %v2791 = vld [vmem:[%s779 + $0x30] sm:$0xff]
      %v2792 = vld [vmem:[%s779 + $0x38] sm:$0xff]
      %v2793 = vld [vmem:[%s782] sm:$0x1]
      %v2795 = vlaneseq
      %v2796 = vshrl.u32 %v2795, 7
      %v2797 = vsub.s32 0, %v2796
      %v2798 = vrot.slane %v2793, %v2797
      %vm2800 = vcmask 523264
      %v2802 = vsel %vm2800, %v2783, 0
      %v2805 = vsel %vm2800, %v2784, 0
      %2807 = vmatprep.subr.mxu0 0.0
      %2808 = vmatpush1.msra.mxu0 %v2785
      %2809 = vmatprep.subr.mxu0 0.0
      %2810 = vmatpush1.msra.mxu0 %v2786
      %2811 = vmatprep.subr.mxu0 0.0
      %2812 = vmatpush1.msra.mxu0 %v2787
      %2813 = vmatprep.subr.mxu0 0.0
      %2814 = vmatpush1.msra.mxu0 %v2788
      %2815 = vmatprep.subr.mxu0 0.0
      %2816 = vmatpush1.msra.mxu0 %v2789
      %2817 = vmatprep.subr.mxu0 0.0
      %2818 = vmatpush1.msra.mxu0 %v2790
      %2819 = vmatprep.subr.mxu0 0.0
      %2820 = vmatpush1.msra.mxu0 %v2791
      %2821 = vmatprep.subr.mxu0 0.0
      %2822 = vmatpush1.msra.mxu0 %v2792
      %2823 = vmatprep.subr.mxu0 0.0
      %2824 = vmatpush1.msra.mxu0 0.0
      %2825 = vmatprep.subr.mxu0 0.0
      %2826 = vmatpush1.msra.mxu0 0.0
      %2827 = vmatprep.subr.mxu0 0.0
      %2828 = vmatpush1.msra.mxu0 0.0
      %2829 = vmatprep.subr.mxu0 0.0
      %2830 = vmatpush1.msra.mxu0 0.0
      %2831 = vmatprep.subr.mxu0 0.0
      %2832 = vmatpush1.msra.mxu0 0.0
      %2833 = vmatprep.subr.mxu0 0.0
      %2834 = vmatpush1.msra.mxu0 0.0
      %2835 = vmatprep.subr.mxu0 0.0
      %2836 = vmatpush1.msra.mxu0 0.0
      %2837 = vmatprep.subr.mxu0 0.0
      %2838 = vmatpush1.msra.mxu0 0.0
      %2839 = vmatprep.subr.mxu0 0.0
      %2840 = vmatpush1.msra.mxu0 0.0
      %2841 = vmatprep.subr.mxu0 0.0
      %2842 = vmatpush1.msra.mxu0 0.0
      %2843 = vmatprep.subr.mxu0 0.0
      %2844 = vmatpush1.msra.mxu0 0.0
      %2845 = vmatprep.subr.mxu0 0.0
      %2846 = vmatpush1.msra.mxu0 0.0
      %2847 = vmatprep.subr.mxu0 0.0
      %2848 = vmatpush1.msra.mxu0 0.0
      %2849 = vmatprep.subr.mxu0 0.0
      %2850 = vmatpush1.msra.mxu0 0.0
      %2851 = vmatprep.subr.mxu0 0.0
      %2852 = vmatpush1.msra.mxu0 0.0
      %2853 = vmatprep.subr.mxu0 0.0
      %2854 = vmatpush1.msra.mxu0 0.0
      %2855 = vmatprep.subr.mxu0 0.0
      %2856 = vmatpush1.msra.mxu0 0.0
      %2857 = vmatprep.subr.mxu0 0.0
      %2858 = vmatpush1.msra.mxu0 0.0
      %2859 = vmatprep.subr.mxu0 0.0
      %2860 = vmatpush1.msra.mxu0 0.0
      %2861 = vmatprep.subr.mxu0 0.0
      %2862 = vmatpush1.msra.mxu0 0.0
      %2863 = vmatprep.subr.mxu0 0.0
      %2864 = vmatpush1.msra.mxu0 0.0
      %2865 = vmatprep.subr.mxu0 0.0
      %2866 = vmatpush1.msra.mxu0 0.0
      %2867 = vmatprep.subr.mxu0 0.0
      %2868 = vmatpush1.msra.mxu0 0.0
      %2869 = vmatprep.subr.mxu0 0.0
      %2870 = vmatpush1.msra.mxu0 0.0
      %2871 = vmatprep.mubr.f32.mxu0 0.0
      %2872 = vmatmul.mubr.f32.gmra.mrb[0].mxu0 %v2802
      %v2873 = vpop.f32.mrb[0].mxu0
      %v2874 = vadd.f32 %v2798, %v2873
      %v2875 = vpop.f32.mrb[0].mxu0
      %2876 = vmatprep.mubr.f32.mxu0 0.0
      %2877 = vmatmul.mubr.f32.gmra.mrb[0].mxu0 %v2805
      %v2878 = vpop.f32.mrb[0].mxu0
      %v2879 = vadd.f32 %v2798, %v2878
      %v2880 = vpop.f32.mrb[0].mxu0
      %2881 = vdwg.mxu0
      %v2882 = vadd.f32 %v2874, %v2673
      %v2883 = vadd.f32 %v2879, %v2674
      %v2884 = vld [vmem:[%s785] sm:$0x1]
      %v2885 = vld [vmem:[%s788] sm:$0x1]
      %v2886 = vsel %vm856, %v2882, 0.0
      %2887 = vadd.xlane.f32.xlu0 %v2886
      %v2888 = vpop.xlane.xlu0 %2887
      %v2889 = vsel %vm856, %v2883, 0.0
      %2890 = vadd.xlane.f32.xlu0 %v2889
      %v2891 = vpop.xlane.xlu0 %2890
      %v2892 = vmul.f32 %v2888, %v2638
      %v2893 = vmul.f32 %v2891, %v2638
      %v2894 = vsub.f32 %v2882, %v2892
      %v2895 = vsub.f32 %v2883, %v2893
      %v2896 = vmul.f32 %v2894, %v2894
      %v2897 = vmul.f32 %v2895, %v2895
      %v2898 = vsel %vm856, %v2896, 0.0
      %2899 = vadd.xlane.f32.xlu0 %v2898
      %v2900 = vpop.xlane.xlu0 %2899
      %v2901 = vsel %vm856, %v2897, 0.0
      %2902 = vadd.xlane.f32.xlu0 %v2901
      %v2903 = vpop.xlane.xlu0 %2902
      %v2904 = vmul.f32 %v2900, %v2638
      %v2905 = vmul.f32 %v2903, %v2638
      %v2906 = vadd.f32 %v2904, 1e-12
      %v2907 = vadd.f32 %v2905, 1e-12
      %v2908 = vrsqrt.pop %v2906
      %v2909 = vrsqrt.pop %v2907
      %v2910 = vmul.f32 %v2894, %v2908
      %v2911 = vmul.f32 %v2895, %v2909
      %v2913 = vlaneseq
      %v2914 = vshrl.u32 %v2913, 7
      %v2915 = vsub.s32 0, %v2914
      %v2916 = vrot.slane %v2884, %v2915
      %v2918 = vmul.f32 %v2910, %v2916
      %v2919 = vmul.f32 %v2911, %v2916
      %v2921 = vlaneseq
      %v2922 = vshrl.u32 %v2921, 7
      %v2923 = vsub.s32 0, %v2922
      %v2924 = vrot.slane %v2885, %v2923
      %v2926 = vadd.f32 %v2918, %v2924
      %v2927 = vadd.f32 %v2919, %v2924
      %2928 = vst.msk [vmem:[#allocation2] sm:$0xff] %vm856, %v2926
      %2929 = vst.msk [vmem:[#allocation2 + $0x8] sm:$0xff] %vm856, %v2927
      %p2930 = scmp.eq.s32.totalorder %s33, 1
      // Predicated region
      $region105: #{bert_similarity_forward.1} parent=99 // pred_check
        %p2931 = pneg %p2930
      $region106: #{bert_similarity_forward.1} parent=99 // pred_check_branch
        %2933 = sbr.rel (%p2931) target = $region108
      $region107: #{bert_similarity_forward.1} parent=99 // pred_region
        %v2934 = vld [vmem:[%s16] sm:$0xff]
        %v2935 = vld [vmem:[%s16 + $0x8] sm:$0xff]
        %v2936 = vld [vmem:[%s16 + $0x10] sm:$0xff]
        %v2937 = vld [vmem:[%s16 + $0x18] sm:$0xff]
        %v2938 = vld [vmem:[%s17] sm:$0x1]
        %v2940 = vlaneseq
        %v2941 = vshrl.u32 %v2940, 7
        %v2942 = vsub.s32 0, %v2941
        %v2943 = vrot.slane %v2938, %v2942
        %v2946 = vsel %vm856, %v2926, 0
        %v2949 = vsel %vm856, %v2927, 0
        %2951 = vmatprep.subr.mxu0 0.0
        %2952 = vmatpush1.msra.mxu0 %v2934
        %2953 = vmatprep.subr.mxu0 0.0
        %2954 = vmatpush1.msra.mxu0 %v2935
        %2955 = vmatprep.subr.mxu0 0.0
        %2956 = vmatpush1.msra.mxu0 %v2936
        %2957 = vmatprep.subr.mxu0 0.0
        %2958 = vmatpush1.msra.mxu0 %v2937
        %2959 = vmatprep.subr.mxu0 0.0
        %2960 = vmatpush1.msra.mxu0 0.0
        %2961 = vmatprep.subr.mxu0 0.0
        %2962 = vmatpush1.msra.mxu0 0.0
        %2963 = vmatprep.subr.mxu0 0.0
        %2964 = vmatpush1.msra.mxu0 0.0
        %2965 = vmatprep.subr.mxu0 0.0
        %2966 = vmatpush1.msra.mxu0 0.0
        %2967 = vmatprep.subr.mxu0 0.0
        %2968 = vmatpush1.msra.mxu0 0.0
        %2969 = vmatprep.subr.mxu0 0.0
        %2970 = vmatpush1.msra.mxu0 0.0
        %2971 = vmatprep.subr.mxu0 0.0
        %2972 = vmatpush1.msra.mxu0 0.0
        %2973 = vmatprep.subr.mxu0 0.0
        %2974 = vmatpush1.msra.mxu0 0.0
        %2975 = vmatprep.subr.mxu0 0.0
        %2976 = vmatpush1.msra.mxu0 0.0
        %2977 = vmatprep.subr.mxu0 0.0
        %2978 = vmatpush1.msra.mxu0 0.0
        %2979 = vmatprep.subr.mxu0 0.0
        %2980 = vmatpush1.msra.mxu0 0.0
        %2981 = vmatprep.subr.mxu0 0.0
        %2982 = vmatpush1.msra.mxu0 0.0
        %2983 = vmatprep.subr.mxu0 0.0
        %2984 = vmatpush1.msra.mxu0 0.0
        %2985 = vmatprep.subr.mxu0 0.0
        %2986 = vmatpush1.msra.mxu0 0.0
        %2987 = vmatprep.subr.mxu0 0.0
        %2988 = vmatpush1.msra.mxu0 0.0
        %2989 = vmatprep.subr.mxu0 0.0
        %2990 = vmatpush1.msra.mxu0 0.0
        %2991 = vmatprep.subr.mxu0 0.0
        %2992 = vmatpush1.msra.mxu0 0.0
        %2993 = vmatprep.subr.mxu0 0.0
        %2994 = vmatpush1.msra.mxu0 0.0
        %2995 = vmatprep.subr.mxu0 0.0
        %2996 = vmatpush1.msra.mxu0 0.0
        %2997 = vmatprep.subr.mxu0 0.0
        %2998 = vmatpush1.msra.mxu0 0.0
        %2999 = vmatprep.subr.mxu0 0.0
        %3000 = vmatpush1.msra.mxu0 0.0
        %3001 = vmatprep.subr.mxu0 0.0
        %3002 = vmatpush1.msra.mxu0 0.0
        %3003 = vmatprep.subr.mxu0 0.0
        %3004 = vmatpush1.msra.mxu0 0.0
        %3005 = vmatprep.subr.mxu0 0.0
        %3006 = vmatpush1.msra.mxu0 0.0
        %3007 = vmatprep.subr.mxu0 0.0
        %3008 = vmatpush1.msra.mxu0 0.0
        %3009 = vmatprep.subr.mxu0 0.0
        %3010 = vmatpush1.msra.mxu0 0.0
        %3011 = vmatprep.subr.mxu0 0.0
        %3012 = vmatpush1.msra.mxu0 0.0
        %3013 = vmatprep.subr.mxu0 0.0
        %3014 = vmatpush1.msra.mxu0 0.0
        %3015 = vmatprep.mubr.f32.mxu0 0.0
        %3016 = vmatmul.mubr.f32.gmra.mrb[0].mxu0 %v2946
        %v3017 = vpop.f32.mrb[0].mxu0
        %v3018 = vadd.f32 %v2943, %v3017
        %v3019 = vpop.f32.mrb[0].mxu0
        %3020 = vmatprep.mubr.f32.mxu0 0.0
        %3021 = vmatmul.mubr.f32.gmra.mrb[0].mxu0 %v2949
        %v3022 = vpop.f32.mrb[0].mxu0
        %v3023 = vadd.f32 %v2943, %v3022
        %v3024 = vpop.f32.mrb[0].mxu0
        %3025 = vdwg.mxu0
        %v3026 = vtanh.pop %v3018
        %v3027 = vtanh.pop %v3023
        %v3028 = vld [vmem:[%s18] sm:$0xff]
        %v3029 = vld [vmem:[%s18 + $0x8] sm:$0xff]
        %v3030 = vld [vmem:[%s18 + $0x10] sm:$0xff]
        %v3031 = vld [vmem:[%s18 + $0x18] sm:$0xff]
        %v3032 = vld [vmem:[#allocation3] sm:$0x1]
        %v3034 = vlaneseq
        %v3035 = vshrl.u32 %v3034, 7
        %v3036 = vsub.s32 0, %v3035
        %v3037 = vrot.slane %v3032, %v3036
        %v3040 = vsel %vm856, %v3026, 0
        %v3043 = vsel %vm856, %v3027, 0
        %3045 = vmatprep.subr.mxu0 0.0
        %3046 = vmatpush1.msra.mxu0 %v3028
        %3047 = vmatprep.subr.mxu0 0.0
        %3048 = vmatpush1.msra.mxu0 %v3029
        %3049 = vmatprep.subr.mxu0 0.0
        %3050 = vmatpush1.msra.mxu0 %v3030
        %3051 = vmatprep.subr.mxu0 0.0
        %3052 = vmatpush1.msra.mxu0 %v3031
        %3053 = vmatprep.subr.mxu0 0.0
        %3054 = vmatpush1.msra.mxu0 0.0
        %3055 = vmatprep.subr.mxu0 0.0
        %3056 = vmatpush1.msra.mxu0 0.0
        %3057 = vmatprep.subr.mxu0 0.0
        %3058 = vmatpush1.msra.mxu0 0.0
        %3059 = vmatprep.subr.mxu0 0.0
        %3060 = vmatpush1.msra.mxu0 0.0
        %3061 = vmatprep.subr.mxu0 0.0
        %3062 = vmatpush1.msra.mxu0 0.0
        %3063 = vmatprep.subr.mxu0 0.0
        %3064 = vmatpush1.msra.mxu0 0.0
        %3065 = vmatprep.subr.mxu0 0.0
        %3066 = vmatpush1.msra.mxu0 0.0
        %3067 = vmatprep.subr.mxu0 0.0
        %3068 = vmatpush1.msra.mxu0 0.0
        %3069 = vmatprep.subr.mxu0 0.0
        %3070 = vmatpush1.msra.mxu0 0.0
        %3071 = vmatprep.subr.mxu0 0.0
        %3072 = vmatpush1.msra.mxu0 0.0
        %3073 = vmatprep.subr.mxu0 0.0
        %3074 = vmatpush1.msra.mxu0 0.0
        %3075 = vmatprep.subr.mxu0 0.0
        %3076 = vmatpush1.msra.mxu0 0.0
        %3077 = vmatprep.subr.mxu0 0.0
        %3078 = vmatpush1.msra.mxu0 0.0
        %3079 = vmatprep.subr.mxu0 0.0
        %3080 = vmatpush1.msra.mxu0 0.0
        %3081 = vmatprep.subr.mxu0 0.0
        %3082 = vmatpush1.msra.mxu0 0.0
        %3083 = vmatprep.subr.mxu0 0.0
        %3084 = vmatpush1.msra.mxu0 0.0
        %3085 = vmatprep.subr.mxu0 0.0
        %3086 = vmatpush1.msra.mxu0 0.0
        %3087 = vmatprep.subr.mxu0 0.0
        %3088 = vmatpush1.msra.mxu0 0.0
        %3089 = vmatprep.subr.mxu0 0.0
        %3090 = vmatpush1.msra.mxu0 0.0
        %3091 = vmatprep.subr.mxu0 0.0
        %3092 = vmatpush1.msra.mxu0 0.0
        %3093 = vmatprep.subr.mxu0 0.0
        %3094 = vmatpush1.msra.mxu0 0.0
        %3095 = vmatprep.subr.mxu0 0.0
        %3096 = vmatpush1.msra.mxu0 0.0
        %3097 = vmatprep.subr.mxu0 0.0
        %3098 = vmatpush1.msra.mxu0 0.0
        %3099 = vmatprep.subr.mxu0 0.0
        %3100 = vmatpush1.msra.mxu0 0.0
        %3101 = vmatprep.subr.mxu0 0.0
        %3102 = vmatpush1.msra.mxu0 0.0
        %3103 = vmatprep.subr.mxu0 0.0
        %3104 = vmatpush1.msra.mxu0 0.0
        %3105 = vmatprep.subr.mxu0 0.0
        %3106 = vmatpush1.msra.mxu0 0.0
        %3107 = vmatprep.subr.mxu0 0.0
        %3108 = vmatpush1.msra.mxu0 0.0
        %3109 = vmatprep.mubr.f32.mxu0 0.0
        %3110 = vmatmul.mubr.f32.gmra.mrb[0].mxu0 %v3040
        %v3111 = vpop.f32.mrb[0].mxu0
        %v3112 = vadd.f32 %v3037, %v3111
        %v3113 = vpop.f32.mrb[0].mxu0
        %3114 = vmatprep.mubr.f32.mxu0 0.0
        %3115 = vmatmul.mubr.f32.gmra.mrb[0].mxu0 %v3043
        %v3116 = vpop.f32.mrb[0].mxu0
        %v3117 = vadd.f32 %v3037, %v3116
        %v3118 = vpop.f32.mrb[0].mxu0
        %3119 = vdwg.mxu0
        %vm3120 = vcmask 7168
        %3121 = vst.msk [vmem:[%s20] sm:$0xff] %vm3120, %v3112
        %3122 = vst.msk [vmem:[%s20 + $0x8] sm:$0xff] %vm3120, %v3117
      $region108: #{bert_similarity_forward.1} parent=99 // pred_fallthru
        _
      // Predicated region
      $region109: #{bert_similarity_forward.1} parent=99 // pred_check
        %p3123 = pneg %p526
      $region110: #{bert_similarity_forward.1} parent=99 // pred_check_branch
        %3125 = sbr.rel (%p3123) target = $region112
      $region111: #{bert_similarity_forward.1} parent=99 // pred_region
        _
      $region112: #{bert_similarity_forward.1} parent=99 // pred_fallthru
        _
      // Predicated region
      $region113: #{bert_similarity_forward.1} parent=99 // pred_check
        %p3126 = pneg %p526
      $region114: #{bert_similarity_forward.1} parent=99 // pred_check_branch
        %3128 = sbr.rel (%p3126) target = $region116
      $region115: #{bert_similarity_forward.1} parent=99 // pred_region
        _
      $region116: #{bert_similarity_forward.1} parent=99 // pred_fallthru
        _
    $region100: #{bert_similarity_forward.1} parent=5 // pred_fallthru
      _
    %p3129 = scmp.le.s32.totalorder 2, %s28
    // Predicated region
    $region117: #{bert_similarity_forward.1} parent=5 // pred_check
      %p3130 = pneg %p3129
    $region118: #{bert_similarity_forward.1} parent=5 // pred_check_branch
      %3132 = sbr.rel (%p3130) target = $region120
    $region119: #{bert_similarity_forward.1} parent=5 // pred_region
      %s3133 = ssub.s32 %s28, 2
    $region120: #{bert_similarity_forward.1} parent=5 // pred_fallthru
      _
  $region6: #{bert_similarity_forward.1} parent=0 // loop_footer
    %s32 = sadd.s32 1, %s28
  $region7: #{bert_similarity_forward.1} parent=0 // loop_footer_branch
    %27 = sbr.rel target = $region3
  $region8: #{bert_similarity_forward.1} parent=0 // loop_exit
    _

</llo_original>
